<compile_context>
chip_gen: v7x
topology: tpu7x:2x2x1
jax: 0.10.0
libtpu: 0.0.40
codegen_flags: <defaults>
</compile_context>

<pallas_src>
import jax
import jax.numpy as jnp
from jax.experimental import pallas as pl
from jax.experimental.pallas import tpu as pltpu

_BN_EPS = 1e-5            # PyTorch BatchNorm2d default
_TM_CAP = 512             # max pixel (lane) tile; (K=1024, 512) bf16 block
                          # double-buffered is ~2 MiB -> fine on v5e/v6e/v7x

# (stride, padding) per ConvTranspose2d layer -- static config (kept out of
# the jitted pytree so Python control flow / slicing stays concrete).
_LAYER_STRIDE_PAD = ((1, 0), (2, 1), (2, 1), (2, 1), (2, 1))


def _pick_tile(m, cap=_TM_CAP):
    """Largest tile <= cap that divides m exactly (no pad / slice needed)."""
    if m <= cap:
        return m
    for t in (512, 256, 128, 64, 32, 16, 8, 4, 2, 1):
        if t <= cap and m % t == 0:
            return t
    return m


# ----------------------------------------------------------------------------
# Pallas kernels
# ----------------------------------------------------------------------------
def _matmul_stats_kernel(w_ref, p_ref, y_ref, s_ref, sq_ref):
    """y = W @ P (f32 acc) + fused per-channel sum / sum-of-squares."""
    @pl.when(pl.program_id(0) == 0)
    def _():
        s_ref[...] = jnp.zeros_like(s_ref)
        sq_ref[...] = jnp.zeros_like(sq_ref)

    y = jnp.dot(w_ref[...], p_ref[...], preferred_element_type=jnp.float32)
    y_ref[...] = y.astype(y_ref.dtype)
    s_ref[...] += jnp.sum(y, axis=1, keepdims=True)
    sq_ref[...] += jnp.sum(y * y, axis=1, keepdims=True)


def pallas_matmul_stats(wT, patches):
    """(Cout, K) @ (K, M) -> y (Cout, M) f32, plus per-channel sum / sumsq."""
    Cout, K = wT.shape
    K2, M = patches.shape
    assert K == K2
    tm = _pick_tile(M)
    y, s, sq = pl.pallas_call(
        _matmul_stats_kernel,
        out_shape=(
            jax.ShapeDtypeStruct((Cout, M), jnp.float32),
            jax.ShapeDtypeStruct((Cout, 1), jnp.float32),
            jax.ShapeDtypeStruct((Cout, 1), jnp.float32),
        ),
        grid=(M // tm,),
        in_specs=[
            pl.BlockSpec((Cout, K), lambda i: (0, 0)),
            pl.BlockSpec((K, tm), lambda i: (0, i)),
        ],
        out_specs=(
            pl.BlockSpec((Cout, tm), lambda i: (0, i)),
            pl.BlockSpec((Cout, 1), lambda i: (0, 0)),   # resident accumulator
            pl.BlockSpec((Cout, 1), lambda i: (0, 0)),   # resident accumulator
        ),
        compiler_params=pltpu.CompilerParams(
            dimension_semantics=("arbitrary",)),  # sequential: accumulators
    )(wT, patches)
    return y, s, sq


def _matmul_sigmoid_kernel(w_ref, p_ref, o_ref):
    y = jnp.dot(w_ref[...], p_ref[...], preferred_element_type=jnp.float32)
    o_ref[...] = jax.nn.sigmoid(y).astype(o_ref.dtype)


def pallas_matmul_sigmoid(wT, patches):
    """(Cout, K) @ (K, M) with fused sigmoid; lane-dense (Cout, M) output."""
    Cout, K = wT.shape
    _, M = patches.shape
    tm = _pick_tile(M)
    return pl.pallas_call(
        _matmul_sigmoid_kernel,
        out_shape=jax.ShapeDtypeStruct((Cout, M), jnp.float32),
        grid=(M // tm,),
        in_specs=[
            pl.BlockSpec((Cout, K), lambda i: (0, 0)),
            pl.BlockSpec((K, tm), lambda i: (0, i)),
        ],
        out_specs=pl.BlockSpec((Cout, tm), lambda i: (0, i)),
        compiler_params=pltpu.CompilerParams(
            dimension_semantics=("parallel",)),
    )(wT, patches)


def _affine_relu_kernel(y_ref, scale_ref, shift_ref, o_ref):
    y = y_ref[...] * scale_ref[...] + shift_ref[...]
    o_ref[...] = jnp.maximum(y, 0.0).astype(o_ref.dtype)


def pallas_affine_relu(y, scale, shift, out_dtype=jnp.bfloat16):
    """relu(y * scale + shift); per-channel scale/shift; channel-major y."""
    C, M = y.shape
    tm = _pick_tile(M)
    return pl.pallas_call(
        _affine_relu_kernel,
        out_shape=jax.ShapeDtypeStruct((C, M), out_dtype),
        grid=(M // tm,),
        in_specs=[
            pl.BlockSpec((C, tm), lambda i: (0, i)),
            pl.BlockSpec((C, 1), lambda i: (0, 0)),
            pl.BlockSpec((C, 1), lambda i: (0, 0)),
        ],
        out_specs=pl.BlockSpec((C, tm), lambda i: (0, i)),
        compiler_params=pltpu.CompilerParams(
            dimension_semantics=("parallel",)),
    )(y, scale.reshape(C, 1), shift.reshape(C, 1))


# ----------------------------------------------------------------------------
# ConvTranspose2d lowering glue (channel-major zero-dilation + pad + im2col)
# ----------------------------------------------------------------------------
def _deconv_patches_cm(x, stride, pad, k=4):
    """Channel-major im2col for transposed conv.

    x: (Cin, N, H, W).  Returns patches (K, M), K = k*k*Cin in (ky, kx, cin)
    order, M = N*OH*OW in (n, oh, ow) order, plus (N, OH, OW).  Transposed
    conv == zero-dilate + pad(k-1-p) + standard conv with the flipped kernel.
    """
    # TODO(synk): at realistic DCGAN sizes (ngf=64, big batch), replace this
    # 16x patch materialization with an in-kernel streaming gather
    # (memory_space=pl.ANY + make_async_copy over the k*k shifted windows).
    Cin, N, H, W = x.shape
    if stride > 1:
        Hd = (H - 1) * stride + 1
        Wd = (W - 1) * stride + 1
        xd = jnp.zeros((Cin, N, Hd, Wd), x.dtype).at[:, :, ::stride, ::stride].set(x)
    else:
        xd, Hd, Wd = x, H, W
    pp = k - 1 - pad
    xp = jnp.pad(xd, ((0, 0), (0, 0), (pp, pp), (pp, pp)))
    OH = Hd + 2 * pp - k + 1
    OW = Wd + 2 * pp - k + 1
    pats = [xp[:, :, ky:ky + OH, kx:kx + OW] for ky in range(k) for kx in range(k)]
    pats = jnp.stack(pats, axis=0)                      # (k*k, Cin, N, OH, OW)
    return pats.reshape(k * k * Cin, N * OH * OW), (N, OH, OW)


def _weight_matrix_T(w, k=4):
    """w: (Cin, Cout, k, k) PyTorch ConvTranspose2d layout -> (Cout, k*k*Cin)."""
    cin, cout = w.shape[0], w.shape[1]
    wf = w[:, :, ::-1, ::-1]                            # flip spatial dims
    return jnp.transpose(wf, (1, 2, 3, 0)).reshape(cout, k * k * cin)


# ----------------------------------------------------------------------------
# Generator (DCGAN) parameters + forward
# ----------------------------------------------------------------------------
def init_generator_params(key, nz=16, ngf=8, nc=3):
    cfg = [
        (nz,      ngf * 8),
        (ngf * 8, ngf * 4),
        (ngf * 4, ngf * 2),
        (ngf * 2, ngf),
        (ngf,     nc),
    ]
    weights, gammas, betas = [], [], []
    for i, (cin, cout) in enumerate(cfg):
        key, sub = jax.random.split(key)
        # DCGAN-style N(0, 0.02) init, deterministic via PRNGKey.
        weights.append(0.02 * jax.random.normal(sub, (cin, cout, 4, 4), jnp.float32))
        if i < len(cfg) - 1:  # BatchNorm on all but the last layer
            gammas.append(jnp.ones((cout,), jnp.float32))
            betas.append(jnp.zeros((cout,), jnp.float32))
    return dict(weights=weights, gammas=gammas, betas=betas)


def generator_forward(x_nchw, params):
    """(N, nz, 1, 1) latent -> (N, nc, 64, 64) image in [0, 1]."""
    # Channel-major (C, N, H, W) pipeline; bf16 MXU inputs, f32 accumulation.
    x = jnp.transpose(x_nchw, (1, 0, 2, 3)).astype(jnp.bfloat16)
    n_layers = len(params["weights"])
    for li in range(n_layers):
        w = params["weights"][li]
        stride, pad = _LAYER_STRIDE_PAD[li]
        last = li == n_layers - 1

        patches, (N, OH, OW) = _deconv_patches_cm(x, stride, pad)
        wT = _weight_matrix_T(w).astype(jnp.bfloat16)
        M = N * OH * OW
        Cout = wT.shape[0]

        if last:
            x = pallas_matmul_sigmoid(wT, patches)           # (Cout, M) f32
        else:
            y, s, sq = pallas_matmul_stats(wT, patches)      # (Cout, M) f32
            # BatchNorm2d training-mode batch stats (biased variance).
            mean = s[:, 0] / M
            # clamp guards fp cancellation in E[x^2] - mean^2 (review note).
            var = jnp.maximum(sq[:, 0] / M - mean * mean, 0.0)
            gamma, beta = params["gammas"][li], params["betas"][li]
            scale = gamma * jax.lax.rsqrt(var + _BN_EPS)
            shift = beta - mean * scale
            x = pallas_affine_relu(y, scale, shift)          # (Cout, M) bf16
        x = x.reshape(Cout, N, OH, OW)
    return jnp.transpose(x, (1, 0, 2, 3))                    # NCHW


if __name__ == "__main__":
    key = jax.random.PRNGKey(0)
    pkey, xkey = jax.random.split(key)

    NZ, NGF, NC = 16, 8, 3          # small latent / feature-map sizes
    params = init_generator_params(pkey, nz=NZ, ngf=NGF, nc=NC)

    x = jax.random.normal(xkey, (2, NZ, 1, 1), jnp.float32)  # NCHW latent
    fwd = jax.jit(generator_forward)
    out = jax.block_until_ready(fwd(x, params))

    assert out.shape == (2, NC, 64, 64), out.shape
    assert bool(jnp.isfinite(out).all())
    assert bool((out >= 0.0).all()) and bool((out <= 1.0).all())
    print("KERNEL_OK")
</pallas_src>

<mosaic_0001>
module attributes {stable_mosaic.version = 11 : i64} {
  func.func @_matmul_stats_kernel(%arg0: i32, %arg1: memref<64x256xbf16, #tpu.memory_space<vmem>>, %arg2: memref<256x32xbf16, #tpu.memory_space<vmem>>, %arg3: memref<64x32xf32, #tpu.memory_space<vmem>>, %arg4: memref<64x1xf32, #tpu.memory_space<vmem>>, %arg5: memref<64x1xf32, #tpu.memory_space<vmem>>) attributes {dimension_semantics = [#tpu.dimension_semantics<arbitrary>], iteration_bounds = array<i64: 1>, scalar_prefetch = 0 : i64, scratch_operands = 0 : i64, tpu.core_type = #tpu.core_type<tc>, window_params = [{pipeline_mode = #tpu.pipeline_mode<synchronous>, transform_indices = @transform_0, window_bounds = array<i64: 64, 256>}, {transform_indices = @transform_1, window_bounds = array<i64: 256, 32>}, {transform_indices = @transform_2, window_bounds = array<i64: 64, 32>}, {pipeline_mode = #tpu.pipeline_mode<synchronous>, transform_indices = @transform_3, window_bounds = array<i64: 64, 1>}, {pipeline_mode = #tpu.pipeline_mode<synchronous>, transform_indices = @transform_4, window_bounds = array<i64: 64, 1>}]} {
    %c0_i32 = arith.constant 0 : i32
    %0 = arith.cmpi eq, %arg0, %c0_i32 : i32
    %1 = arith.extui %0 : i1 to i32
    %c0_i32_0 = arith.constant 0 : i32
    %2 = arith.cmpi ne, %1, %c0_i32_0 : i32
    scf.if %2 {
      %cst_16 = arith.constant 0.000000e+00 : f32
      %18 = vector.broadcast %cst_16 : f32 to vector<64x1xf32>
      %c0_17 = arith.constant 0 : index
      %c0_18 = arith.constant 0 : index
      %19 = vector.load %arg4[%c0_17, %c0_18] : memref<64x1xf32, #tpu.memory_space<vmem>>, vector<64x1xf32>
      tpu.vector_store %arg4[%c0_17, %c0_18], %18 {strides = array<i32>} : memref<64x1xf32, #tpu.memory_space<vmem>>, vector<64x1xf32>,
      %cst_19 = arith.constant 0.000000e+00 : f32
      %20 = vector.broadcast %cst_19 : f32 to vector<64x1xf32>
      %c0_20 = arith.constant 0 : index
      %c0_21 = arith.constant 0 : index
      %21 = vector.load %arg5[%c0_20, %c0_21] : memref<64x1xf32, #tpu.memory_space<vmem>>, vector<64x1xf32>
      tpu.vector_store %arg5[%c0_20, %c0_21], %20 {strides = array<i32>} : memref<64x1xf32, #tpu.memory_space<vmem>>, vector<64x1xf32>,
    } else {
    }
    %c0 = arith.constant 0 : index
    %c0_1 = arith.constant 0 : index
    %3 = vector.load %arg1[%c0, %c0_1] : memref<64x256xbf16, #tpu.memory_space<vmem>>, vector<64x256xbf16>
    %c0_2 = arith.constant 0 : index
    %c0_3 = arith.constant 0 : index
    %4 = vector.load %arg2[%c0_2, %c0_3] : memref<256x32xbf16, #tpu.memory_space<vmem>>, vector<256x32xbf16>
    %cst = arith.constant dense<0.000000e+00> : vector<64x32xf32>
    %5 = tpu.matmul %3, %4, %cst {dimension_numbers = #tpu.dot_dimension_numbers<[1], [0], [0], [1], [0, 0, 1, 1], [], []>} : vector<64x256xbf16>, vector<256x32xbf16>, vector<64x32xf32> -> vector<64x32xf32>
    %c0_4 = arith.constant 0 : index
    %c0_5 = arith.constant 0 : index
    %6 = vector.load %arg3[%c0_4, %c0_5] : memref<64x32xf32, #tpu.memory_space<vmem>>, vector<64x32xf32>
    tpu.vector_store %arg3[%c0_4, %c0_5], %5 {strides = array<i32>} : memref<64x32xf32, #tpu.memory_space<vmem>>, vector<64x32xf32>,
    %c0_6 = arith.constant 0 : index
    %c0_7 = arith.constant 0 : index
    %7 = vector.load %arg4[%c0_6, %c0_7] : memref<64x1xf32, #tpu.memory_space<vmem>>, vector<64x1xf32>
    %cst_8 = arith.constant dense<0.000000e+00> : vector<64xf32>
    %8 = vector.multi_reduction <add>, %5, %cst_8 [1] : vector<64x32xf32> to vector<64xf32>
    %9 = vector.shape_cast %8 : vector<64xf32> to vector<64x1xf32>
    %10 = arith.addf %7, %9 : vector<64x1xf32>
    %c0_9 = arith.constant 0 : index
    %c0_10 = arith.constant 0 : index
    %11 = vector.load %arg4[%c0_9, %c0_10] : memref<64x1xf32, #tpu.memory_space<vmem>>, vector<64x1xf32>
    tpu.vector_store %arg4[%c0_9, %c0_10], %10 {strides = array<i32>} : memref<64x1xf32, #tpu.memory_space<vmem>>, vector<64x1xf32>,
    %c0_11 = arith.constant 0 : index
    %c0_12 = arith.constant 0 : index
    %12 = vector.load %arg5[%c0_11, %c0_12] : memref<64x1xf32, #tpu.memory_space<vmem>>, vector<64x1xf32>
    %13 = arith.mulf %5, %5 : vector<64x32xf32>
    %cst_13 = arith.constant dense<0.000000e+00> : vector<64xf32>
    %14 = vector.multi_reduction <add>, %13, %cst_13 [1] : vector<64x32xf32> to vector<64xf32>
    %15 = vector.shape_cast %14 : vector<64xf32> to vector<64x1xf32>
    %16 = arith.addf %12, %15 : vector<64x1xf32>
    %c0_14 = arith.constant 0 : index
    %c0_15 = arith.constant 0 : index
    %17 = vector.load %arg5[%c0_14, %c0_15] : memref<64x1xf32, #tpu.memory_space<vmem>>, vector<64x1xf32>
    tpu.vector_store %arg5[%c0_14, %c0_15], %16 {strides = array<i32>} : memref<64x1xf32, #tpu.memory_space<vmem>>, vector<64x1xf32>,
    return
  }
  func.func @transform_0(%arg0: i32) -> (i32, i32) {
    %c0_i32 = arith.constant 0 : i32
    %c0_i32_0 = arith.constant 0 : i32
    %c0_i32_1 = arith.constant 0 : i32
    return %c0_i32, %c0_i32_0 : i32, i32
  }
  func.func @transform_1(%arg0: i32) -> (i32, i32) {
    %c0_i32 = arith.constant 0 : i32
    %c0_i32_0 = arith.constant 0 : i32
    return %c0_i32, %arg0 : i32, i32
  }
  func.func @transform_2(%arg0: i32) -> (i32, i32) {
    %c0_i32 = arith.constant 0 : i32
    %c0_i32_0 = arith.constant 0 : i32
    return %c0_i32, %arg0 : i32, i32
  }
  func.func @transform_3(%arg0: i32) -> (i32, i32) {
    %c0_i32 = arith.constant 0 : i32
    %c0_i32_0 = arith.constant 0 : i32
    %c0_i32_1 = arith.constant 0 : i32
    return %c0_i32, %c0_i32_0 : i32, i32
  }
  func.func @transform_4(%arg0: i32) -> (i32, i32) {
    %c0_i32 = arith.constant 0 : i32
    %c0_i32_0 = arith.constant 0 : i32
    %c0_i32_1 = arith.constant 0 : i32
    return %c0_i32, %c0_i32_0 : i32, i32
  }
}

module attributes {stable_mosaic.version = 11 : i64} {
  func.func @_affine_relu_kernel(%arg0: i32, %arg1: memref<64x32xf32, #tpu.memory_space<vmem>>, %arg2: memref<64x1xf32, #tpu.memory_space<vmem>>, %arg3: memref<64x1xf32, #tpu.memory_space<vmem>>, %arg4: memref<64x32xbf16, #tpu.memory_space<vmem>>) attributes {dimension_semantics = [#tpu.dimension_semantics<parallel>], iteration_bounds = array<i64: 1>, scalar_prefetch = 0 : i64, scratch_operands = 0 : i64, tpu.core_type = #tpu.core_type<tc>, window_params = [{transform_indices = @transform_0, window_bounds = array<i64: 64, 32>}, {pipeline_mode = #tpu.pipeline_mode<synchronous>, transform_indices = @transform_1, window_bounds = array<i64: 64, 1>}, {pipeline_mode = #tpu.pipeline_mode<synchronous>, transform_indices = @transform_2, window_bounds = array<i64: 64, 1>}, {transform_indices = @transform_3, window_bounds = array<i64: 64, 32>}]} {
    %c0 = arith.constant 0 : index
    %c0_0 = arith.constant 0 : index
    %0 = vector.load %arg1[%c0, %c0_0] : memref<64x32xf32, #tpu.memory_space<vmem>>, vector<64x32xf32>
    %c0_1 = arith.constant 0 : index
    %c0_2 = arith.constant 0 : index
    %1 = vector.load %arg2[%c0_1, %c0_2] : memref<64x1xf32, #tpu.memory_space<vmem>>, vector<64x1xf32>
    %2 = vector.broadcast %1 : vector<64x1xf32> to vector<64x32xf32>
    %3 = arith.mulf %0, %2 : vector<64x32xf32>
    %c0_3 = arith.constant 0 : index
    %c0_4 = arith.constant 0 : index
    %4 = vector.load %arg3[%c0_3, %c0_4] : memref<64x1xf32, #tpu.memory_space<vmem>>, vector<64x1xf32>
    %5 = vector.broadcast %4 : vector<64x1xf32> to vector<64x32xf32>
    %6 = arith.addf %3, %5 : vector<64x32xf32>
    %cst = arith.constant 0.000000e+00 : f32
    %7 = vector.broadcast %cst : f32 to vector<64x32xf32>
    %8 = arith.maximumf %6, %7 : vector<64x32xf32>
    %9 = arith.truncf %8 : vector<64x32xf32> to vector<64x32xbf16>
    %c0_5 = arith.constant 0 : index
    %c0_6 = arith.constant 0 : index
    %10 = vector.load %arg4[%c0_5, %c0_6] : memref<64x32xbf16, #tpu.memory_space<vmem>>, vector<64x32xbf16>
    tpu.vector_store %arg4[%c0_5, %c0_6], %9 {strides = array<i32>} : memref<64x32xbf16, #tpu.memory_space<vmem>>, vector<64x32xbf16>,
    return
  }
  func.func @transform_0(%arg0: i32) -> (i32, i32) {
    %c0_i32 = arith.constant 0 : i32
    %c0_i32_0 = arith.constant 0 : i32
    return %c0_i32, %arg0 : i32, i32
  }
  func.func @transform_1(%arg0: i32) -> (i32, i32) {
    %c0_i32 = arith.constant 0 : i32
    %c0_i32_0 = arith.constant 0 : i32
    %c0_i32_1 = arith.constant 0 : i32
    return %c0_i32, %c0_i32_0 : i32, i32
  }
  func.func @transform_2(%arg0: i32) -> (i32, i32) {
    %c0_i32 = arith.constant 0 : i32
    %c0_i32_0 = arith.constant 0 : i32
    %c0_i32_1 = arith.constant 0 : i32
    return %c0_i32, %c0_i32_0 : i32, i32
  }
  func.func @transform_3(%arg0: i32) -> (i32, i32) {
    %c0_i32 = arith.constant 0 : i32
    %c0_i32_0 = arith.constant 0 : i32
    return %c0_i32, %arg0 : i32, i32
  }
}

module attributes {stable_mosaic.version = 11 : i64} {
  func.func @_matmul_stats_kernel(%arg0: i32, %arg1: memref<32x1024xbf16, #tpu.memory_space<vmem>>, %arg2: memref<1024x128xbf16, #tpu.memory_space<vmem>>, %arg3: memref<32x128xf32, #tpu.memory_space<vmem>>, %arg4: memref<32x1xf32, #tpu.memory_space<vmem>>, %arg5: memref<32x1xf32, #tpu.memory_space<vmem>>) attributes {dimension_semantics = [#tpu.dimension_semantics<arbitrary>], iteration_bounds = array<i64: 1>, scalar_prefetch = 0 : i64, scratch_operands = 0 : i64, tpu.core_type = #tpu.core_type<tc>, window_params = [{pipeline_mode = #tpu.pipeline_mode<synchronous>, transform_indices = @transform_0, window_bounds = array<i64: 32, 1024>}, {transform_indices = @transform_1, window_bounds = array<i64: 1024, 128>}, {transform_indices = @transform_2, window_bounds = array<i64: 32, 128>}, {pipeline_mode = #tpu.pipeline_mode<synchronous>, transform_indices = @transform_3, window_bounds = array<i64: 32, 1>}, {pipeline_mode = #tpu.pipeline_mode<synchronous>, transform_indices = @transform_4, window_bounds = array<i64: 32, 1>}]} {
    %c0_i32 = arith.constant 0 : i32
    %0 = arith.cmpi eq, %arg0, %c0_i32 : i32
    %1 = arith.extui %0 : i1 to i32
    %c0_i32_0 = arith.constant 0 : i32
    %2 = arith.cmpi ne, %1, %c0_i32_0 : i32
    scf.if %2 {
      %cst_16 = arith.constant 0.000000e+00 : f32
      %18 = vector.broadcast %cst_16 : f32 to vector<32x1xf32>
      %c0_17 = arith.constant 0 : index
      %c0_18 = arith.constant 0 : index
      %19 = vector.load %arg4[%c0_17, %c0_18] : memref<32x1xf32, #tpu.memory_space<vmem>>, vector<32x1xf32>
      tpu.vector_store %arg4[%c0_17, %c0_18], %18 {strides = array<i32>} : memref<32x1xf32, #tpu.memory_space<vmem>>, vector<32x1xf32>,
      %cst_19 = arith.constant 0.000000e+00 : f32
      %20 = vector.broadcast %cst_19 : f32 to vector<32x1xf32>
      %c0_20 = arith.constant 0 : index
      %c0_21 = arith.constant 0 : index
      %21 = vector.load %arg5[%c0_20, %c0_21] : memref<32x1xf32, #tpu.memory_space<vmem>>, vector<32x1xf32>
      tpu.vector_store %arg5[%c0_20, %c0_21], %20 {strides = array<i32>} : memref<32x1xf32, #tpu.memory_space<vmem>>, vector<32x1xf32>,
    } else {
    }
    %c0 = arith.constant 0 : index
    %c0_1 = arith.constant 0 : index
    %3 = vector.load %arg1[%c0, %c0_1] : memref<32x1024xbf16, #tpu.memory_space<vmem>>, vector<32x1024xbf16>
    %c0_2 = arith.constant 0 : index
    %c0_3 = arith.constant 0 : index
    %4 = vector.load %arg2[%c0_2, %c0_3] : memref<1024x128xbf16, #tpu.memory_space<vmem>>, vector<1024x128xbf16>
    %cst = arith.constant dense<0.000000e+00> : vector<32x128xf32>
    %5 = tpu.matmul %3, %4, %cst {dimension_numbers = #tpu.dot_dimension_numbers<[1], [0], [0], [1], [0, 0, 1, 1], [], []>} : vector<32x1024xbf16>, vector<1024x128xbf16>, vector<32x128xf32> -> vector<32x128xf32>
    %c0_4 = arith.constant 0 : index
    %c0_5 = arith.constant 0 : index
    %6 = vector.load %arg3[%c0_4, %c0_5] : memref<32x128xf32, #tpu.memory_space<vmem>>, vector<32x128xf32>
    tpu.vector_store %arg3[%c0_4, %c0_5], %5 {strides = array<i32>} : memref<32x128xf32, #tpu.memory_space<vmem>>, vector<32x128xf32>,
    %c0_6 = arith.constant 0 : index
    %c0_7 = arith.constant 0 : index
    %7 = vector.load %arg4[%c0_6, %c0_7] : memref<32x1xf32, #tpu.memory_space<vmem>>, vector<32x1xf32>
    %cst_8 = arith.constant dense<0.000000e+00> : vector<32xf32>
    %8 = vector.multi_reduction <add>, %5, %cst_8 [1] : vector<32x128xf32> to vector<32xf32>
    %9 = vector.shape_cast %8 : vector<32xf32> to vector<32x1xf32>
    %10 = arith.addf %7, %9 : vector<32x1xf32>
    %c0_9 = arith.constant 0 : index
    %c0_10 = arith.constant 0 : index
    %11 = vector.load %arg4[%c0_9, %c0_10] : memref<32x1xf32, #tpu.memory_space<vmem>>, vector<32x1xf32>
    tpu.vector_store %arg4[%c0_9, %c0_10], %10 {strides = array<i32>} : memref<32x1xf32, #tpu.memory_space<vmem>>, vector<32x1xf32>,
    %c0_11 = arith.constant 0 : index
    %c0_12 = arith.constant 0 : index
    %12 = vector.load %arg5[%c0_11, %c0_12] : memref<32x1xf32, #tpu.memory_space<vmem>>, vector<32x1xf32>
    %13 = arith.mulf %5, %5 : vector<32x128xf32>
    %cst_13 = arith.constant dense<0.000000e+00> : vector<32xf32>
    %14 = vector.multi_reduction <add>, %13, %cst_13 [1] : vector<32x128xf32> to vector<32xf32>
    %15 = vector.shape_cast %14 : vector<32xf32> to vector<32x1xf32>
    %16 = arith.addf %12, %15 : vector<32x1xf32>
    %c0_14 = arith.constant 0 : index
    %c0_15 = arith.constant 0 : index
    %17 = vector.load %arg5[%c0_14, %c0_15] : memref<32x1xf32, #tpu.memory_space<vmem>>, vector<32x1xf32>
    tpu.vector_store %arg5[%c0_14, %c0_15], %16 {strides = array<i32>} : memref<32x1xf32, #tpu.memory_space<vmem>>, vector<32x1xf32>,
    return
  }
  func.func @transform_0(%arg0: i32) -> (i32, i32) {
    %c0_i32 = arith.constant 0 : i32
    %c0_i32_0 = arith.constant 0 : i32
    %c0_i32_1 = arith.constant 0 : i32
    return %c0_i32, %c0_i32_0 : i32, i32
  }
  func.func @transform_1(%arg0: i32) -> (i32, i32) {
    %c0_i32 = arith.constant 0 : i32
    %c0_i32_0 = arith.constant 0 : i32
    return %c0_i32, %arg0 : i32, i32
  }
  func.func @transform_2(%arg0: i32) -> (i32, i32) {
    %c0_i32 = arith.constant 0 : i32
    %c0_i32_0 = arith.constant 0 : i32
    return %c0_i32, %arg0 : i32, i32
  }
  func.func @transform_3(%arg0: i32) -> (i32, i32) {
    %c0_i32 = arith.constant 0 : i32
    %c0_i32_0 = arith.constant 0 : i32
    %c0_i32_1 = arith.constant 0 : i32
    return %c0_i32, %c0_i32_0 : i32, i32
  }
  func.func @transform_4(%arg0: i32) -> (i32, i32) {
    %c0_i32 = arith.constant 0 : i32
    %c0_i32_0 = arith.constant 0 : i32
    %c0_i32_1 = arith.constant 0 : i32
    return %c0_i32, %c0_i32_0 : i32, i32
  }
}

module attributes {stable_mosaic.version = 11 : i64} {
  func.func @_affine_relu_kernel(%arg0: i32, %arg1: memref<32x128xf32, #tpu.memory_space<vmem>>, %arg2: memref<32x1xf32, #tpu.memory_space<vmem>>, %arg3: memref<32x1xf32, #tpu.memory_space<vmem>>, %arg4: memref<32x128xbf16, #tpu.memory_space<vmem>>) attributes {dimension_semantics = [#tpu.dimension_semantics<parallel>], iteration_bounds = array<i64: 1>, scalar_prefetch = 0 : i64, scratch_operands = 0 : i64, tpu.core_type = #tpu.core_type<tc>, window_params = [{transform_indices = @transform_0, window_bounds = array<i64: 32, 128>}, {pipeline_mode = #tpu.pipeline_mode<synchronous>, transform_indices = @transform_1, window_bounds = array<i64: 32, 1>}, {pipeline_mode = #tpu.pipeline_mode<synchronous>, transform_indices = @transform_2, window_bounds = array<i64: 32, 1>}, {transform_indices = @transform_3, window_bounds = array<i64: 32, 128>}]} {
    %c0 = arith.constant 0 : index
    %c0_0 = arith.constant 0 : index
    %0 = vector.load %arg1[%c0, %c0_0] : memref<32x128xf32, #tpu.memory_space<vmem>>, vector<32x128xf32>
    %c0_1 = arith.constant 0 : index
    %c0_2 = arith.constant 0 : index
    %1 = vector.load %arg2[%c0_1, %c0_2] : memref<32x1xf32, #tpu.memory_space<vmem>>, vector<32x1xf32>
    %2 = vector.broadcast %1 : vector<32x1xf32> to vector<32x128xf32>
    %3 = arith.mulf %0, %2 : vector<32x128xf32>
    %c0_3 = arith.constant 0 : index
    %c0_4 = arith.constant 0 : index
    %4 = vector.load %arg3[%c0_3, %c0_4] : memref<32x1xf32, #tpu.memory_space<vmem>>, vector<32x1xf32>
    %5 = vector.broadcast %4 : vector<32x1xf32> to vector<32x128xf32>
    %6 = arith.addf %3, %5 : vector<32x128xf32>
    %cst = arith.constant 0.000000e+00 : f32
    %7 = vector.broadcast %cst : f32 to vector<32x128xf32>
    %8 = arith.maximumf %6, %7 : vector<32x128xf32>
    %9 = arith.truncf %8 : vector<32x128xf32> to vector<32x128xbf16>
    %c0_5 = arith.constant 0 : index
    %c0_6 = arith.constant 0 : index
    %10 = vector.load %arg4[%c0_5, %c0_6] : memref<32x128xbf16, #tpu.memory_space<vmem>>, vector<32x128xbf16>
    tpu.vector_store %arg4[%c0_5, %c0_6], %9 {strides = array<i32>} : memref<32x128xbf16, #tpu.memory_space<vmem>>, vector<32x128xbf16>,
    return
  }
  func.func @transform_0(%arg0: i32) -> (i32, i32) {
    %c0_i32 = arith.constant 0 : i32
    %c0_i32_0 = arith.constant 0 : i32
    return %c0_i32, %arg0 : i32, i32
  }
  func.func @transform_1(%arg0: i32) -> (i32, i32) {
    %c0_i32 = arith.constant 0 : i32
    %c0_i32_0 = arith.constant 0 : i32
    %c0_i32_1 = arith.constant 0 : i32
    return %c0_i32, %c0_i32_0 : i32, i32
  }
  func.func @transform_2(%arg0: i32) -> (i32, i32) {
    %c0_i32 = arith.constant 0 : i32
    %c0_i32_0 = arith.constant 0 : i32
    %c0_i32_1 = arith.constant 0 : i32
    return %c0_i32, %c0_i32_0 : i32, i32
  }
  func.func @transform_3(%arg0: i32) -> (i32, i32) {
    %c0_i32 = arith.constant 0 : i32
    %c0_i32_0 = arith.constant 0 : i32
    return %c0_i32, %arg0 : i32, i32
  }
}

module attributes {stable_mosaic.version = 11 : i64} {
  func.func @_affine_relu_kernel(%arg0: i32, %arg1: memref<16x512xf32, #tpu.memory_space<vmem>>, %arg2: memref<16x1xf32, #tpu.memory_space<vmem>>, %arg3: memref<16x1xf32, #tpu.memory_space<vmem>>, %arg4: memref<16x512xbf16, #tpu.memory_space<vmem>>) attributes {dimension_semantics = [#tpu.dimension_semantics<parallel>], iteration_bounds = array<i64: 1>, scalar_prefetch = 0 : i64, scratch_operands = 0 : i64, tpu.core_type = #tpu.core_type<tc>, window_params = [{transform_indices = @transform_0, window_bounds = array<i64: 16, 512>}, {pipeline_mode = #tpu.pipeline_mode<synchronous>, transform_indices = @transform_1, window_bounds = array<i64: 16, 1>}, {pipeline_mode = #tpu.pipeline_mode<synchronous>, transform_indices = @transform_2, window_bounds = array<i64: 16, 1>}, {transform_indices = @transform_3, window_bounds = array<i64: 16, 512>}]} {
    %c0 = arith.constant 0 : index
    %c0_0 = arith.constant 0 : index
    %0 = vector.load %arg1[%c0, %c0_0] : memref<16x512xf32, #tpu.memory_space<vmem>>, vector<16x512xf32>
    %c0_1 = arith.constant 0 : index
    %c0_2 = arith.constant 0 : index
    %1 = vector.load %arg2[%c0_1, %c0_2] : memref<16x1xf32, #tpu.memory_space<vmem>>, vector<16x1xf32>
    %2 = vector.broadcast %1 : vector<16x1xf32> to vector<16x512xf32>
    %3 = arith.mulf %0, %2 : vector<16x512xf32>
    %c0_3 = arith.constant 0 : index
    %c0_4 = arith.constant 0 : index
    %4 = vector.load %arg3[%c0_3, %c0_4] : memref<16x1xf32, #tpu.memory_space<vmem>>, vector<16x1xf32>
    %5 = vector.broadcast %4 : vector<16x1xf32> to vector<16x512xf32>
    %6 = arith.addf %3, %5 : vector<16x512xf32>
    %cst = arith.constant 0.000000e+00 : f32
    %7 = vector.broadcast %cst : f32 to vector<16x512xf32>
    %8 = arith.maximumf %6, %7 : vector<16x512xf32>
    %9 = arith.truncf %8 : vector<16x512xf32> to vector<16x512xbf16>
    %c0_5 = arith.constant 0 : index
    %c0_6 = arith.constant 0 : index
    %10 = vector.load %arg4[%c0_5, %c0_6] : memref<16x512xbf16, #tpu.memory_space<vmem>>, vector<16x512xbf16>
    tpu.vector_store %arg4[%c0_5, %c0_6], %9 {strides = array<i32>} : memref<16x512xbf16, #tpu.memory_space<vmem>>, vector<16x512xbf16>,
    return
  }
  func.func @transform_0(%arg0: i32) -> (i32, i32) {
    %c0_i32 = arith.constant 0 : i32
    %c0_i32_0 = arith.constant 0 : i32
    return %c0_i32, %arg0 : i32, i32
  }
  func.func @transform_1(%arg0: i32) -> (i32, i32) {
    %c0_i32 = arith.constant 0 : i32
    %c0_i32_0 = arith.constant 0 : i32
    %c0_i32_1 = arith.constant 0 : i32
    return %c0_i32, %c0_i32_0 : i32, i32
  }
  func.func @transform_2(%arg0: i32) -> (i32, i32) {
    %c0_i32 = arith.constant 0 : i32
    %c0_i32_0 = arith.constant 0 : i32
    %c0_i32_1 = arith.constant 0 : i32
    return %c0_i32, %c0_i32_0 : i32, i32
  }
  func.func @transform_3(%arg0: i32) -> (i32, i32) {
    %c0_i32 = arith.constant 0 : i32
    %c0_i32_0 = arith.constant 0 : i32
    return %c0_i32, %arg0 : i32, i32
  }
}

module attributes {stable_mosaic.version = 11 : i64} {
  func.func @_matmul_stats_kernel(%arg0: i32, %arg1: memref<16x512xbf16, #tpu.memory_space<vmem>>, %arg2: memref<512x512xbf16, #tpu.memory_space<vmem>>, %arg3: memref<16x512xf32, #tpu.memory_space<vmem>>, %arg4: memref<16x1xf32, #tpu.memory_space<vmem>>, %arg5: memref<16x1xf32, #tpu.memory_space<vmem>>) attributes {dimension_semantics = [#tpu.dimension_semantics<arbitrary>], iteration_bounds = array<i64: 1>, scalar_prefetch = 0 : i64, scratch_operands = 0 : i64, tpu.core_type = #tpu.core_type<tc>, window_params = [{pipeline_mode = #tpu.pipeline_mode<synchronous>, transform_indices = @transform_0, window_bounds = array<i64: 16, 512>}, {transform_indices = @transform_1, window_bounds = array<i64: 512, 512>}, {transform_indices = @transform_2, window_bounds = array<i64: 16, 512>}, {pipeline_mode = #tpu.pipeline_mode<synchronous>, transform_indices = @transform_3, window_bounds = array<i64: 16, 1>}, {pipeline_mode = #tpu.pipeline_mode<synchronous>, transform_indices = @transform_4, window_bounds = array<i64: 16, 1>}]} {
    %c0_i32 = arith.constant 0 : i32
    %0 = arith.cmpi eq, %arg0, %c0_i32 : i32
    %1 = arith.extui %0 : i1 to i32
    %c0_i32_0 = arith.constant 0 : i32
    %2 = arith.cmpi ne, %1, %c0_i32_0 : i32
    scf.if %2 {
      %cst_16 = arith.constant 0.000000e+00 : f32
      %18 = vector.broadcast %cst_16 : f32 to vector<16x1xf32>
      %c0_17 = arith.constant 0 : index
      %c0_18 = arith.constant 0 : index
      %19 = vector.load %arg4[%c0_17, %c0_18] : memref<16x1xf32, #tpu.memory_space<vmem>>, vector<16x1xf32>
      tpu.vector_store %arg4[%c0_17, %c0_18], %18 {strides = array<i32>} : memref<16x1xf32, #tpu.memory_space<vmem>>, vector<16x1xf32>,
      %cst_19 = arith.constant 0.000000e+00 : f32
      %20 = vector.broadcast %cst_19 : f32 to vector<16x1xf32>
      %c0_20 = arith.constant 0 : index
      %c0_21 = arith.constant 0 : index
      %21 = vector.load %arg5[%c0_20, %c0_21] : memref<16x1xf32, #tpu.memory_space<vmem>>, vector<16x1xf32>
      tpu.vector_store %arg5[%c0_20, %c0_21], %20 {strides = array<i32>} : memref<16x1xf32, #tpu.memory_space<vmem>>, vector<16x1xf32>,
    } else {
    }
    %c0 = arith.constant 0 : index
    %c0_1 = arith.constant 0 : index
    %3 = vector.load %arg1[%c0, %c0_1] : memref<16x512xbf16, #tpu.memory_space<vmem>>, vector<16x512xbf16>
    %c0_2 = arith.constant 0 : index
    %c0_3 = arith.constant 0 : index
    %4 = vector.load %arg2[%c0_2, %c0_3] : memref<512x512xbf16, #tpu.memory_space<vmem>>, vector<512x512xbf16>
    %cst = arith.constant dense<0.000000e+00> : vector<16x512xf32>
    %5 = tpu.matmul %3, %4, %cst {dimension_numbers = #tpu.dot_dimension_numbers<[1], [0], [0], [1], [0, 0, 1, 1], [], []>} : vector<16x512xbf16>, vector<512x512xbf16>, vector<16x512xf32> -> vector<16x512xf32>
    %c0_4 = arith.constant 0 : index
    %c0_5 = arith.constant 0 : index
    %6 = vector.load %arg3[%c0_4, %c0_5] : memref<16x512xf32, #tpu.memory_space<vmem>>, vector<16x512xf32>
    tpu.vector_store %arg3[%c0_4, %c0_5], %5 {strides = array<i32>} : memref<16x512xf32, #tpu.memory_space<vmem>>, vector<16x512xf32>,
    %c0_6 = arith.constant 0 : index
    %c0_7 = arith.constant 0 : index
    %7 = vector.load %arg4[%c0_6, %c0_7] : memref<16x1xf32, #tpu.memory_space<vmem>>, vector<16x1xf32>
    %cst_8 = arith.constant dense<0.000000e+00> : vector<16xf32>
    %8 = vector.multi_reduction <add>, %5, %cst_8 [1] : vector<16x512xf32> to vector<16xf32>
    %9 = vector.shape_cast %8 : vector<16xf32> to vector<16x1xf32>
    %10 = arith.addf %7, %9 : vector<16x1xf32>
    %c0_9 = arith.constant 0 : index
    %c0_10 = arith.constant 0 : index
    %11 = vector.load %arg4[%c0_9, %c0_10] : memref<16x1xf32, #tpu.memory_space<vmem>>, vector<16x1xf32>
    tpu.vector_store %arg4[%c0_9, %c0_10], %10 {strides = array<i32>} : memref<16x1xf32, #tpu.memory_space<vmem>>, vector<16x1xf32>,
    %c0_11 = arith.constant 0 : index
    %c0_12 = arith.constant 0 : index
    %12 = vector.load %arg5[%c0_11, %c0_12] : memref<16x1xf32, #tpu.memory_space<vmem>>, vector<16x1xf32>
    %13 = arith.mulf %5, %5 : vector<16x512xf32>
    %cst_13 = arith.constant dense<0.000000e+00> : vector<16xf32>
    %14 = vector.multi_reduction <add>, %13, %cst_13 [1] : vector<16x512xf32> to vector<16xf32>
    %15 = vector.shape_cast %14 : vector<16xf32> to vector<16x1xf32>
    %16 = arith.addf %12, %15 : vector<16x1xf32>
    %c0_14 = arith.constant 0 : index
    %c0_15 = arith.constant 0 : index
    %17 = vector.load %arg5[%c0_14, %c0_15] : memref<16x1xf32, #tpu.memory_space<vmem>>, vector<16x1xf32>
    tpu.vector_store %arg5[%c0_14, %c0_15], %16 {strides = array<i32>} : memref<16x1xf32, #tpu.memory_space<vmem>>, vector<16x1xf32>,
    return
  }
  func.func @transform_0(%arg0: i32) -> (i32, i32) {
    %c0_i32 = arith.constant 0 : i32
    %c0_i32_0 = arith.constant 0 : i32
    %c0_i32_1 = arith.constant 0 : i32
    return %c0_i32, %c0_i32_0 : i32, i32
  }
  func.func @transform_1(%arg0: i32) -> (i32, i32) {
    %c0_i32 = arith.constant 0 : i32
    %c0_i32_0 = arith.constant 0 : i32
    return %c0_i32, %arg0 : i32, i32
  }
  func.func @transform_2(%arg0: i32) -> (i32, i32) {
    %c0_i32 = arith.constant 0 : i32
    %c0_i32_0 = arith.constant 0 : i32
    return %c0_i32, %arg0 : i32, i32
  }
  func.func @transform_3(%arg0: i32) -> (i32, i32) {
    %c0_i32 = arith.constant 0 : i32
    %c0_i32_0 = arith.constant 0 : i32
    %c0_i32_1 = arith.constant 0 : i32
    return %c0_i32, %c0_i32_0 : i32, i32
  }
  func.func @transform_4(%arg0: i32) -> (i32, i32) {
    %c0_i32 = arith.constant 0 : i32
    %c0_i32_0 = arith.constant 0 : i32
    %c0_i32_1 = arith.constant 0 : i32
    return %c0_i32, %c0_i32_0 : i32, i32
  }
}

module attributes {stable_mosaic.version = 11 : i64} {
  func.func @_matmul_stats_kernel(%arg0: i32, %arg1: memref<8x256xbf16, #tpu.memory_space<vmem>>, %arg2: memref<256x512xbf16, #tpu.memory_space<vmem>>, %arg3: memref<8x512xf32, #tpu.memory_space<vmem>>, %arg4: memref<8x1xf32, #tpu.memory_space<vmem>>, %arg5: memref<8x1xf32, #tpu.memory_space<vmem>>) attributes {dimension_semantics = [#tpu.dimension_semantics<arbitrary>], iteration_bounds = array<i64: 4>, scalar_prefetch = 0 : i64, scratch_operands = 0 : i64, tpu.core_type = #tpu.core_type<tc>, window_params = [{pipeline_mode = #tpu.pipeline_mode<synchronous>, transform_indices = @transform_0, window_bounds = array<i64: 8, 256>}, {transform_indices = @transform_1, window_bounds = array<i64: 256, 512>}, {transform_indices = @transform_2, window_bounds = array<i64: 8, 512>}, {pipeline_mode = #tpu.pipeline_mode<synchronous>, transform_indices = @transform_3, window_bounds = array<i64: 8, 1>}, {pipeline_mode = #tpu.pipeline_mode<synchronous>, transform_indices = @transform_4, window_bounds = array<i64: 8, 1>}]} {
    %c0_i32 = arith.constant 0 : i32
    %0 = arith.cmpi eq, %arg0, %c0_i32 : i32
    %1 = arith.extui %0 : i1 to i32
    %c0_i32_0 = arith.constant 0 : i32
    %2 = arith.cmpi ne, %1, %c0_i32_0 : i32
    scf.if %2 {
      %cst_16 = arith.constant 0.000000e+00 : f32
      %18 = vector.broadcast %cst_16 : f32 to vector<8x1xf32>
      %c0_17 = arith.constant 0 : index
      %c0_18 = arith.constant 0 : index
      %19 = vector.load %arg4[%c0_17, %c0_18] : memref<8x1xf32, #tpu.memory_space<vmem>>, vector<8x1xf32>
      tpu.vector_store %arg4[%c0_17, %c0_18], %18 {strides = array<i32>} : memref<8x1xf32, #tpu.memory_space<vmem>>, vector<8x1xf32>,
      %cst_19 = arith.constant 0.000000e+00 : f32
      %20 = vector.broadcast %cst_19 : f32 to vector<8x1xf32>
      %c0_20 = arith.constant 0 : index
      %c0_21 = arith.constant 0 : index
      %21 = vector.load %arg5[%c0_20, %c0_21] : memref<8x1xf32, #tpu.memory_space<vmem>>, vector<8x1xf32>
      tpu.vector_store %arg5[%c0_20, %c0_21], %20 {strides = array<i32>} : memref<8x1xf32, #tpu.memory_space<vmem>>, vector<8x1xf32>,
    } else {
    }
    %c0 = arith.constant 0 : index
    %c0_1 = arith.constant 0 : index
    %3 = vector.load %arg1[%c0, %c0_1] : memref<8x256xbf16, #tpu.memory_space<vmem>>, vector<8x256xbf16>
    %c0_2 = arith.constant 0 : index
    %c0_3 = arith.constant 0 : index
    %4 = vector.load %arg2[%c0_2, %c0_3] : memref<256x512xbf16, #tpu.memory_space<vmem>>, vector<256x512xbf16>
    %cst = arith.constant dense<0.000000e+00> : vector<8x512xf32>
    %5 = tpu.matmul %3, %4, %cst {dimension_numbers = #tpu.dot_dimension_numbers<[1], [0], [0], [1], [0, 0, 1, 1], [], []>} : vector<8x256xbf16>, vector<256x512xbf16>, vector<8x512xf32> -> vector<8x512xf32>
    %c0_4 = arith.constant 0 : index
    %c0_5 = arith.constant 0 : index
    %6 = vector.load %arg3[%c0_4, %c0_5] : memref<8x512xf32, #tpu.memory_space<vmem>>, vector<8x512xf32>
    tpu.vector_store %arg3[%c0_4, %c0_5], %5 {strides = array<i32>} : memref<8x512xf32, #tpu.memory_space<vmem>>, vector<8x512xf32>,
    %c0_6 = arith.constant 0 : index
    %c0_7 = arith.constant 0 : index
    %7 = vector.load %arg4[%c0_6, %c0_7] : memref<8x1xf32, #tpu.memory_space<vmem>>, vector<8x1xf32>
    %cst_8 = arith.constant dense<0.000000e+00> : vector<8xf32>
    %8 = vector.multi_reduction <add>, %5, %cst_8 [1] : vector<8x512xf32> to vector<8xf32>
    %9 = vector.shape_cast %8 : vector<8xf32> to vector<8x1xf32>
    %10 = arith.addf %7, %9 : vector<8x1xf32>
    %c0_9 = arith.constant 0 : index
    %c0_10 = arith.constant 0 : index
    %11 = vector.load %arg4[%c0_9, %c0_10] : memref<8x1xf32, #tpu.memory_space<vmem>>, vector<8x1xf32>
    tpu.vector_store %arg4[%c0_9, %c0_10], %10 {strides = array<i32>} : memref<8x1xf32, #tpu.memory_space<vmem>>, vector<8x1xf32>,
    %c0_11 = arith.constant 0 : index
    %c0_12 = arith.constant 0 : index
    %12 = vector.load %arg5[%c0_11, %c0_12] : memref<8x1xf32, #tpu.memory_space<vmem>>, vector<8x1xf32>
    %13 = arith.mulf %5, %5 : vector<8x512xf32>
    %cst_13 = arith.constant dense<0.000000e+00> : vector<8xf32>
    %14 = vector.multi_reduction <add>, %13, %cst_13 [1] : vector<8x512xf32> to vector<8xf32>
    %15 = vector.shape_cast %14 : vector<8xf32> to vector<8x1xf32>
    %16 = arith.addf %12, %15 : vector<8x1xf32>
    %c0_14 = arith.constant 0 : index
    %c0_15 = arith.constant 0 : index
    %17 = vector.load %arg5[%c0_14, %c0_15] : memref<8x1xf32, #tpu.memory_space<vmem>>, vector<8x1xf32>
    tpu.vector_store %arg5[%c0_14, %c0_15], %16 {strides = array<i32>} : memref<8x1xf32, #tpu.memory_space<vmem>>, vector<8x1xf32>,
    return
  }
  func.func @transform_0(%arg0: i32) -> (i32, i32) {
    %c0_i32 = arith.constant 0 : i32
    %c0_i32_0 = arith.constant 0 : i32
    %c0_i32_1 = arith.constant 0 : i32
    return %c0_i32, %c0_i32_0 : i32, i32
  }
  func.func @transform_1(%arg0: i32) -> (i32, i32) {
    %c0_i32 = arith.constant 0 : i32
    %c0_i32_0 = arith.constant 0 : i32
    return %c0_i32, %arg0 : i32, i32
  }
  func.func @transform_2(%arg0: i32) -> (i32, i32) {
    %c0_i32 = arith.constant 0 : i32
    %c0_i32_0 = arith.constant 0 : i32
    return %c0_i32, %arg0 : i32, i32
  }
  func.func @transform_3(%arg0: i32) -> (i32, i32) {
    %c0_i32 = arith.constant 0 : i32
    %c0_i32_0 = arith.constant 0 : i32
    %c0_i32_1 = arith.constant 0 : i32
    return %c0_i32, %c0_i32_0 : i32, i32
  }
  func.func @transform_4(%arg0: i32) -> (i32, i32) {
    %c0_i32 = arith.constant 0 : i32
    %c0_i32_0 = arith.constant 0 : i32
    %c0_i32_1 = arith.constant 0 : i32
    return %c0_i32, %c0_i32_0 : i32, i32
  }
}

module attributes {stable_mosaic.version = 11 : i64} {
  func.func @_affine_relu_kernel(%arg0: i32, %arg1: memref<8x512xf32, #tpu.memory_space<vmem>>, %arg2: memref<8x1xf32, #tpu.memory_space<vmem>>, %arg3: memref<8x1xf32, #tpu.memory_space<vmem>>, %arg4: memref<8x512xbf16, #tpu.memory_space<vmem>>) attributes {dimension_semantics = [#tpu.dimension_semantics<parallel>], iteration_bounds = array<i64: 4>, scalar_prefetch = 0 : i64, scratch_operands = 0 : i64, tpu.core_type = #tpu.core_type<tc>, window_params = [{transform_indices = @transform_0, window_bounds = array<i64: 8, 512>}, {pipeline_mode = #tpu.pipeline_mode<synchronous>, transform_indices = @transform_1, window_bounds = array<i64: 8, 1>}, {pipeline_mode = #tpu.pipeline_mode<synchronous>, transform_indices = @transform_2, window_bounds = array<i64: 8, 1>}, {transform_indices = @transform_3, window_bounds = array<i64: 8, 512>}]} {
    %c0 = arith.constant 0 : index
    %c0_0 = arith.constant 0 : index
    %0 = vector.load %arg1[%c0, %c0_0] : memref<8x512xf32, #tpu.memory_space<vmem>>, vector<8x512xf32>
    %c0_1 = arith.constant 0 : index
    %c0_2 = arith.constant 0 : index
    %1 = vector.load %arg2[%c0_1, %c0_2] : memref<8x1xf32, #tpu.memory_space<vmem>>, vector<8x1xf32>
    %2 = vector.broadcast %1 : vector<8x1xf32> to vector<8x512xf32>
    %3 = arith.mulf %0, %2 : vector<8x512xf32>
    %c0_3 = arith.constant 0 : index
    %c0_4 = arith.constant 0 : index
    %4 = vector.load %arg3[%c0_3, %c0_4] : memref<8x1xf32, #tpu.memory_space<vmem>>, vector<8x1xf32>
    %5 = vector.broadcast %4 : vector<8x1xf32> to vector<8x512xf32>
    %6 = arith.addf %3, %5 : vector<8x512xf32>
    %cst = arith.constant 0.000000e+00 : f32
    %7 = vector.broadcast %cst : f32 to vector<8x512xf32>
    %8 = arith.maximumf %6, %7 : vector<8x512xf32>
    %9 = arith.truncf %8 : vector<8x512xf32> to vector<8x512xbf16>
    %c0_5 = arith.constant 0 : index
    %c0_6 = arith.constant 0 : index
    %10 = vector.load %arg4[%c0_5, %c0_6] : memref<8x512xbf16, #tpu.memory_space<vmem>>, vector<8x512xbf16>
    tpu.vector_store %arg4[%c0_5, %c0_6], %9 {strides = array<i32>} : memref<8x512xbf16, #tpu.memory_space<vmem>>, vector<8x512xbf16>,
    return
  }
  func.func @transform_0(%arg0: i32) -> (i32, i32) {
    %c0_i32 = arith.constant 0 : i32
    %c0_i32_0 = arith.constant 0 : i32
    return %c0_i32, %arg0 : i32, i32
  }
  func.func @transform_1(%arg0: i32) -> (i32, i32) {
    %c0_i32 = arith.constant 0 : i32
    %c0_i32_0 = arith.constant 0 : i32
    %c0_i32_1 = arith.constant 0 : i32
    return %c0_i32, %c0_i32_0 : i32, i32
  }
  func.func @transform_2(%arg0: i32) -> (i32, i32) {
    %c0_i32 = arith.constant 0 : i32
    %c0_i32_0 = arith.constant 0 : i32
    %c0_i32_1 = arith.constant 0 : i32
    return %c0_i32, %c0_i32_0 : i32, i32
  }
  func.func @transform_3(%arg0: i32) -> (i32, i32) {
    %c0_i32 = arith.constant 0 : i32
    %c0_i32_0 = arith.constant 0 : i32
    return %c0_i32, %arg0 : i32, i32
  }
}

module attributes {stable_mosaic.version = 11 : i64} {
  func.func @_matmul_sigmoid_kernel(%arg0: i32, %arg1: memref<3x128xbf16, #tpu.memory_space<vmem>>, %arg2: memref<128x512xbf16, #tpu.memory_space<vmem>>, %arg3: memref<3x512xf32, #tpu.memory_space<vmem>>) attributes {dimension_semantics = [#tpu.dimension_semantics<parallel>], iteration_bounds = array<i64: 16>, scalar_prefetch = 0 : i64, scratch_operands = 0 : i64, tpu.core_type = #tpu.core_type<tc>, window_params = [{pipeline_mode = #tpu.pipeline_mode<synchronous>, transform_indices = @transform_0, window_bounds = array<i64: 3, 128>}, {transform_indices = @transform_1, window_bounds = array<i64: 128, 512>}, {transform_indices = @transform_2, window_bounds = array<i64: 3, 512>}]} {
    %c0 = arith.constant 0 : index
    %c0_0 = arith.constant 0 : index
    %0 = vector.load %arg1[%c0, %c0_0] : memref<3x128xbf16, #tpu.memory_space<vmem>>, vector<3x128xbf16>
    %c0_1 = arith.constant 0 : index
    %c0_2 = arith.constant 0 : index
    %1 = vector.load %arg2[%c0_1, %c0_2] : memref<128x512xbf16, #tpu.memory_space<vmem>>, vector<128x512xbf16>
    %cst = arith.constant dense<0.000000e+00> : vector<3x512xf32>
    %2 = tpu.matmul %0, %1, %cst {dimension_numbers = #tpu.dot_dimension_numbers<[1], [0], [0], [1], [0, 0, 1, 1], [], []>} : vector<3x128xbf16>, vector<128x512xbf16>, vector<3x512xf32> -> vector<3x512xf32>
    %3 = arith.negf %2 : vector<3x512xf32>
    %4 = math.exp %3 : vector<3x512xf32>
    %cst_3 = arith.constant 1.000000e+00 : f32
    %5 = vector.broadcast %cst_3 : f32 to vector<3x512xf32>
    %6 = arith.addf %5, %4 : vector<3x512xf32>
    %7 = arith.divf %5, %6 : vector<3x512xf32>
    %c0_4 = arith.constant 0 : index
    %c0_5 = arith.constant 0 : index
    %8 = vector.load %arg3[%c0_4, %c0_5] : memref<3x512xf32, #tpu.memory_space<vmem>>, vector<3x512xf32>
    tpu.vector_store %arg3[%c0_4, %c0_5], %7 {strides = array<i32>} : memref<3x512xf32, #tpu.memory_space<vmem>>, vector<3x512xf32>,
    return
  }
  func.func @transform_0(%arg0: i32) -> (i32, i32) {
    %c0_i32 = arith.constant 0 : i32
    %c0_i32_0 = arith.constant 0 : i32
    %c0_i32_1 = arith.constant 0 : i32
    return %c0_i32, %c0_i32_0 : i32, i32
  }
  func.func @transform_1(%arg0: i32) -> (i32, i32) {
    %c0_i32 = arith.constant 0 : i32
    %c0_i32_0 = arith.constant 0 : i32
    return %c0_i32, %arg0 : i32, i32
  }
  func.func @transform_2(%arg0: i32) -> (i32, i32) {
    %c0_i32 = arith.constant 0 : i32
    %c0_i32_0 = arith.constant 0 : i32
    return %c0_i32, %arg0 : i32, i32
  }
}

</mosaic_0001>

<llo_original>
// kernel: generator_forward.10
$region0: #{generator_forward.10}
  #allocation0 [shape = 'u32[]', space=smem, size = 0x4, offset = 0x4, fixed_abs, tag = 'smem constant byte address 0x4 - core index']
  #allocation1 [shape = 'u32[144,128]{1,0:T(1,128)}', space=vmem, size = 0x12000, scoped, tag = 'internal scratch']
  %s0 = inlined_call_operand.vmem [shape: f32[64,32], index: 0, kind: input, shape index: {}]
  %s1 = inlined_call_operand.vmem [shape: f32[64,1], index: 1, kind: input, shape index: {}]
  %s2 = inlined_call_operand.vmem [shape: f32[64,1], index: 2, kind: input, shape index: {}]
  %s3 = inlined_call_operand.vmem [shape: bf16[64,32], index: 3, kind: output, shape index: {}]
  %s4 = sld [smem:[#allocation0]]
  $region22: #{generator_forward.10} parent=0
    _
  %s6 = ssub.s32 1, %s4
  %s7 = scalar_select 0, %s6, %s4
  // Predicated region
  $region2: #{generator_forward.10} parent=0 // pred_check
    _
  $region3: #{generator_forward.10} parent=0 // pred_check_branch
    %9 = sbr.rel (0) target = $region5
  $region4: #{generator_forward.10} parent=0 // pred_region
    _
  $region5: #{generator_forward.10} parent=0 // pred_fallthru
    _
  // Predicated region
  $region6: #{generator_forward.10} parent=0 // pred_check
    _
  $region7: #{generator_forward.10} parent=0 // pred_check_branch
    %11 = sbr.rel (0) target = $region9
  $region8: #{generator_forward.10} parent=0 // pred_region
    _
  $region9: #{generator_forward.10} parent=0 // pred_fallthru
    _
  // Predicated region
  $region10: #{generator_forward.10} parent=0 // pred_check
    _
  $region11: #{generator_forward.10} parent=0 // pred_check_branch
    %13 = sbr.rel (0) target = $region13
  $region12: #{generator_forward.10} parent=0 // pred_region
    _
  $region13: #{generator_forward.10} parent=0 // pred_fallthru
    _
  %v14 = vld [vmem:[%s0] sm:$0xff]
  %v15 = vld [vmem:[%s0 + $0x8] sm:$0xff]
  %v16 = vld [vmem:[%s0 + $0x10] sm:$0xff]
  %v17 = vld [vmem:[%s0 + $0x18] sm:$0xff]
  %v18 = vld [vmem:[%s0 + $0x20] sm:$0xff]
  %v19 = vld [vmem:[%s0 + $0x28] sm:$0xff]
  %v20 = vld [vmem:[%s0 + $0x30] sm:$0xff]
  %v21 = vld [vmem:[%s0 + $0x38] sm:$0xff]
  %v22 = vld [vmem:[%s1] sm:$0xff]
  %v23 = vld [vmem:[%s1 + $0x8] sm:$0xff]
  %v24 = vld [vmem:[%s1 + $0x10] sm:$0xff]
  %v25 = vld [vmem:[%s1 + $0x18] sm:$0xff]
  %v26 = vld [vmem:[%s1 + $0x20] sm:$0xff]
  %v27 = vld [vmem:[%s1 + $0x28] sm:$0xff]
  %v28 = vld [vmem:[%s1 + $0x30] sm:$0xff]
  %v29 = vld [vmem:[%s1 + $0x38] sm:$0xff]
  %31 = vset.pattern.permute.xlu0 0
  %32 = vperm.xlu0 %31, %v22
  %v33 = vpop.permute.xlu0 %32
  %36 = vset.pattern.permute.xlu0 0
  %37 = vperm.xlu0 %36, %v23
  %v38 = vpop.permute.xlu0 %37
  %41 = vset.pattern.permute.xlu0 0
  %42 = vperm.xlu0 %41, %v24
  %v43 = vpop.permute.xlu0 %42
  %46 = vset.pattern.permute.xlu0 0
  %47 = vperm.xlu0 %46, %v25
  %v48 = vpop.permute.xlu0 %47
  %51 = vset.pattern.permute.xlu0 0
  %52 = vperm.xlu0 %51, %v26
  %v53 = vpop.permute.xlu0 %52
  %56 = vset.pattern.permute.xlu0 0
  %57 = vperm.xlu0 %56, %v27
  %v58 = vpop.permute.xlu0 %57
  %61 = vset.pattern.permute.xlu0 0
  %62 = vperm.xlu0 %61, %v28
  %v63 = vpop.permute.xlu0 %62
  %66 = vset.pattern.permute.xlu0 0
  %67 = vperm.xlu0 %66, %v29
  %v68 = vpop.permute.xlu0 %67
  %v70 = vmul.f32 %v14, %v33
  %v71 = vmul.f32 %v15, %v38
  %v72 = vmul.f32 %v16, %v43
  %v73 = vmul.f32 %v17, %v48
  %v74 = vmul.f32 %v18, %v53
  %v75 = vmul.f32 %v19, %v58
  %v76 = vmul.f32 %v20, %v63
  %v77 = vmul.f32 %v21, %v68
  %v78 = vld [vmem:[%s2] sm:$0xff]
  %v79 = vld [vmem:[%s2 + $0x8] sm:$0xff]
  %v80 = vld [vmem:[%s2 + $0x10] sm:$0xff]
  %v81 = vld [vmem:[%s2 + $0x18] sm:$0xff]
  %v82 = vld [vmem:[%s2 + $0x20] sm:$0xff]
  %v83 = vld [vmem:[%s2 + $0x28] sm:$0xff]
  %v84 = vld [vmem:[%s2 + $0x30] sm:$0xff]
  %v85 = vld [vmem:[%s2 + $0x38] sm:$0xff]
  %87 = vset.pattern.permute.xlu0 0
  %88 = vperm.xlu0 %87, %v78
  %v89 = vpop.permute.xlu0 %88
  %92 = vset.pattern.permute.xlu0 0
  %93 = vperm.xlu0 %92, %v79
  %v94 = vpop.permute.xlu0 %93
  %97 = vset.pattern.permute.xlu0 0
  %98 = vperm.xlu0 %97, %v80
  %v99 = vpop.permute.xlu0 %98
  %102 = vset.pattern.permute.xlu0 0
  %103 = vperm.xlu0 %102, %v81
  %v104 = vpop.permute.xlu0 %103
  %107 = vset.pattern.permute.xlu0 0
  %108 = vperm.xlu0 %107, %v82
  %v109 = vpop.permute.xlu0 %108
  %112 = vset.pattern.permute.xlu0 0
  %113 = vperm.xlu0 %112, %v83
  %v114 = vpop.permute.xlu0 %113
  %117 = vset.pattern.permute.xlu0 0
  %118 = vperm.xlu0 %117, %v84
  %v119 = vpop.permute.xlu0 %118
  %122 = vset.pattern.permute.xlu0 0
  %123 = vperm.xlu0 %122, %v85
  %v124 = vpop.permute.xlu0 %123
  %v126 = vadd.f32 %v70, %v89
  %v127 = vadd.f32 %v71, %v94
  %v128 = vadd.f32 %v72, %v99
  %v129 = vadd.f32 %v73, %v104
  %v130 = vadd.f32 %v74, %v109
  %v131 = vadd.f32 %v75, %v114
  %v132 = vadd.f32 %v76, %v119
  %v133 = vadd.f32 %v77, %v124
  %v134 = vmax.f32 %v126, 0.0
  %v135 = vmax.f32 %v127, 0.0
  %v136 = vmax.f32 %v128, 0.0
  %v137 = vmax.f32 %v129, 0.0
  %v138 = vmax.f32 %v130, 0.0
  %v139 = vmax.f32 %v131, 0.0
  %v140 = vmax.f32 %v132, 0.0
  %v141 = vmax.f32 %v133, 0.0
  %v142 = vpack.c.bf16 %v135, %v134
  %v143 = vpack.c.bf16 %v137, %v136
  %v144 = vpack.c.bf16 %v139, %v138
  %v145 = vpack.c.bf16 %v141, %v140
  %v150 = vunpack.c.l.b16 %v142
  %v151 = vunpack.c.h.b16 %v142
  %v152 = vunpack.c.l.b16 %v143
  %v153 = vunpack.c.h.b16 %v143
  %v154 = vunpack.c.l.b16 %v144
  %v155 = vunpack.c.h.b16 %v144
  %v156 = vunpack.c.l.b16 %v145
  %v157 = vunpack.c.h.b16 %v145
  %v158 = vpack.c.b16 %v150, %v150
  %v159 = vpack.c.b16 %v151, %v151
  %v160 = vpack.c.b16 %v152, %v152
  %v161 = vpack.c.b16 %v153, %v153
  %v162 = vpack.c.b16 %v154, %v154
  %v163 = vpack.c.b16 %v155, %v155
  %v164 = vpack.c.b16 %v156, %v156
  %v165 = vpack.c.b16 %v157, %v157
  %vm174 = vcmask 257024
  %175 = vst.msk [vmem:[%s3] sm:$0xf] %vm174, %v158
  %176 = vst.msk [vmem:[%s3 + $0x4] sm:$0xf] %vm174, %v159
  %177 = vst.msk [vmem:[%s3 + $0x8] sm:$0xf] %vm174, %v160
  %178 = vst.msk [vmem:[%s3 + $0xc] sm:$0xf] %vm174, %v161
  %179 = vst.msk [vmem:[%s3 + $0x10] sm:$0xf] %vm174, %v162
  %180 = vst.msk [vmem:[%s3 + $0x14] sm:$0xf] %vm174, %v163
  %181 = vst.msk [vmem:[%s3 + $0x18] sm:$0xf] %vm174, %v164
  %182 = vst.msk [vmem:[%s3 + $0x1c] sm:$0xf] %vm174, %v165
  // Predicated region
  $region14: #{generator_forward.10} parent=0 // pred_check
    _
  $region15: #{generator_forward.10} parent=0 // pred_check_branch
    %184 = sbr.rel (0) target = $region17
  $region16: #{generator_forward.10} parent=0 // pred_region
    _
  $region17: #{generator_forward.10} parent=0 // pred_fallthru
    _
  // Predicated region
  $region18: #{generator_forward.10} parent=0 // pred_check
    _
  $region19: #{generator_forward.10} parent=0 // pred_check_branch
    %186 = sbr.rel (0) target = $region21
  $region20: #{generator_forward.10} parent=0 // pred_region
    _
  $region21: #{generator_forward.10} parent=0 // pred_fallthru
    _

// kernel: generator_forward.9
$region0: #{generator_forward.9}
  #allocation0 [shape = 'u32[]', space=smem, size = 0x4, offset = 0x4, fixed_abs, tag = 'smem constant byte address 0x4 - core index']
  #allocation1 [shape = 'u32[144,128]{1,0:T(1,128)}', space=vmem, size = 0x12000, scoped, tag = 'internal scratch']
  %s0 = inlined_call_operand.vmem [shape: bf16[64,256], index: 0, kind: input, shape index: {}]
  %s1 = inlined_call_operand.vmem [shape: bf16[256,32], index: 1, kind: input, shape index: {}]
  %s2 = inlined_call_operand.vmem [shape: f32[64,32], index: 2, kind: output, shape index: {0}]
  %s3 = inlined_call_operand.vmem [shape: f32[64,1], index: 3, kind: output, shape index: {1}]
  %s4 = inlined_call_operand.vmem [shape: f32[64,1], index: 4, kind: output, shape index: {2}]
  %5 = xla_tuple %s2, %s3, %s4
  %s6 = sld [smem:[#allocation0]]
  $region38: #{generator_forward.9} parent=0
    _
  %s8 = ssub.s32 1, %s6
  %s9 = scalar_select 0, %s8, %s6
  // Predicated region
  $region2: #{generator_forward.9} parent=0 // pred_check
    _
  $region3: #{generator_forward.9} parent=0 // pred_check_branch
    %11 = sbr.rel (0) target = $region5
  $region4: #{generator_forward.9} parent=0 // pred_region
    _
  $region5: #{generator_forward.9} parent=0 // pred_fallthru
    _
  // Predicated region
  $region6: #{generator_forward.9} parent=0 // pred_check
    _
  $region7: #{generator_forward.9} parent=0 // pred_check_branch
    %13 = sbr.rel (0) target = $region9
  $region8: #{generator_forward.9} parent=0 // pred_region
    _
  $region9: #{generator_forward.9} parent=0 // pred_fallthru
    _
  %p15 = scmp.eq.s32.totalorder 0, 0
  // Predicated region
  $region10: #{generator_forward.9} parent=0 // pred_check
    %p16 = pneg %p15
  $region11: #{generator_forward.9} parent=0 // pred_check_branch
    %18 = sbr.rel (%p16) target = $region13
  $region12: #{generator_forward.9} parent=0 // pred_region
    %vm19 = vcmask 7168
    %20 = vst.msk [vmem:[%s3] sm:$0xff] %vm19, 0.0
    %21 = vst.msk [vmem:[%s3 + $0x8] sm:$0xff] %vm19, 0.0
    %22 = vst.msk [vmem:[%s3 + $0x10] sm:$0xff] %vm19, 0.0
    %23 = vst.msk [vmem:[%s3 + $0x18] sm:$0xff] %vm19, 0.0
    %24 = vst.msk [vmem:[%s3 + $0x20] sm:$0xff] %vm19, 0.0
    %25 = vst.msk [vmem:[%s3 + $0x28] sm:$0xff] %vm19, 0.0
    %26 = vst.msk [vmem:[%s3 + $0x30] sm:$0xff] %vm19, 0.0
    %27 = vst.msk [vmem:[%s3 + $0x38] sm:$0xff] %vm19, 0.0
    %28 = vst.msk [vmem:[%s4] sm:$0xff] %vm19, 0.0
    %29 = vst.msk [vmem:[%s4 + $0x8] sm:$0xff] %vm19, 0.0
    %30 = vst.msk [vmem:[%s4 + $0x10] sm:$0xff] %vm19, 0.0
    %31 = vst.msk [vmem:[%s4 + $0x18] sm:$0xff] %vm19, 0.0
    %32 = vst.msk [vmem:[%s4 + $0x20] sm:$0xff] %vm19, 0.0
    %33 = vst.msk [vmem:[%s4 + $0x28] sm:$0xff] %vm19, 0.0
    %34 = vst.msk [vmem:[%s4 + $0x30] sm:$0xff] %vm19, 0.0
    %35 = vst.msk [vmem:[%s4 + $0x38] sm:$0xff] %vm19, 0.0
  $region13: #{generator_forward.9} parent=0 // pred_fallthru
    _
  %v36 = vld [vmem:[%s0] sm:$0xff]
  %v37 = vld [vmem:[%s0 + $0x8] sm:$0xff]
  %v38 = vld [vmem:[%s0 + $0x10] sm:$0xff]
  %v39 = vld [vmem:[%s0 + $0x18] sm:$0xff]
  %v40 = vld [vmem:[%s0 + $0x20] sm:$0xff]
  %v41 = vld [vmem:[%s0 + $0x28] sm:$0xff]
  %v42 = vld [vmem:[%s0 + $0x30] sm:$0xff]
  %v43 = vld [vmem:[%s0 + $0x38] sm:$0xff]
  %v44 = vld [vmem:[%s1] sm:$0xf]
  %v45 = vld [vmem:[%s1 + $0x4] sm:$0xf]
  %v46 = vld [vmem:[%s1 + $0x8] sm:$0xf]
  %v47 = vld [vmem:[%s1 + $0xc] sm:$0xf]
  %v48 = vld [vmem:[%s1 + $0x10] sm:$0xf]
  %v49 = vld [vmem:[%s1 + $0x14] sm:$0xf]
  %v50 = vld [vmem:[%s1 + $0x18] sm:$0xf]
  %v51 = vld [vmem:[%s1 + $0x1c] sm:$0xf]
  %v52 = vld [vmem:[%s1 + $0x20] sm:$0xf]
  %v53 = vld [vmem:[%s1 + $0x24] sm:$0xf]
  %v54 = vld [vmem:[%s1 + $0x28] sm:$0xf]
  %v55 = vld [vmem:[%s1 + $0x2c] sm:$0xf]
  %v56 = vld [vmem:[%s1 + $0x30] sm:$0xf]
  %v57 = vld [vmem:[%s1 + $0x34] sm:$0xf]
  %v58 = vld [vmem:[%s1 + $0x38] sm:$0xf]
  %v59 = vld [vmem:[%s1 + $0x3c] sm:$0xf]
  %v60 = vld [vmem:[%s1 + $0x40] sm:$0xf]
  %v61 = vld [vmem:[%s1 + $0x44] sm:$0xf]
  %v62 = vld [vmem:[%s1 + $0x48] sm:$0xf]
  %v63 = vld [vmem:[%s1 + $0x4c] sm:$0xf]
  %v64 = vld [vmem:[%s1 + $0x50] sm:$0xf]
  %v65 = vld [vmem:[%s1 + $0x54] sm:$0xf]
  %v66 = vld [vmem:[%s1 + $0x58] sm:$0xf]
  %v67 = vld [vmem:[%s1 + $0x5c] sm:$0xf]
  %v68 = vld [vmem:[%s1 + $0x60] sm:$0xf]
  %v69 = vld [vmem:[%s1 + $0x64] sm:$0xf]
  %v70 = vld [vmem:[%s1 + $0x68] sm:$0xf]
  %v71 = vld [vmem:[%s1 + $0x6c] sm:$0xf]
  %v72 = vld [vmem:[%s1 + $0x70] sm:$0xf]
  %v73 = vld [vmem:[%s1 + $0x74] sm:$0xf]
  %v74 = vld [vmem:[%s1 + $0x78] sm:$0xf]
  %v75 = vld [vmem:[%s1 + $0x7c] sm:$0xf]
  %v84 = vunpack.c.l.b16 %v36
  %v85 = vunpack.c.h.b16 %v36
  %v86 = vunpack.c.l.b16 %v37
  %v87 = vunpack.c.h.b16 %v37
  %v88 = vunpack.c.l.b16 %v38
  %v89 = vunpack.c.h.b16 %v38
  %v90 = vunpack.c.l.b16 %v39
  %v91 = vunpack.c.h.b16 %v39
  %v92 = vunpack.c.l.b16 %v40
  %v93 = vunpack.c.h.b16 %v40
  %v94 = vunpack.c.l.b16 %v41
  %v95 = vunpack.c.h.b16 %v41
  %v96 = vunpack.c.l.b16 %v42
  %v97 = vunpack.c.h.b16 %v42
  %v98 = vunpack.c.l.b16 %v43
  %v99 = vunpack.c.h.b16 %v43
  %v100 = vpack.c.b16 %v86, %v84
  %v101 = vpack.c.b16 %v87, %v85
  %v102 = vpack.c.b16 %v90, %v88
  %v103 = vpack.c.b16 %v91, %v89
  %v104 = vpack.c.b16 %v94, %v92
  %v105 = vpack.c.b16 %v95, %v93
  %v106 = vpack.c.b16 %v98, %v96
  %v107 = vpack.c.b16 %v99, %v97
  %v148 = vunpack.c.l.b16 %v44
  %v149 = vunpack.c.l.b16 %v45
  %v150 = vunpack.c.l.b16 %v46
  %v151 = vunpack.c.l.b16 %v47
  %v152 = vunpack.c.l.b16 %v48
  %v153 = vunpack.c.l.b16 %v49
  %v154 = vunpack.c.l.b16 %v50
  %v155 = vunpack.c.l.b16 %v51
  %v156 = vunpack.c.l.b16 %v52
  %v157 = vunpack.c.l.b16 %v53
  %v158 = vunpack.c.l.b16 %v54
  %v159 = vunpack.c.l.b16 %v55
  %v160 = vunpack.c.l.b16 %v56
  %v161 = vunpack.c.l.b16 %v57
  %v162 = vunpack.c.l.b16 %v58
  %v163 = vunpack.c.l.b16 %v59
  %v164 = vunpack.c.l.b16 %v60
  %v165 = vunpack.c.l.b16 %v61
  %v166 = vunpack.c.l.b16 %v62
  %v167 = vunpack.c.l.b16 %v63
  %v168 = vunpack.c.l.b16 %v64
  %v169 = vunpack.c.l.b16 %v65
  %v170 = vunpack.c.l.b16 %v66
  %v171 = vunpack.c.l.b16 %v67
  %v172 = vunpack.c.l.b16 %v68
  %v173 = vunpack.c.l.b16 %v69
  %v174 = vunpack.c.l.b16 %v70
  %v175 = vunpack.c.l.b16 %v71
  %v176 = vunpack.c.l.b16 %v72
  %v177 = vunpack.c.l.b16 %v73
  %v178 = vunpack.c.l.b16 %v74
  %v179 = vunpack.c.l.b16 %v75
  %v180 = vpack.c.b16 %v149, %v148
  %v181 = vpack.c.b16 %v151, %v150
  %v182 = vpack.c.b16 %v153, %v152
  %v183 = vpack.c.b16 %v155, %v154
  %v184 = vpack.c.b16 %v157, %v156
  %v185 = vpack.c.b16 %v159, %v158
  %v186 = vpack.c.b16 %v161, %v160
  %v187 = vpack.c.b16 %v163, %v162
  %v188 = vpack.c.b16 %v165, %v164
  %v189 = vpack.c.b16 %v167, %v166
  %v190 = vpack.c.b16 %v169, %v168
  %v191 = vpack.c.b16 %v171, %v170
  %v192 = vpack.c.b16 %v173, %v172
  %v193 = vpack.c.b16 %v175, %v174
  %v194 = vpack.c.b16 %v177, %v176
  %v195 = vpack.c.b16 %v179, %v178
  %212 = vmatprep.subr.bf16.mxu0 0
  %213 = vmatpush1.bf16.msra.mxu0 %v180
  %214 = vmatprep.subr.bf16.mxu0 0
  %215 = vmatpush1.bf16.msra.mxu0 %v181
  %216 = vmatprep.subr.bf16.mxu0 0
  %217 = vmatpush1.bf16.msra.mxu0 %v182
  %218 = vmatprep.subr.bf16.mxu0 0
  %219 = vmatpush1.bf16.msra.mxu0 %v183
  %220 = vmatprep.subr.bf16.mxu0 0
  %221 = vmatpush1.bf16.msra.mxu0 %v184
  %222 = vmatprep.subr.bf16.mxu0 0
  %223 = vmatpush1.bf16.msra.mxu0 %v185
  %224 = vmatprep.subr.bf16.mxu0 0
  %225 = vmatpush1.bf16.msra.mxu0 %v186
  %226 = vmatprep.subr.bf16.mxu0 0
  %227 = vmatpush1.bf16.msra.mxu0 %v187
  %228 = vmatprep.subr.bf16.mxu0 0
  %229 = vmatpush1.bf16.msra.mxu0 %v188
  %230 = vmatprep.subr.bf16.mxu0 0
  %231 = vmatpush1.bf16.msra.mxu0 %v189
  %232 = vmatprep.subr.bf16.mxu0 0
  %233 = vmatpush1.bf16.msra.mxu0 %v190
  %234 = vmatprep.subr.bf16.mxu0 0
  %235 = vmatpush1.bf16.msra.mxu0 %v191
  %236 = vmatprep.subr.bf16.mxu0 0
  %237 = vmatpush1.bf16.msra.mxu0 %v192
  %238 = vmatprep.subr.bf16.mxu0 0
  %239 = vmatpush1.bf16.msra.mxu0 %v193
  %240 = vmatprep.subr.bf16.mxu0 0
  %241 = vmatpush1.bf16.msra.mxu0 %v194
  %242 = vmatprep.subr.bf16.mxu0 0
  %243 = vmatpush1.bf16.msra.mxu0 %v195
  %244 = vmatprep.mubr.bf16.mxu0 %v101
  %245 = vmatmul.mubr.bf16.gmra.mrb[0].mxu0 %v100
  %v246 = vpop.f32.mrb[0].mxu0
  %v247 = vadd.f32 0.0, %v246
  %v248 = vpop.f32.mrb[0].mxu0
  %v249 = vpop.f32.mrb[0].mxu0
  %v250 = vadd.f32 0.0, %v249
  %v251 = vpop.f32.mrb[0].mxu0
  %252 = vmatprep.mubr.bf16.mxu0 %v103
  %253 = vmatmul.mubr.bf16.gmra.mrb[0].mxu0 %v102
  %v254 = vpop.f32.mrb[0].mxu0
  %v255 = vadd.f32 0.0, %v254
  %v256 = vpop.f32.mrb[0].mxu0
  %v257 = vpop.f32.mrb[0].mxu0
  %v258 = vadd.f32 0.0, %v257
  %v259 = vpop.f32.mrb[0].mxu0
  %260 = vmatprep.mubr.bf16.mxu0 %v105
  %261 = vmatmul.mubr.bf16.gmra.mrb[0].mxu0 %v104
  %v262 = vpop.f32.mrb[0].mxu0
  %v263 = vadd.f32 0.0, %v262
  %v264 = vpop.f32.mrb[0].mxu0
  %v265 = vpop.f32.mrb[0].mxu0
  %v266 = vadd.f32 0.0, %v265
  %v267 = vpop.f32.mrb[0].mxu0
  %268 = vmatprep.mubr.bf16.mxu0 %v107
  %269 = vmatmul.mubr.bf16.gmra.mrb[0].mxu0 %v106
  %v270 = vpop.f32.mrb[0].mxu0
  %v271 = vadd.f32 0.0, %v270
  %v272 = vpop.f32.mrb[0].mxu0
  %v273 = vpop.f32.mrb[0].mxu0
  %v274 = vadd.f32 0.0, %v273
  %v275 = vpop.f32.mrb[0].mxu0
  %276 = vdwg.mxu0
  %vm277 = vcmask 261120
  %278 = vst.msk [vmem:[%s2] sm:$0xff] %vm277, %v247
  %279 = vst.msk [vmem:[%s2 + $0x8] sm:$0xff] %vm277, %v250
  %280 = vst.msk [vmem:[%s2 + $0x10] sm:$0xff] %vm277, %v255
  %281 = vst.msk [vmem:[%s2 + $0x18] sm:$0xff] %vm277, %v258
  %282 = vst.msk [vmem:[%s2 + $0x20] sm:$0xff] %vm277, %v263
  %283 = vst.msk [vmem:[%s2 + $0x28] sm:$0xff] %vm277, %v266
  %284 = vst.msk [vmem:[%s2 + $0x30] sm:$0xff] %vm277, %v271
  %285 = vst.msk [vmem:[%s2 + $0x38] sm:$0xff] %vm277, %v274
  %v286 = vld [vmem:[%s3] sm:$0xff]
  %v287 = vld [vmem:[%s3 + $0x8] sm:$0xff]
  %v288 = vld [vmem:[%s3 + $0x10] sm:$0xff]
  %v289 = vld [vmem:[%s3 + $0x18] sm:$0xff]
  %v290 = vld [vmem:[%s3 + $0x20] sm:$0xff]
  %v291 = vld [vmem:[%s3 + $0x28] sm:$0xff]
  %v292 = vld [vmem:[%s3 + $0x30] sm:$0xff]
  %v293 = vld [vmem:[%s3 + $0x38] sm:$0xff]
  %v294 = vsel %vm277, %v247, 0.0
  %295 = vadd.xlane.f32.xlu0 %v294
  %v296 = vpop.xlane.xlu0 %295
  %v297 = vsel %vm277, %v250, 0.0
  %298 = vadd.xlane.f32.xlu0 %v297
  %v299 = vpop.xlane.xlu0 %298
  %v300 = vsel %vm277, %v255, 0.0
  %301 = vadd.xlane.f32.xlu0 %v300
  %v302 = vpop.xlane.xlu0 %301
  %v303 = vsel %vm277, %v258, 0.0
  %304 = vadd.xlane.f32.xlu0 %v303
  %v305 = vpop.xlane.xlu0 %304
  %v306 = vsel %vm277, %v263, 0.0
  %307 = vadd.xlane.f32.xlu0 %v306
  %v308 = vpop.xlane.xlu0 %307
  %v309 = vsel %vm277, %v266, 0.0
  %310 = vadd.xlane.f32.xlu0 %v309
  %v311 = vpop.xlane.xlu0 %310
  %v312 = vsel %vm277, %v271, 0.0
  %313 = vadd.xlane.f32.xlu0 %v312
  %v314 = vpop.xlane.xlu0 %313
  %v315 = vsel %vm277, %v274, 0.0
  %316 = vadd.xlane.f32.xlu0 %v315
  %v317 = vpop.xlane.xlu0 %316
  %v318 = vadd.f32 %v286, %v296
  %v319 = vadd.f32 %v287, %v299
  %v320 = vadd.f32 %v288, %v302
  %v321 = vadd.f32 %v289, %v305
  %v322 = vadd.f32 %v290, %v308
  %v323 = vadd.f32 %v291, %v311
  %v324 = vadd.f32 %v292, %v314
  %v325 = vadd.f32 %v293, %v317
  %vm326 = vcmask 7168
  %327 = vst.msk [vmem:[%s3] sm:$0xff] %vm326, %v318
  %328 = vst.msk [vmem:[%s3 + $0x8] sm:$0xff] %vm326, %v319
  %329 = vst.msk [vmem:[%s3 + $0x10] sm:$0xff] %vm326, %v320
  %330 = vst.msk [vmem:[%s3 + $0x18] sm:$0xff] %vm326, %v321
  %331 = vst.msk [vmem:[%s3 + $0x20] sm:$0xff] %vm326, %v322
  %332 = vst.msk [vmem:[%s3 + $0x28] sm:$0xff] %vm326, %v323
  %333 = vst.msk [vmem:[%s3 + $0x30] sm:$0xff] %vm326, %v324
  %334 = vst.msk [vmem:[%s3 + $0x38] sm:$0xff] %vm326, %v325
  %v335 = vld [vmem:[%s4] sm:$0xff]
  %v336 = vld [vmem:[%s4 + $0x8] sm:$0xff]
  %v337 = vld [vmem:[%s4 + $0x10] sm:$0xff]
  %v338 = vld [vmem:[%s4 + $0x18] sm:$0xff]
  %v339 = vld [vmem:[%s4 + $0x20] sm:$0xff]
  %v340 = vld [vmem:[%s4 + $0x28] sm:$0xff]
  %v341 = vld [vmem:[%s4 + $0x30] sm:$0xff]
  %v342 = vld [vmem:[%s4 + $0x38] sm:$0xff]
  %v343 = vmul.f32 %v247, %v247
  %v344 = vmul.f32 %v250, %v250
  %v345 = vmul.f32 %v255, %v255
  %v346 = vmul.f32 %v258, %v258
  %v347 = vmul.f32 %v263, %v263
  %v348 = vmul.f32 %v266, %v266
  %v349 = vmul.f32 %v271, %v271
  %v350 = vmul.f32 %v274, %v274
  %v351 = vsel %vm277, %v343, 0.0
  %352 = vadd.xlane.f32.xlu0 %v351
  %v353 = vpop.xlane.xlu0 %352
  %v354 = vsel %vm277, %v344, 0.0
  %355 = vadd.xlane.f32.xlu0 %v354
  %v356 = vpop.xlane.xlu0 %355
  %v357 = vsel %vm277, %v345, 0.0
  %358 = vadd.xlane.f32.xlu0 %v357
  %v359 = vpop.xlane.xlu0 %358
  %v360 = vsel %vm277, %v346, 0.0
  %361 = vadd.xlane.f32.xlu0 %v360
  %v362 = vpop.xlane.xlu0 %361
  %v363 = vsel %vm277, %v347, 0.0
  %364 = vadd.xlane.f32.xlu0 %v363
  %v365 = vpop.xlane.xlu0 %364
  %v366 = vsel %vm277, %v348, 0.0
  %367 = vadd.xlane.f32.xlu0 %v366
  %v368 = vpop.xlane.xlu0 %367
  %v369 = vsel %vm277, %v349, 0.0
  %370 = vadd.xlane.f32.xlu0 %v369
  %v371 = vpop.xlane.xlu0 %370
  %v372 = vsel %vm277, %v350, 0.0
  %373 = vadd.xlane.f32.xlu0 %v372
  %v374 = vpop.xlane.xlu0 %373
  %v375 = vadd.f32 %v335, %v353
  %v376 = vadd.f32 %v336, %v356
  %v377 = vadd.f32 %v337, %v359
  %v378 = vadd.f32 %v338, %v362
  %v379 = vadd.f32 %v339, %v365
  %v380 = vadd.f32 %v340, %v368
  %v381 = vadd.f32 %v341, %v371
  %v382 = vadd.f32 %v342, %v374
  %383 = vst.msk [vmem:[%s4] sm:$0xff] %vm326, %v375
  %384 = vst.msk [vmem:[%s4 + $0x8] sm:$0xff] %vm326, %v376
  %385 = vst.msk [vmem:[%s4 + $0x10] sm:$0xff] %vm326, %v377
  %386 = vst.msk [vmem:[%s4 + $0x18] sm:$0xff] %vm326, %v378
  %387 = vst.msk [vmem:[%s4 + $0x20] sm:$0xff] %vm326, %v379
  %388 = vst.msk [vmem:[%s4 + $0x28] sm:$0xff] %vm326, %v380
  %389 = vst.msk [vmem:[%s4 + $0x30] sm:$0xff] %vm326, %v381
  %390 = vst.msk [vmem:[%s4 + $0x38] sm:$0xff] %vm326, %v382
  // Predicated region
  $region14: #{generator_forward.9} parent=0 // pred_check
    _
  $region15: #{generator_forward.9} parent=0 // pred_check_branch
    %392 = sbr.rel (0) target = $region17
  $region16: #{generator_forward.9} parent=0 // pred_region
    _
  $region17: #{generator_forward.9} parent=0 // pred_fallthru
    _
  // Predicated region
  $region18: #{generator_forward.9} parent=0 // pred_check
    _
  $region19: #{generator_forward.9} parent=0 // pred_check_branch
    %394 = sbr.rel (0) target = $region21
  $region20: #{generator_forward.9} parent=0 // pred_region
    _
  $region21: #{generator_forward.9} parent=0 // pred_fallthru
    _
  // Predicated region
  $region22: #{generator_forward.9} parent=0 // pred_check
    _
  $region23: #{generator_forward.9} parent=0 // pred_check_branch
    %396 = sbr.rel (0) target = $region25
  $region24: #{generator_forward.9} parent=0 // pred_region
    _
  $region25: #{generator_forward.9} parent=0 // pred_fallthru
    _
  // Predicated region
  $region26: #{generator_forward.9} parent=0 // pred_check
    _
  $region27: #{generator_forward.9} parent=0 // pred_check_branch
    %398 = sbr.rel (0) target = $region29
  $region28: #{generator_forward.9} parent=0 // pred_region
    _
  $region29: #{generator_forward.9} parent=0 // pred_fallthru
    _
  // Predicated region
  $region30: #{generator_forward.9} parent=0 // pred_check
    _
  $region31: #{generator_forward.9} parent=0 // pred_check_branch
    %400 = sbr.rel (0) target = $region33
  $region32: #{generator_forward.9} parent=0 // pred_region
    _
  $region33: #{generator_forward.9} parent=0 // pred_fallthru
    _
  // Predicated region
  $region34: #{generator_forward.9} parent=0 // pred_check
    _
  $region35: #{generator_forward.9} parent=0 // pred_check_branch
    %402 = sbr.rel (0) target = $region37
  $region36: #{generator_forward.9} parent=0 // pred_region
    _
  $region37: #{generator_forward.9} parent=0 // pred_fallthru
    _

// kernel: generator_forward.12
$region0: #{generator_forward.12}
  #allocation0 [shape = 'u32[]', space=smem, size = 0x4, offset = 0x4, fixed_abs, tag = 'smem constant byte address 0x4 - core index']
  #allocation1 [shape = 'u32[144,128]{1,0:T(1,128)}', space=vmem, size = 0x12000, scoped, tag = 'internal scratch']
  %s0 = inlined_call_operand.vmem [shape: f32[32,128], index: 0, kind: input, shape index: {}]
  %s1 = inlined_call_operand.vmem [shape: f32[32,1], index: 1, kind: input, shape index: {}]
  %s2 = inlined_call_operand.vmem [shape: f32[32,1], index: 2, kind: input, shape index: {}]
  %s3 = inlined_call_operand.vmem [shape: bf16[32,128], index: 3, kind: output, shape index: {}]
  %s4 = sld [smem:[#allocation0]]
  $region22: #{generator_forward.12} parent=0
    _
  %s6 = ssub.s32 1, %s4
  %s7 = scalar_select 0, %s6, %s4
  // Predicated region
  $region2: #{generator_forward.12} parent=0 // pred_check
    _
  $region3: #{generator_forward.12} parent=0 // pred_check_branch
    %9 = sbr.rel (0) target = $region5
  $region4: #{generator_forward.12} parent=0 // pred_region
    _
  $region5: #{generator_forward.12} parent=0 // pred_fallthru
    _
  // Predicated region
  $region6: #{generator_forward.12} parent=0 // pred_check
    _
  $region7: #{generator_forward.12} parent=0 // pred_check_branch
    %11 = sbr.rel (0) target = $region9
  $region8: #{generator_forward.12} parent=0 // pred_region
    _
  $region9: #{generator_forward.12} parent=0 // pred_fallthru
    _
  // Predicated region
  $region10: #{generator_forward.12} parent=0 // pred_check
    _
  $region11: #{generator_forward.12} parent=0 // pred_check_branch
    %13 = sbr.rel (0) target = $region13
  $region12: #{generator_forward.12} parent=0 // pred_region
    _
  $region13: #{generator_forward.12} parent=0 // pred_fallthru
    _
  %v14 = vld [vmem:[%s0] sm:$0xff]
  %v15 = vld [vmem:[%s0 + $0x8] sm:$0xff]
  %v16 = vld [vmem:[%s0 + $0x10] sm:$0xff]
  %v17 = vld [vmem:[%s0 + $0x18] sm:$0xff]
  %v18 = vld [vmem:[%s1] sm:$0xff]
  %v19 = vld [vmem:[%s1 + $0x8] sm:$0xff]
  %v20 = vld [vmem:[%s1 + $0x10] sm:$0xff]
  %v21 = vld [vmem:[%s1 + $0x18] sm:$0xff]
  %23 = vset.pattern.permute.xlu0 0
  %24 = vperm.xlu0 %23, %v18
  %v25 = vpop.permute.xlu0 %24
  %28 = vset.pattern.permute.xlu0 0
  %29 = vperm.xlu0 %28, %v19
  %v30 = vpop.permute.xlu0 %29
  %33 = vset.pattern.permute.xlu0 0
  %34 = vperm.xlu0 %33, %v20
  %v35 = vpop.permute.xlu0 %34
  %38 = vset.pattern.permute.xlu0 0
  %39 = vperm.xlu0 %38, %v21
  %v40 = vpop.permute.xlu0 %39
  %v42 = vmul.f32 %v14, %v25
  %v43 = vmul.f32 %v15, %v30
  %v44 = vmul.f32 %v16, %v35
  %v45 = vmul.f32 %v17, %v40
  %v46 = vld [vmem:[%s2] sm:$0xff]
  %v47 = vld [vmem:[%s2 + $0x8] sm:$0xff]
  %v48 = vld [vmem:[%s2 + $0x10] sm:$0xff]
  %v49 = vld [vmem:[%s2 + $0x18] sm:$0xff]
  %51 = vset.pattern.permute.xlu0 0
  %52 = vperm.xlu0 %51, %v46
  %v53 = vpop.permute.xlu0 %52
  %56 = vset.pattern.permute.xlu0 0
  %57 = vperm.xlu0 %56, %v47
  %v58 = vpop.permute.xlu0 %57
  %61 = vset.pattern.permute.xlu0 0
  %62 = vperm.xlu0 %61, %v48
  %v63 = vpop.permute.xlu0 %62
  %66 = vset.pattern.permute.xlu0 0
  %67 = vperm.xlu0 %66, %v49
  %v68 = vpop.permute.xlu0 %67
  %v70 = vadd.f32 %v42, %v53
  %v71 = vadd.f32 %v43, %v58
  %v72 = vadd.f32 %v44, %v63
  %v73 = vadd.f32 %v45, %v68
  %v74 = vmax.f32 %v70, 0.0
  %v75 = vmax.f32 %v71, 0.0
  %v76 = vmax.f32 %v72, 0.0
  %v77 = vmax.f32 %v73, 0.0
  %v78 = vpack.c.bf16 %v75, %v74
  %v79 = vpack.c.bf16 %v77, %v76
  %v82 = vunpack.c.l.b16 %v78
  %v83 = vunpack.c.h.b16 %v78
  %v84 = vunpack.c.l.b16 %v79
  %v85 = vunpack.c.h.b16 %v79
  %v86 = vpack.c.b16 %v82, %v82
  %v87 = vpack.c.b16 %v83, %v83
  %v88 = vpack.c.b16 %v84, %v84
  %v89 = vpack.c.b16 %v85, %v85
  %94 = vst [vmem:[%s3] sm:$0xf] %v86
  %95 = vst [vmem:[%s3 + $0x4] sm:$0xf] %v87
  %96 = vst [vmem:[%s3 + $0x8] sm:$0xf] %v88
  %97 = vst [vmem:[%s3 + $0xc] sm:$0xf] %v89
  // Predicated region
  $region14: #{generator_forward.12} parent=0 // pred_check
    _
  $region15: #{generator_forward.12} parent=0 // pred_check_branch
    %99 = sbr.rel (0) target = $region17
  $region16: #{generator_forward.12} parent=0 // pred_region
    _
  $region17: #{generator_forward.12} parent=0 // pred_fallthru
    _
  // Predicated region
  $region18: #{generator_forward.12} parent=0 // pred_check
    _
  $region19: #{generator_forward.12} parent=0 // pred_check_branch
    %101 = sbr.rel (0) target = $region21
  $region20: #{generator_forward.12} parent=0 // pred_region
    _
  $region21: #{generator_forward.12} parent=0 // pred_fallthru
    _

// kernel: generator_forward.11
$region0: #{generator_forward.11}
  #allocation0 [shape = 'u32[]', space=smem, size = 0x4, offset = 0x4, fixed_abs, tag = 'smem constant byte address 0x4 - core index']
  #allocation1 [shape = 'u32[144,128]{1,0:T(1,128)}', space=vmem, size = 0x12000, scoped, tag = 'internal scratch']
  %s0 = inlined_call_operand.vmem [shape: bf16[32,1024], index: 0, kind: input, shape index: {}]
  %s1 = inlined_call_operand.vmem [shape: bf16[1024,128], index: 1, kind: input, shape index: {}]
  %s2 = inlined_call_operand.vmem [shape: f32[32,128], index: 2, kind: output, shape index: {0}]
  %s3 = inlined_call_operand.vmem [shape: f32[32,1], index: 3, kind: output, shape index: {1}]
  %s4 = inlined_call_operand.vmem [shape: f32[32,1], index: 4, kind: output, shape index: {2}]
  %5 = xla_tuple %s2, %s3, %s4
  %s6 = sld [smem:[#allocation0]]
  $region38: #{generator_forward.11} parent=0
    _
  %s8 = ssub.s32 1, %s6
  %s9 = scalar_select 0, %s8, %s6
  // Predicated region
  $region2: #{generator_forward.11} parent=0 // pred_check
    _
  $region3: #{generator_forward.11} parent=0 // pred_check_branch
    %11 = sbr.rel (0) target = $region5
  $region4: #{generator_forward.11} parent=0 // pred_region
    _
  $region5: #{generator_forward.11} parent=0 // pred_fallthru
    _
  // Predicated region
  $region6: #{generator_forward.11} parent=0 // pred_check
    _
  $region7: #{generator_forward.11} parent=0 // pred_check_branch
    %13 = sbr.rel (0) target = $region9
  $region8: #{generator_forward.11} parent=0 // pred_region
    _
  $region9: #{generator_forward.11} parent=0 // pred_fallthru
    _
  %p15 = scmp.eq.s32.totalorder 0, 0
  // Predicated region
  $region10: #{generator_forward.11} parent=0 // pred_check
    %p16 = pneg %p15
  $region11: #{generator_forward.11} parent=0 // pred_check_branch
    %18 = sbr.rel (%p16) target = $region13
  $region12: #{generator_forward.11} parent=0 // pred_region
    %vm19 = vcmask 7168
    %20 = vst.msk [vmem:[%s3] sm:$0xff] %vm19, 0.0
    %21 = vst.msk [vmem:[%s3 + $0x8] sm:$0xff] %vm19, 0.0
    %22 = vst.msk [vmem:[%s3 + $0x10] sm:$0xff] %vm19, 0.0
    %23 = vst.msk [vmem:[%s3 + $0x18] sm:$0xff] %vm19, 0.0
    %24 = vst.msk [vmem:[%s4] sm:$0xff] %vm19, 0.0
    %25 = vst.msk [vmem:[%s4 + $0x8] sm:$0xff] %vm19, 0.0
    %26 = vst.msk [vmem:[%s4 + $0x10] sm:$0xff] %vm19, 0.0
    %27 = vst.msk [vmem:[%s4 + $0x18] sm:$0xff] %vm19, 0.0
  $region13: #{generator_forward.11} parent=0 // pred_fallthru
    _
  %v28 = vld [vmem:[%s0] sm:$0xff]
  %v29 = vld [vmem:[%s0 + $0x8] sm:$0xff]
  %v30 = vld [vmem:[%s0 + $0x10] sm:$0xff]
  %v31 = vld [vmem:[%s0 + $0x18] sm:$0xff]
  %v32 = vld [vmem:[%s0 + $0x20] sm:$0xff]
  %v33 = vld [vmem:[%s0 + $0x28] sm:$0xff]
  %v34 = vld [vmem:[%s0 + $0x30] sm:$0xff]
  %v35 = vld [vmem:[%s0 + $0x38] sm:$0xff]
  %v36 = vld [vmem:[%s0 + $0x40] sm:$0xff]
  %v37 = vld [vmem:[%s0 + $0x48] sm:$0xff]
  %v38 = vld [vmem:[%s0 + $0x50] sm:$0xff]
  %v39 = vld [vmem:[%s0 + $0x58] sm:$0xff]
  %v40 = vld [vmem:[%s0 + $0x60] sm:$0xff]
  %v41 = vld [vmem:[%s0 + $0x68] sm:$0xff]
  %v42 = vld [vmem:[%s0 + $0x70] sm:$0xff]
  %v43 = vld [vmem:[%s0 + $0x78] sm:$0xff]
  %v44 = vld [vmem:[%s1] sm:$0xf]
  %v45 = vld [vmem:[%s1 + $0x4] sm:$0xf]
  %v46 = vld [vmem:[%s1 + $0x8] sm:$0xf]
  %v47 = vld [vmem:[%s1 + $0xc] sm:$0xf]
  %v48 = vld [vmem:[%s1 + $0x10] sm:$0xf]
  %v49 = vld [vmem:[%s1 + $0x14] sm:$0xf]
  %v50 = vld [vmem:[%s1 + $0x18] sm:$0xf]
  %v51 = vld [vmem:[%s1 + $0x1c] sm:$0xf]
  %v52 = vld [vmem:[%s1 + $0x20] sm:$0xf]
  %v53 = vld [vmem:[%s1 + $0x24] sm:$0xf]
  %v54 = vld [vmem:[%s1 + $0x28] sm:$0xf]
  %v55 = vld [vmem:[%s1 + $0x2c] sm:$0xf]
  %v56 = vld [vmem:[%s1 + $0x30] sm:$0xf]
  %v57 = vld [vmem:[%s1 + $0x34] sm:$0xf]
  %v58 = vld [vmem:[%s1 + $0x38] sm:$0xf]
  %v59 = vld [vmem:[%s1 + $0x3c] sm:$0xf]
  %v60 = vld [vmem:[%s1 + $0x40] sm:$0xf]
  %v61 = vld [vmem:[%s1 + $0x44] sm:$0xf]
  %v62 = vld [vmem:[%s1 + $0x48] sm:$0xf]
  %v63 = vld [vmem:[%s1 + $0x4c] sm:$0xf]
  %v64 = vld [vmem:[%s1 + $0x50] sm:$0xf]
  %v65 = vld [vmem:[%s1 + $0x54] sm:$0xf]
  %v66 = vld [vmem:[%s1 + $0x58] sm:$0xf]
  %v67 = vld [vmem:[%s1 + $0x5c] sm:$0xf]
  %v68 = vld [vmem:[%s1 + $0x60] sm:$0xf]
  %v69 = vld [vmem:[%s1 + $0x64] sm:$0xf]
  %v70 = vld [vmem:[%s1 + $0x68] sm:$0xf]
  %v71 = vld [vmem:[%s1 + $0x6c] sm:$0xf]
  %v72 = vld [vmem:[%s1 + $0x70] sm:$0xf]
  %v73 = vld [vmem:[%s1 + $0x74] sm:$0xf]
  %v74 = vld [vmem:[%s1 + $0x78] sm:$0xf]
  %v75 = vld [vmem:[%s1 + $0x7c] sm:$0xf]
  %v76 = vld [vmem:[%s1 + $0x80] sm:$0xf]
  %v77 = vld [vmem:[%s1 + $0x84] sm:$0xf]
  %v78 = vld [vmem:[%s1 + $0x88] sm:$0xf]
  %v79 = vld [vmem:[%s1 + $0x8c] sm:$0xf]
  %v80 = vld [vmem:[%s1 + $0x90] sm:$0xf]
  %v81 = vld [vmem:[%s1 + $0x94] sm:$0xf]
  %v82 = vld [vmem:[%s1 + $0x98] sm:$0xf]
  %v83 = vld [vmem:[%s1 + $0x9c] sm:$0xf]
  %v84 = vld [vmem:[%s1 + $0xa0] sm:$0xf]
  %v85 = vld [vmem:[%s1 + $0xa4] sm:$0xf]
  %v86 = vld [vmem:[%s1 + $0xa8] sm:$0xf]
  %v87 = vld [vmem:[%s1 + $0xac] sm:$0xf]
  %v88 = vld [vmem:[%s1 + $0xb0] sm:$0xf]
  %v89 = vld [vmem:[%s1 + $0xb4] sm:$0xf]
  %v90 = vld [vmem:[%s1 + $0xb8] sm:$0xf]
  %v91 = vld [vmem:[%s1 + $0xbc] sm:$0xf]
  %v92 = vld [vmem:[%s1 + $0xc0] sm:$0xf]
  %v93 = vld [vmem:[%s1 + $0xc4] sm:$0xf]
  %v94 = vld [vmem:[%s1 + $0xc8] sm:$0xf]
  %v95 = vld [vmem:[%s1 + $0xcc] sm:$0xf]
  %v96 = vld [vmem:[%s1 + $0xd0] sm:$0xf]
  %v97 = vld [vmem:[%s1 + $0xd4] sm:$0xf]
  %v98 = vld [vmem:[%s1 + $0xd8] sm:$0xf]
  %v99 = vld [vmem:[%s1 + $0xdc] sm:$0xf]
  %v100 = vld [vmem:[%s1 + $0xe0] sm:$0xf]
  %v101 = vld [vmem:[%s1 + $0xe4] sm:$0xf]
  %v102 = vld [vmem:[%s1 + $0xe8] sm:$0xf]
  %v103 = vld [vmem:[%s1 + $0xec] sm:$0xf]
  %v104 = vld [vmem:[%s1 + $0xf0] sm:$0xf]
  %v105 = vld [vmem:[%s1 + $0xf4] sm:$0xf]
  %v106 = vld [vmem:[%s1 + $0xf8] sm:$0xf]
  %v107 = vld [vmem:[%s1 + $0xfc] sm:$0xf]
  %v108 = vld [vmem:[%s1 + $0x100] sm:$0xf]
  %v109 = vld [vmem:[%s1 + $0x104] sm:$0xf]
  %v110 = vld [vmem:[%s1 + $0x108] sm:$0xf]
  %v111 = vld [vmem:[%s1 + $0x10c] sm:$0xf]
  %v112 = vld [vmem:[%s1 + $0x110] sm:$0xf]
  %v113 = vld [vmem:[%s1 + $0x114] sm:$0xf]
  %v114 = vld [vmem:[%s1 + $0x118] sm:$0xf]
  %v115 = vld [vmem:[%s1 + $0x11c] sm:$0xf]
  %v116 = vld [vmem:[%s1 + $0x120] sm:$0xf]
  %v117 = vld [vmem:[%s1 + $0x124] sm:$0xf]
  %v118 = vld [vmem:[%s1 + $0x128] sm:$0xf]
  %v119 = vld [vmem:[%s1 + $0x12c] sm:$0xf]
  %v120 = vld [vmem:[%s1 + $0x130] sm:$0xf]
  %v121 = vld [vmem:[%s1 + $0x134] sm:$0xf]
  %v122 = vld [vmem:[%s1 + $0x138] sm:$0xf]
  %v123 = vld [vmem:[%s1 + $0x13c] sm:$0xf]
  %v124 = vld [vmem:[%s1 + $0x140] sm:$0xf]
  %v125 = vld [vmem:[%s1 + $0x144] sm:$0xf]
  %v126 = vld [vmem:[%s1 + $0x148] sm:$0xf]
  %v127 = vld [vmem:[%s1 + $0x14c] sm:$0xf]
  %v128 = vld [vmem:[%s1 + $0x150] sm:$0xf]
  %v129 = vld [vmem:[%s1 + $0x154] sm:$0xf]
  %v130 = vld [vmem:[%s1 + $0x158] sm:$0xf]
  %v131 = vld [vmem:[%s1 + $0x15c] sm:$0xf]
  %v132 = vld [vmem:[%s1 + $0x160] sm:$0xf]
  %v133 = vld [vmem:[%s1 + $0x164] sm:$0xf]
  %v134 = vld [vmem:[%s1 + $0x168] sm:$0xf]
  %v135 = vld [vmem:[%s1 + $0x16c] sm:$0xf]
  %v136 = vld [vmem:[%s1 + $0x170] sm:$0xf]
  %v137 = vld [vmem:[%s1 + $0x174] sm:$0xf]
  %v138 = vld [vmem:[%s1 + $0x178] sm:$0xf]
  %v139 = vld [vmem:[%s1 + $0x17c] sm:$0xf]
  %v140 = vld [vmem:[%s1 + $0x180] sm:$0xf]
  %v141 = vld [vmem:[%s1 + $0x184] sm:$0xf]
  %v142 = vld [vmem:[%s1 + $0x188] sm:$0xf]
  %v143 = vld [vmem:[%s1 + $0x18c] sm:$0xf]
  %v144 = vld [vmem:[%s1 + $0x190] sm:$0xf]
  %v145 = vld [vmem:[%s1 + $0x194] sm:$0xf]
  %v146 = vld [vmem:[%s1 + $0x198] sm:$0xf]
  %v147 = vld [vmem:[%s1 + $0x19c] sm:$0xf]
  %v148 = vld [vmem:[%s1 + $0x1a0] sm:$0xf]
  %v149 = vld [vmem:[%s1 + $0x1a4] sm:$0xf]
  %v150 = vld [vmem:[%s1 + $0x1a8] sm:$0xf]
  %v151 = vld [vmem:[%s1 + $0x1ac] sm:$0xf]
  %v152 = vld [vmem:[%s1 + $0x1b0] sm:$0xf]
  %v153 = vld [vmem:[%s1 + $0x1b4] sm:$0xf]
  %v154 = vld [vmem:[%s1 + $0x1b8] sm:$0xf]
  %v155 = vld [vmem:[%s1 + $0x1bc] sm:$0xf]
  %v156 = vld [vmem:[%s1 + $0x1c0] sm:$0xf]
  %v157 = vld [vmem:[%s1 + $0x1c4] sm:$0xf]
  %v158 = vld [vmem:[%s1 + $0x1c8] sm:$0xf]
  %v159 = vld [vmem:[%s1 + $0x1cc] sm:$0xf]
  %v160 = vld [vmem:[%s1 + $0x1d0] sm:$0xf]
  %v161 = vld [vmem:[%s1 + $0x1d4] sm:$0xf]
  %v162 = vld [vmem:[%s1 + $0x1d8] sm:$0xf]
  %v163 = vld [vmem:[%s1 + $0x1dc] sm:$0xf]
  %v164 = vld [vmem:[%s1 + $0x1e0] sm:$0xf]
  %v165 = vld [vmem:[%s1 + $0x1e4] sm:$0xf]
  %v166 = vld [vmem:[%s1 + $0x1e8] sm:$0xf]
  %v167 = vld [vmem:[%s1 + $0x1ec] sm:$0xf]
  %v168 = vld [vmem:[%s1 + $0x1f0] sm:$0xf]
  %v169 = vld [vmem:[%s1 + $0x1f4] sm:$0xf]
  %v170 = vld [vmem:[%s1 + $0x1f8] sm:$0xf]
  %v171 = vld [vmem:[%s1 + $0x1fc] sm:$0xf]
  %v188 = vunpack.c.l.b16 %v28
  %v189 = vunpack.c.h.b16 %v28
  %v190 = vunpack.c.l.b16 %v29
  %v191 = vunpack.c.h.b16 %v29
  %v192 = vunpack.c.l.b16 %v30
  %v193 = vunpack.c.h.b16 %v30
  %v194 = vunpack.c.l.b16 %v31
  %v195 = vunpack.c.h.b16 %v31
  %v196 = vunpack.c.l.b16 %v32
  %v197 = vunpack.c.h.b16 %v32
  %v198 = vunpack.c.l.b16 %v33
  %v199 = vunpack.c.h.b16 %v33
  %v200 = vunpack.c.l.b16 %v34
  %v201 = vunpack.c.h.b16 %v34
  %v202 = vunpack.c.l.b16 %v35
  %v203 = vunpack.c.h.b16 %v35
  %v204 = vunpack.c.l.b16 %v36
  %v205 = vunpack.c.h.b16 %v36
  %v206 = vunpack.c.l.b16 %v37
  %v207 = vunpack.c.h.b16 %v37
  %v208 = vunpack.c.l.b16 %v38
  %v209 = vunpack.c.h.b16 %v38
  %v210 = vunpack.c.l.b16 %v39
  %v211 = vunpack.c.h.b16 %v39
  %v212 = vunpack.c.l.b16 %v40
  %v213 = vunpack.c.h.b16 %v40
  %v214 = vunpack.c.l.b16 %v41
  %v215 = vunpack.c.h.b16 %v41
  %v216 = vunpack.c.l.b16 %v42
  %v217 = vunpack.c.h.b16 %v42
  %v218 = vunpack.c.l.b16 %v43
  %v219 = vunpack.c.h.b16 %v43
  %v220 = vpack.c.b16 %v196, %v188
  %v221 = vpack.c.b16 %v197, %v189
  %v222 = vpack.c.b16 %v198, %v190
  %v223 = vpack.c.b16 %v199, %v191
  %v224 = vpack.c.b16 %v200, %v192
  %v225 = vpack.c.b16 %v201, %v193
  %v226 = vpack.c.b16 %v202, %v194
  %v227 = vpack.c.b16 %v203, %v195
  %v228 = vpack.c.b16 %v212, %v204
  %v229 = vpack.c.b16 %v213, %v205
  %v230 = vpack.c.b16 %v214, %v206
  %v231 = vpack.c.b16 %v215, %v207
  %v232 = vpack.c.b16 %v216, %v208
  %v233 = vpack.c.b16 %v217, %v209
  %v234 = vpack.c.b16 %v218, %v210
  %v235 = vpack.c.b16 %v219, %v211
  %v380 = vunpack.c.l.b16 %v44
  %v381 = vunpack.c.l.b16 %v45
  %v382 = vunpack.c.l.b16 %v46
  %v383 = vunpack.c.l.b16 %v47
  %v384 = vunpack.c.l.b16 %v48
  %v385 = vunpack.c.l.b16 %v49
  %v386 = vunpack.c.l.b16 %v50
  %v387 = vunpack.c.l.b16 %v51
  %v388 = vunpack.c.l.b16 %v52
  %v389 = vunpack.c.l.b16 %v53
  %v390 = vunpack.c.l.b16 %v54
  %v391 = vunpack.c.l.b16 %v55
  %v392 = vunpack.c.l.b16 %v56
  %v393 = vunpack.c.l.b16 %v57
  %v394 = vunpack.c.l.b16 %v58
  %v395 = vunpack.c.l.b16 %v59
  %v396 = vunpack.c.l.b16 %v60
  %v397 = vunpack.c.l.b16 %v61
  %v398 = vunpack.c.l.b16 %v62
  %v399 = vunpack.c.l.b16 %v63
  %v400 = vunpack.c.l.b16 %v64
  %v401 = vunpack.c.l.b16 %v65
  %v402 = vunpack.c.l.b16 %v66
  %v403 = vunpack.c.l.b16 %v67
  %v404 = vunpack.c.l.b16 %v68
  %v405 = vunpack.c.l.b16 %v69
  %v406 = vunpack.c.l.b16 %v70
  %v407 = vunpack.c.l.b16 %v71
  %v408 = vunpack.c.l.b16 %v72
  %v409 = vunpack.c.l.b16 %v73
  %v410 = vunpack.c.l.b16 %v74
  %v411 = vunpack.c.l.b16 %v75
  %v412 = vunpack.c.l.b16 %v76
  %v413 = vunpack.c.l.b16 %v77
  %v414 = vunpack.c.l.b16 %v78
  %v415 = vunpack.c.l.b16 %v79
  %v416 = vunpack.c.l.b16 %v80
  %v417 = vunpack.c.l.b16 %v81
  %v418 = vunpack.c.l.b16 %v82
  %v419 = vunpack.c.l.b16 %v83
  %v420 = vunpack.c.l.b16 %v84
  %v421 = vunpack.c.l.b16 %v85
  %v422 = vunpack.c.l.b16 %v86
  %v423 = vunpack.c.l.b16 %v87
  %v424 = vunpack.c.l.b16 %v88
  %v425 = vunpack.c.l.b16 %v89
  %v426 = vunpack.c.l.b16 %v90
  %v427 = vunpack.c.l.b16 %v91
  %v428 = vunpack.c.l.b16 %v92
  %v429 = vunpack.c.l.b16 %v93
  %v430 = vunpack.c.l.b16 %v94
  %v431 = vunpack.c.l.b16 %v95
  %v432 = vunpack.c.l.b16 %v96
  %v433 = vunpack.c.l.b16 %v97
  %v434 = vunpack.c.l.b16 %v98
  %v435 = vunpack.c.l.b16 %v99
  %v436 = vunpack.c.l.b16 %v100
  %v437 = vunpack.c.l.b16 %v101
  %v438 = vunpack.c.l.b16 %v102
  %v439 = vunpack.c.l.b16 %v103
  %v440 = vunpack.c.l.b16 %v104
  %v441 = vunpack.c.l.b16 %v105
  %v442 = vunpack.c.l.b16 %v106
  %v443 = vunpack.c.l.b16 %v107
  %v444 = vunpack.c.l.b16 %v108
  %v445 = vunpack.c.l.b16 %v109
  %v446 = vunpack.c.l.b16 %v110
  %v447 = vunpack.c.l.b16 %v111
  %v448 = vunpack.c.l.b16 %v112
  %v449 = vunpack.c.l.b16 %v113
  %v450 = vunpack.c.l.b16 %v114
  %v451 = vunpack.c.l.b16 %v115
  %v452 = vunpack.c.l.b16 %v116
  %v453 = vunpack.c.l.b16 %v117
  %v454 = vunpack.c.l.b16 %v118
  %v455 = vunpack.c.l.b16 %v119
  %v456 = vunpack.c.l.b16 %v120
  %v457 = vunpack.c.l.b16 %v121
  %v458 = vunpack.c.l.b16 %v122
  %v459 = vunpack.c.l.b16 %v123
  %v460 = vunpack.c.l.b16 %v124
  %v461 = vunpack.c.l.b16 %v125
  %v462 = vunpack.c.l.b16 %v126
  %v463 = vunpack.c.l.b16 %v127
  %v464 = vunpack.c.l.b16 %v128
  %v465 = vunpack.c.l.b16 %v129
  %v466 = vunpack.c.l.b16 %v130
  %v467 = vunpack.c.l.b16 %v131
  %v468 = vunpack.c.l.b16 %v132
  %v469 = vunpack.c.l.b16 %v133
  %v470 = vunpack.c.l.b16 %v134
  %v471 = vunpack.c.l.b16 %v135
  %v472 = vunpack.c.l.b16 %v136
  %v473 = vunpack.c.l.b16 %v137
  %v474 = vunpack.c.l.b16 %v138
  %v475 = vunpack.c.l.b16 %v139
  %v476 = vunpack.c.l.b16 %v140
  %v477 = vunpack.c.l.b16 %v141
  %v478 = vunpack.c.l.b16 %v142
  %v479 = vunpack.c.l.b16 %v143
  %v480 = vunpack.c.l.b16 %v144
  %v481 = vunpack.c.l.b16 %v145
  %v482 = vunpack.c.l.b16 %v146
  %v483 = vunpack.c.l.b16 %v147
  %v484 = vunpack.c.l.b16 %v148
  %v485 = vunpack.c.l.b16 %v149
  %v486 = vunpack.c.l.b16 %v150
  %v487 = vunpack.c.l.b16 %v151
  %v488 = vunpack.c.l.b16 %v152
  %v489 = vunpack.c.l.b16 %v153
  %v490 = vunpack.c.l.b16 %v154
  %v491 = vunpack.c.l.b16 %v155
  %v492 = vunpack.c.l.b16 %v156
  %v493 = vunpack.c.l.b16 %v157
  %v494 = vunpack.c.l.b16 %v158
  %v495 = vunpack.c.l.b16 %v159
  %v496 = vunpack.c.l.b16 %v160
  %v497 = vunpack.c.l.b16 %v161
  %v498 = vunpack.c.l.b16 %v162
  %v499 = vunpack.c.l.b16 %v163
  %v500 = vunpack.c.l.b16 %v164
  %v501 = vunpack.c.l.b16 %v165
  %v502 = vunpack.c.l.b16 %v166
  %v503 = vunpack.c.l.b16 %v167
  %v504 = vunpack.c.l.b16 %v168
  %v505 = vunpack.c.l.b16 %v169
  %v506 = vunpack.c.l.b16 %v170
  %v507 = vunpack.c.l.b16 %v171
  %v508 = vpack.c.b16 %v381, %v380
  %v509 = vpack.c.b16 %v383, %v382
  %v510 = vpack.c.b16 %v385, %v384
  %v511 = vpack.c.b16 %v387, %v386
  %v512 = vpack.c.b16 %v389, %v388
  %v513 = vpack.c.b16 %v391, %v390
  %v514 = vpack.c.b16 %v393, %v392
  %v515 = vpack.c.b16 %v395, %v394
  %v516 = vpack.c.b16 %v397, %v396
  %v517 = vpack.c.b16 %v399, %v398
  %v518 = vpack.c.b16 %v401, %v400
  %v519 = vpack.c.b16 %v403, %v402
  %v520 = vpack.c.b16 %v405, %v404
  %v521 = vpack.c.b16 %v407, %v406
  %v522 = vpack.c.b16 %v409, %v408
  %v523 = vpack.c.b16 %v411, %v410
  %v524 = vpack.c.b16 %v413, %v412
  %v525 = vpack.c.b16 %v415, %v414
  %v526 = vpack.c.b16 %v417, %v416
  %v527 = vpack.c.b16 %v419, %v418
  %v528 = vpack.c.b16 %v421, %v420
  %v529 = vpack.c.b16 %v423, %v422
  %v530 = vpack.c.b16 %v425, %v424
  %v531 = vpack.c.b16 %v427, %v426
  %v532 = vpack.c.b16 %v429, %v428
  %v533 = vpack.c.b16 %v431, %v430
  %v534 = vpack.c.b16 %v433, %v432
  %v535 = vpack.c.b16 %v435, %v434
  %v536 = vpack.c.b16 %v437, %v436
  %v537 = vpack.c.b16 %v439, %v438
  %v538 = vpack.c.b16 %v441, %v440
  %v539 = vpack.c.b16 %v443, %v442
  %v540 = vpack.c.b16 %v445, %v444
  %v541 = vpack.c.b16 %v447, %v446
  %v542 = vpack.c.b16 %v449, %v448
  %v543 = vpack.c.b16 %v451, %v450
  %v544 = vpack.c.b16 %v453, %v452
  %v545 = vpack.c.b16 %v455, %v454
  %v546 = vpack.c.b16 %v457, %v456
  %v547 = vpack.c.b16 %v459, %v458
  %v548 = vpack.c.b16 %v461, %v460
  %v549 = vpack.c.b16 %v463, %v462
  %v550 = vpack.c.b16 %v465, %v464
  %v551 = vpack.c.b16 %v467, %v466
  %v552 = vpack.c.b16 %v469, %v468
  %v553 = vpack.c.b16 %v471, %v470
  %v554 = vpack.c.b16 %v473, %v472
  %v555 = vpack.c.b16 %v475, %v474
  %v556 = vpack.c.b16 %v477, %v476
  %v557 = vpack.c.b16 %v479, %v478
  %v558 = vpack.c.b16 %v481, %v480
  %v559 = vpack.c.b16 %v483, %v482
  %v560 = vpack.c.b16 %v485, %v484
  %v561 = vpack.c.b16 %v487, %v486
  %v562 = vpack.c.b16 %v489, %v488
  %v563 = vpack.c.b16 %v491, %v490
  %v564 = vpack.c.b16 %v493, %v492
  %v565 = vpack.c.b16 %v495, %v494
  %v566 = vpack.c.b16 %v497, %v496
  %v567 = vpack.c.b16 %v499, %v498
  %v568 = vpack.c.b16 %v501, %v500
  %v569 = vpack.c.b16 %v503, %v502
  %v570 = vpack.c.b16 %v505, %v504
  %v571 = vpack.c.b16 %v507, %v506
  %636 = vmatprep.subr.bf16.mxu0 0
  %637 = vmatpush1.bf16.msra.mxu0 %v508
  %638 = vmatprep.subr.bf16.mxu0 0
  %639 = vmatpush1.bf16.msra.mxu0 %v509
  %640 = vmatprep.subr.bf16.mxu0 0
  %641 = vmatpush1.bf16.msra.mxu0 %v510
  %642 = vmatprep.subr.bf16.mxu0 0
  %643 = vmatpush1.bf16.msra.mxu0 %v511
  %644 = vmatprep.subr.bf16.mxu0 0
  %645 = vmatpush1.bf16.msra.mxu0 %v512
  %646 = vmatprep.subr.bf16.mxu0 0
  %647 = vmatpush1.bf16.msra.mxu0 %v513
  %648 = vmatprep.subr.bf16.mxu0 0
  %649 = vmatpush1.bf16.msra.mxu0 %v514
  %650 = vmatprep.subr.bf16.mxu0 0
  %651 = vmatpush1.bf16.msra.mxu0 %v515
  %652 = vmatprep.subr.bf16.mxu0 0
  %653 = vmatpush1.bf16.msra.mxu0 %v516
  %654 = vmatprep.subr.bf16.mxu0 0
  %655 = vmatpush1.bf16.msra.mxu0 %v517
  %656 = vmatprep.subr.bf16.mxu0 0
  %657 = vmatpush1.bf16.msra.mxu0 %v518
  %658 = vmatprep.subr.bf16.mxu0 0
  %659 = vmatpush1.bf16.msra.mxu0 %v519
  %660 = vmatprep.subr.bf16.mxu0 0
  %661 = vmatpush1.bf16.msra.mxu0 %v520
  %662 = vmatprep.subr.bf16.mxu0 0
  %663 = vmatpush1.bf16.msra.mxu0 %v521
  %664 = vmatprep.subr.bf16.mxu0 0
  %665 = vmatpush1.bf16.msra.mxu0 %v522
  %666 = vmatprep.subr.bf16.mxu0 0
  %667 = vmatpush1.bf16.msra.mxu0 %v523
  %668 = vmatprep.mubr.bf16.mxu0 %v221
  %669 = vmatmul.mubr.bf16.gmra.mrb[0].mxu0 %v220
  %v670 = vpop.f32.mrb[0].mxu0
  %v671 = vadd.f32 0.0, %v670
  %v672 = vpop.f32.mrb[0].mxu0
  %v673 = vpop.f32.mrb[0].mxu0
  %v674 = vadd.f32 0.0, %v673
  %v675 = vpop.f32.mrb[0].mxu0
  %676 = vmatprep.mubr.bf16.mxu0 %v229
  %677 = vmatmul.mubr.bf16.gmra.mrb[0].mxu0 %v228
  %v678 = vpop.f32.mrb[0].mxu0
  %v679 = vadd.f32 0.0, %v678
  %v680 = vpop.f32.mrb[0].mxu0
  %v681 = vpop.f32.mrb[0].mxu0
  %v682 = vadd.f32 0.0, %v681
  %v683 = vpop.f32.mrb[0].mxu0
  %684 = vdwg.mxu0
  %685 = vmatprep.subr.bf16.mxu0 0
  %686 = vmatpush1.bf16.msra.mxu0 %v524
  %687 = vmatprep.subr.bf16.mxu0 0
  %688 = vmatpush1.bf16.msra.mxu0 %v525
  %689 = vmatprep.subr.bf16.mxu0 0
  %690 = vmatpush1.bf16.msra.mxu0 %v526
  %691 = vmatprep.subr.bf16.mxu0 0
  %692 = vmatpush1.bf16.msra.mxu0 %v527
  %693 = vmatprep.subr.bf16.mxu0 0
  %694 = vmatpush1.bf16.msra.mxu0 %v528
  %695 = vmatprep.subr.bf16.mxu0 0
  %696 = vmatpush1.bf16.msra.mxu0 %v529
  %697 = vmatprep.subr.bf16.mxu0 0
  %698 = vmatpush1.bf16.msra.mxu0 %v530
  %699 = vmatprep.subr.bf16.mxu0 0
  %700 = vmatpush1.bf16.msra.mxu0 %v531
  %701 = vmatprep.subr.bf16.mxu0 0
  %702 = vmatpush1.bf16.msra.mxu0 %v532
  %703 = vmatprep.subr.bf16.mxu0 0
  %704 = vmatpush1.bf16.msra.mxu0 %v533
  %705 = vmatprep.subr.bf16.mxu0 0
  %706 = vmatpush1.bf16.msra.mxu0 %v534
  %707 = vmatprep.subr.bf16.mxu0 0
  %708 = vmatpush1.bf16.msra.mxu0 %v535
  %709 = vmatprep.subr.bf16.mxu0 0
  %710 = vmatpush1.bf16.msra.mxu0 %v536
  %711 = vmatprep.subr.bf16.mxu0 0
  %712 = vmatpush1.bf16.msra.mxu0 %v537
  %713 = vmatprep.subr.bf16.mxu0 0
  %714 = vmatpush1.bf16.msra.mxu0 %v538
  %715 = vmatprep.subr.bf16.mxu0 0
  %716 = vmatpush1.bf16.msra.mxu0 %v539
  %717 = vmatprep.mubr.bf16.mxu0 %v223
  %718 = vmatmul.mubr.bf16.gmra.mrb[0].mxu0 %v222
  %v719 = vpop.f32.mrb[0].mxu0
  %v720 = vadd.f32 %v671, %v719
  %v721 = vpop.f32.mrb[0].mxu0
  %v722 = vpop.f32.mrb[0].mxu0
  %v723 = vadd.f32 %v674, %v722
  %v724 = vpop.f32.mrb[0].mxu0
  %725 = vmatprep.mubr.bf16.mxu0 %v231
  %726 = vmatmul.mubr.bf16.gmra.mrb[0].mxu0 %v230
  %v727 = vpop.f32.mrb[0].mxu0
  %v728 = vadd.f32 %v679, %v727
  %v729 = vpop.f32.mrb[0].mxu0
  %v730 = vpop.f32.mrb[0].mxu0
  %v731 = vadd.f32 %v682, %v730
  %v732 = vpop.f32.mrb[0].mxu0
  %733 = vdwg.mxu0
  %734 = vmatprep.subr.bf16.mxu0 0
  %735 = vmatpush1.bf16.msra.mxu0 %v540
  %736 = vmatprep.subr.bf16.mxu0 0
  %737 = vmatpush1.bf16.msra.mxu0 %v541
  %738 = vmatprep.subr.bf16.mxu0 0
  %739 = vmatpush1.bf16.msra.mxu0 %v542
  %740 = vmatprep.subr.bf16.mxu0 0
  %741 = vmatpush1.bf16.msra.mxu0 %v543
  %742 = vmatprep.subr.bf16.mxu0 0
  %743 = vmatpush1.bf16.msra.mxu0 %v544
  %744 = vmatprep.subr.bf16.mxu0 0
  %745 = vmatpush1.bf16.msra.mxu0 %v545
  %746 = vmatprep.subr.bf16.mxu0 0
  %747 = vmatpush1.bf16.msra.mxu0 %v546
  %748 = vmatprep.subr.bf16.mxu0 0
  %749 = vmatpush1.bf16.msra.mxu0 %v547
  %750 = vmatprep.subr.bf16.mxu0 0
  %751 = vmatpush1.bf16.msra.mxu0 %v548
  %752 = vmatprep.subr.bf16.mxu0 0
  %753 = vmatpush1.bf16.msra.mxu0 %v549
  %754 = vmatprep.subr.bf16.mxu0 0
  %755 = vmatpush1.bf16.msra.mxu0 %v550
  %756 = vmatprep.subr.bf16.mxu0 0
  %757 = vmatpush1.bf16.msra.mxu0 %v551
  %758 = vmatprep.subr.bf16.mxu0 0
  %759 = vmatpush1.bf16.msra.mxu0 %v552
  %760 = vmatprep.subr.bf16.mxu0 0
  %761 = vmatpush1.bf16.msra.mxu0 %v553
  %762 = vmatprep.subr.bf16.mxu0 0
  %763 = vmatpush1.bf16.msra.mxu0 %v554
  %764 = vmatprep.subr.bf16.mxu0 0
  %765 = vmatpush1.bf16.msra.mxu0 %v555
  %766 = vmatprep.mubr.bf16.mxu0 %v225
  %767 = vmatmul.mubr.bf16.gmra.mrb[0].mxu0 %v224
  %v768 = vpop.f32.mrb[0].mxu0
  %v769 = vadd.f32 %v720, %v768
  %v770 = vpop.f32.mrb[0].mxu0
  %v771 = vpop.f32.mrb[0].mxu0
  %v772 = vadd.f32 %v723, %v771
  %v773 = vpop.f32.mrb[0].mxu0
  %774 = vmatprep.mubr.bf16.mxu0 %v233
  %775 = vmatmul.mubr.bf16.gmra.mrb[0].mxu0 %v232
  %v776 = vpop.f32.mrb[0].mxu0
  %v777 = vadd.f32 %v728, %v776
  %v778 = vpop.f32.mrb[0].mxu0
  %v779 = vpop.f32.mrb[0].mxu0
  %v780 = vadd.f32 %v731, %v779
  %v781 = vpop.f32.mrb[0].mxu0
  %782 = vdwg.mxu0
  %783 = vmatprep.subr.bf16.mxu0 0
  %784 = vmatpush1.bf16.msra.mxu0 %v556
  %785 = vmatprep.subr.bf16.mxu0 0
  %786 = vmatpush1.bf16.msra.mxu0 %v557
  %787 = vmatprep.subr.bf16.mxu0 0
  %788 = vmatpush1.bf16.msra.mxu0 %v558
  %789 = vmatprep.subr.bf16.mxu0 0
  %790 = vmatpush1.bf16.msra.mxu0 %v559
  %791 = vmatprep.subr.bf16.mxu0 0
  %792 = vmatpush1.bf16.msra.mxu0 %v560
  %793 = vmatprep.subr.bf16.mxu0 0
  %794 = vmatpush1.bf16.msra.mxu0 %v561
  %795 = vmatprep.subr.bf16.mxu0 0
  %796 = vmatpush1.bf16.msra.mxu0 %v562
  %797 = vmatprep.subr.bf16.mxu0 0
  %798 = vmatpush1.bf16.msra.mxu0 %v563
  %799 = vmatprep.subr.bf16.mxu0 0
  %800 = vmatpush1.bf16.msra.mxu0 %v564
  %801 = vmatprep.subr.bf16.mxu0 0
  %802 = vmatpush1.bf16.msra.mxu0 %v565
  %803 = vmatprep.subr.bf16.mxu0 0
  %804 = vmatpush1.bf16.msra.mxu0 %v566
  %805 = vmatprep.subr.bf16.mxu0 0
  %806 = vmatpush1.bf16.msra.mxu0 %v567
  %807 = vmatprep.subr.bf16.mxu0 0
  %808 = vmatpush1.bf16.msra.mxu0 %v568
  %809 = vmatprep.subr.bf16.mxu0 0
  %810 = vmatpush1.bf16.msra.mxu0 %v569
  %811 = vmatprep.subr.bf16.mxu0 0
  %812 = vmatpush1.bf16.msra.mxu0 %v570
  %813 = vmatprep.subr.bf16.mxu0 0
  %814 = vmatpush1.bf16.msra.mxu0 %v571
  %815 = vmatprep.mubr.bf16.mxu0 %v227
  %816 = vmatmul.mubr.bf16.gmra.mrb[0].mxu0 %v226
  %v817 = vpop.f32.mrb[0].mxu0
  %v818 = vadd.f32 %v769, %v817
  %v819 = vpop.f32.mrb[0].mxu0
  %v820 = vpop.f32.mrb[0].mxu0
  %v821 = vadd.f32 %v772, %v820
  %v822 = vpop.f32.mrb[0].mxu0
  %823 = vmatprep.mubr.bf16.mxu0 %v235
  %824 = vmatmul.mubr.bf16.gmra.mrb[0].mxu0 %v234
  %v825 = vpop.f32.mrb[0].mxu0
  %v826 = vadd.f32 %v777, %v825
  %v827 = vpop.f32.mrb[0].mxu0
  %v828 = vpop.f32.mrb[0].mxu0
  %v829 = vadd.f32 %v780, %v828
  %v830 = vpop.f32.mrb[0].mxu0
  %831 = vdwg.mxu0
  %832 = vst [vmem:[%s2] sm:$0xff] %v818
  %833 = vst [vmem:[%s2 + $0x8] sm:$0xff] %v821
  %834 = vst [vmem:[%s2 + $0x10] sm:$0xff] %v826
  %835 = vst [vmem:[%s2 + $0x18] sm:$0xff] %v829
  %v836 = vld [vmem:[%s3] sm:$0xff]
  %v837 = vld [vmem:[%s3 + $0x8] sm:$0xff]
  %v838 = vld [vmem:[%s3 + $0x10] sm:$0xff]
  %v839 = vld [vmem:[%s3 + $0x18] sm:$0xff]
  %840 = vadd.xlane.f32.xlu0 %v818
  %v841 = vpop.xlane.xlu0 %840
  %842 = vadd.xlane.f32.xlu0 %v821
  %v843 = vpop.xlane.xlu0 %842
  %844 = vadd.xlane.f32.xlu0 %v826
  %v845 = vpop.xlane.xlu0 %844
  %846 = vadd.xlane.f32.xlu0 %v829
  %v847 = vpop.xlane.xlu0 %846
  %v848 = vadd.f32 %v836, %v841
  %v849 = vadd.f32 %v837, %v843
  %v850 = vadd.f32 %v838, %v845
  %v851 = vadd.f32 %v839, %v847
  %vm852 = vcmask 7168
  %853 = vst.msk [vmem:[%s3] sm:$0xff] %vm852, %v848
  %854 = vst.msk [vmem:[%s3 + $0x8] sm:$0xff] %vm852, %v849
  %855 = vst.msk [vmem:[%s3 + $0x10] sm:$0xff] %vm852, %v850
  %856 = vst.msk [vmem:[%s3 + $0x18] sm:$0xff] %vm852, %v851
  %v857 = vld [vmem:[%s4] sm:$0xff]
  %v858 = vld [vmem:[%s4 + $0x8] sm:$0xff]
  %v859 = vld [vmem:[%s4 + $0x10] sm:$0xff]
  %v860 = vld [vmem:[%s4 + $0x18] sm:$0xff]
  %v861 = vmul.f32 %v818, %v818
  %v862 = vmul.f32 %v821, %v821
  %v863 = vmul.f32 %v826, %v826
  %v864 = vmul.f32 %v829, %v829
  %865 = vadd.xlane.f32.xlu0 %v861
  %v866 = vpop.xlane.xlu0 %865
  %867 = vadd.xlane.f32.xlu0 %v862
  %v868 = vpop.xlane.xlu0 %867
  %869 = vadd.xlane.f32.xlu0 %v863
  %v870 = vpop.xlane.xlu0 %869
  %871 = vadd.xlane.f32.xlu0 %v864
  %v872 = vpop.xlane.xlu0 %871
  %v873 = vadd.f32 %v857, %v866
  %v874 = vadd.f32 %v858, %v868
  %v875 = vadd.f32 %v859, %v870
  %v876 = vadd.f32 %v860, %v872
  %877 = vst.msk [vmem:[%s4] sm:$0xff] %vm852, %v873
  %878 = vst.msk [vmem:[%s4 + $0x8] sm:$0xff] %vm852, %v874
  %879 = vst.msk [vmem:[%s4 + $0x10] sm:$0xff] %vm852, %v875
  %880 = vst.msk [vmem:[%s4 + $0x18] sm:$0xff] %vm852, %v876
  // Predicated region
  $region14: #{generator_forward.11} parent=0 // pred_check
    _
  $region15: #{generator_forward.11} parent=0 // pred_check_branch
    %882 = sbr.rel (0) target = $region17
  $region16: #{generator_forward.11} parent=0 // pred_region
    _
  $region17: #{generator_forward.11} parent=0 // pred_fallthru
    _
  // Predicated region
  $region18: #{generator_forward.11} parent=0 // pred_check
    _
  $region19: #{generator_forward.11} parent=0 // pred_check_branch
    %884 = sbr.rel (0) target = $region21
  $region20: #{generator_forward.11} parent=0 // pred_region
    _
  $region21: #{generator_forward.11} parent=0 // pred_fallthru
    _
  // Predicated region
  $region22: #{generator_forward.11} parent=0 // pred_check
    _
  $region23: #{generator_forward.11} parent=0 // pred_check_branch
    %886 = sbr.rel (0) target = $region25
  $region24: #{generator_forward.11} parent=0 // pred_region
    _
  $region25: #{generator_forward.11} parent=0 // pred_fallthru
    _
  // Predicated region
  $region26: #{generator_forward.11} parent=0 // pred_check
    _
  $region27: #{generator_forward.11} parent=0 // pred_check_branch
    %888 = sbr.rel (0) target = $region29
  $region28: #{generator_forward.11} parent=0 // pred_region
    _
  $region29: #{generator_forward.11} parent=0 // pred_fallthru
    _
  // Predicated region
  $region30: #{generator_forward.11} parent=0 // pred_check
    _
  $region31: #{generator_forward.11} parent=0 // pred_check_branch
    %890 = sbr.rel (0) target = $region33
  $region32: #{generator_forward.11} parent=0 // pred_region
    _
  $region33: #{generator_forward.11} parent=0 // pred_fallthru
    _
  // Predicated region
  $region34: #{generator_forward.11} parent=0 // pred_check
    _
  $region35: #{generator_forward.11} parent=0 // pred_check_branch
    %892 = sbr.rel (0) target = $region37
  $region36: #{generator_forward.11} parent=0 // pred_region
    _
  $region37: #{generator_forward.11} parent=0 // pred_fallthru
    _

// kernel: generator_forward.14
$region0: #{generator_forward.14}
  #allocation0 [shape = 'u32[]', space=smem, size = 0x4, offset = 0x4, fixed_abs, tag = 'smem constant byte address 0x4 - core index']
  #allocation1 [shape = 'u32[144,128]{1,0:T(1,128)}', space=vmem, size = 0x12000, scoped, tag = 'internal scratch']
  %s0 = inlined_call_operand.vmem [shape: f32[16,512], index: 0, kind: input, shape index: {}]
  %s1 = inlined_call_operand.vmem [shape: f32[16,1], index: 1, kind: input, shape index: {}]
  %s2 = inlined_call_operand.vmem [shape: f32[16,1], index: 2, kind: input, shape index: {}]
  %s3 = inlined_call_operand.vmem [shape: bf16[16,512], index: 3, kind: output, shape index: {}]
  %s4 = sld [smem:[#allocation0]]
  $region22: #{generator_forward.14} parent=0
    _
  %s6 = ssub.s32 1, %s4
  %s7 = scalar_select 0, %s6, %s4
  // Predicated region
  $region2: #{generator_forward.14} parent=0 // pred_check
    _
  $region3: #{generator_forward.14} parent=0 // pred_check_branch
    %9 = sbr.rel (0) target = $region5
  $region4: #{generator_forward.14} parent=0 // pred_region
    _
  $region5: #{generator_forward.14} parent=0 // pred_fallthru
    _
  // Predicated region
  $region6: #{generator_forward.14} parent=0 // pred_check
    _
  $region7: #{generator_forward.14} parent=0 // pred_check_branch
    %11 = sbr.rel (0) target = $region9
  $region8: #{generator_forward.14} parent=0 // pred_region
    _
  $region9: #{generator_forward.14} parent=0 // pred_fallthru
    _
  // Predicated region
  $region10: #{generator_forward.14} parent=0 // pred_check
    _
  $region11: #{generator_forward.14} parent=0 // pred_check_branch
    %13 = sbr.rel (0) target = $region13
  $region12: #{generator_forward.14} parent=0 // pred_region
    _
  $region13: #{generator_forward.14} parent=0 // pred_fallthru
    _
  %v14 = vld [vmem:[%s0] sm:$0xff]
  %v15 = vld [vmem:[%s0 + $0x8] sm:$0xff]
  %v16 = vld [vmem:[%s0 + $0x10] sm:$0xff]
  %v17 = vld [vmem:[%s0 + $0x18] sm:$0xff]
  %v18 = vld [vmem:[%s0 + $0x20] sm:$0xff]
  %v19 = vld [vmem:[%s0 + $0x28] sm:$0xff]
  %v20 = vld [vmem:[%s0 + $0x30] sm:$0xff]
  %v21 = vld [vmem:[%s0 + $0x38] sm:$0xff]
  %v22 = vld [vmem:[%s1] sm:$0xff]
  %v23 = vld [vmem:[%s1 + $0x8] sm:$0xff]
  %25 = vset.pattern.permute.xlu0 0
  %26 = vperm.xlu0 %25, %v22
  %v27 = vpop.permute.xlu0 %26
  %30 = vset.pattern.permute.xlu0 0
  %31 = vperm.xlu0 %30, %v23
  %v32 = vpop.permute.xlu0 %31
  %v34 = vmul.f32 %v14, %v27
  %v35 = vmul.f32 %v15, %v27
  %v36 = vmul.f32 %v16, %v27
  %v37 = vmul.f32 %v17, %v27
  %v38 = vmul.f32 %v18, %v32
  %v39 = vmul.f32 %v19, %v32
  %v40 = vmul.f32 %v20, %v32
  %v41 = vmul.f32 %v21, %v32
  %v42 = vld [vmem:[%s2] sm:$0xff]
  %v43 = vld [vmem:[%s2 + $0x8] sm:$0xff]
  %45 = vset.pattern.permute.xlu0 0
  %46 = vperm.xlu0 %45, %v42
  %v47 = vpop.permute.xlu0 %46
  %50 = vset.pattern.permute.xlu0 0
  %51 = vperm.xlu0 %50, %v43
  %v52 = vpop.permute.xlu0 %51
  %v54 = vadd.f32 %v34, %v47
  %v55 = vadd.f32 %v35, %v47
  %v56 = vadd.f32 %v36, %v47
  %v57 = vadd.f32 %v37, %v47
  %v58 = vadd.f32 %v38, %v52
  %v59 = vadd.f32 %v39, %v52
  %v60 = vadd.f32 %v40, %v52
  %v61 = vadd.f32 %v41, %v52
  %v62 = vmax.f32 %v54, 0.0
  %v63 = vmax.f32 %v55, 0.0
  %v64 = vmax.f32 %v56, 0.0
  %v65 = vmax.f32 %v57, 0.0
  %v66 = vmax.f32 %v58, 0.0
  %v67 = vmax.f32 %v59, 0.0
  %v68 = vmax.f32 %v60, 0.0
  %v69 = vmax.f32 %v61, 0.0
  %v70 = vpack.c.bf16 %v66, %v62
  %v71 = vpack.c.bf16 %v67, %v63
  %v72 = vpack.c.bf16 %v68, %v64
  %v73 = vpack.c.bf16 %v69, %v65
  %v78 = vunpack.c.l.b16 %v70
  %v79 = vunpack.c.l.b16 %v71
  %v80 = vunpack.c.l.b16 %v72
  %v81 = vunpack.c.l.b16 %v73
  %v82 = vunpack.c.h.b16 %v70
  %v83 = vunpack.c.h.b16 %v71
  %v84 = vunpack.c.h.b16 %v72
  %v85 = vunpack.c.h.b16 %v73
  %v86 = vpack.c.b16 %v79, %v78
  %v87 = vpack.c.b16 %v81, %v80
  %v88 = vpack.c.b16 %v83, %v82
  %v89 = vpack.c.b16 %v85, %v84
  %94 = vst [vmem:[%s3] sm:$0xff] %v86
  %95 = vst [vmem:[%s3 + $0x8] sm:$0xff] %v87
  %96 = vst [vmem:[%s3 + $0x10] sm:$0xff] %v88
  %97 = vst [vmem:[%s3 + $0x18] sm:$0xff] %v89
  // Predicated region
  $region14: #{generator_forward.14} parent=0 // pred_check
    _
  $region15: #{generator_forward.14} parent=0 // pred_check_branch
    %99 = sbr.rel (0) target = $region17
  $region16: #{generator_forward.14} parent=0 // pred_region
    _
  $region17: #{generator_forward.14} parent=0 // pred_fallthru
    _
  // Predicated region
  $region18: #{generator_forward.14} parent=0 // pred_check
    _
  $region19: #{generator_forward.14} parent=0 // pred_check_branch
    %101 = sbr.rel (0) target = $region21
  $region20: #{generator_forward.14} parent=0 // pred_region
    _
  $region21: #{generator_forward.14} parent=0 // pred_fallthru
    _

// kernel: generator_forward.13
$region0: #{generator_forward.13}
  #allocation0 [shape = 'u32[]', space=smem, size = 0x4, offset = 0x4, fixed_abs, tag = 'smem constant byte address 0x4 - core index']
  #allocation1 [shape = 'u32[144,128]{1,0:T(1,128)}', space=vmem, size = 0x12000, scoped, tag = 'internal scratch']
  %s0 = inlined_call_operand.vmem [shape: bf16[16,512], index: 0, kind: input, shape index: {}]
  %s1 = inlined_call_operand.vmem [shape: bf16[512,512], index: 1, kind: input, shape index: {}]
  %s2 = inlined_call_operand.vmem [shape: f32[16,512], index: 2, kind: output, shape index: {0}]
  %s3 = inlined_call_operand.vmem [shape: f32[16,1], index: 3, kind: output, shape index: {1}]
  %s4 = inlined_call_operand.vmem [shape: f32[16,1], index: 4, kind: output, shape index: {2}]
  %5 = xla_tuple %s2, %s3, %s4
  %s6 = sld [smem:[#allocation0]]
  $region38: #{generator_forward.13} parent=0
    _
  %s8 = ssub.s32 1, %s6
  %s9 = scalar_select 0, %s8, %s6
  // Predicated region
  $region2: #{generator_forward.13} parent=0 // pred_check
    _
  $region3: #{generator_forward.13} parent=0 // pred_check_branch
    %11 = sbr.rel (0) target = $region5
  $region4: #{generator_forward.13} parent=0 // pred_region
    _
  $region5: #{generator_forward.13} parent=0 // pred_fallthru
    _
  // Predicated region
  $region6: #{generator_forward.13} parent=0 // pred_check
    _
  $region7: #{generator_forward.13} parent=0 // pred_check_branch
    %13 = sbr.rel (0) target = $region9
  $region8: #{generator_forward.13} parent=0 // pred_region
    _
  $region9: #{generator_forward.13} parent=0 // pred_fallthru
    _
  %p14 = scmp.eq.s32.totalorder 0, 0
  // Predicated region
  $region10: #{generator_forward.13} parent=0 // pred_check
    %p15 = pneg %p14
  $region11: #{generator_forward.13} parent=0 // pred_check_branch
    %17 = sbr.rel (%p15) target = $region13
  $region12: #{generator_forward.13} parent=0 // pred_region
    %vm18 = vcmask 7168
    %19 = vst.msk [vmem:[%s3] sm:$0xff] %vm18, 0.0
    %20 = vst.msk [vmem:[%s3 + $0x8] sm:$0xff] %vm18, 0.0
    %21 = vst.msk [vmem:[%s4] sm:$0xff] %vm18, 0.0
    %22 = vst.msk [vmem:[%s4 + $0x8] sm:$0xff] %vm18, 0.0
  $region13: #{generator_forward.13} parent=0 // pred_fallthru
    _
  %v23 = vld [vmem:[%s0] sm:$0xff]
  %v24 = vld [vmem:[%s0 + $0x8] sm:$0xff]
  %v25 = vld [vmem:[%s0 + $0x10] sm:$0xff]
  %v26 = vld [vmem:[%s0 + $0x18] sm:$0xff]
  %v27 = vld [vmem:[%s1] sm:$0xff]
  %v28 = vld [vmem:[%s1 + $0x8] sm:$0xff]
  %v29 = vld [vmem:[%s1 + $0x10] sm:$0xff]
  %v30 = vld [vmem:[%s1 + $0x18] sm:$0xff]
  %v31 = vld [vmem:[%s1 + $0x20] sm:$0xff]
  %v32 = vld [vmem:[%s1 + $0x28] sm:$0xff]
  %v33 = vld [vmem:[%s1 + $0x30] sm:$0xff]
  %v34 = vld [vmem:[%s1 + $0x38] sm:$0xff]
  %v35 = vld [vmem:[%s1 + $0x40] sm:$0xff]
  %v36 = vld [vmem:[%s1 + $0x48] sm:$0xff]
  %v37 = vld [vmem:[%s1 + $0x50] sm:$0xff]
  %v38 = vld [vmem:[%s1 + $0x58] sm:$0xff]
  %v39 = vld [vmem:[%s1 + $0x60] sm:$0xff]
  %v40 = vld [vmem:[%s1 + $0x68] sm:$0xff]
  %v41 = vld [vmem:[%s1 + $0x70] sm:$0xff]
  %v42 = vld [vmem:[%s1 + $0x78] sm:$0xff]
  %v43 = vld [vmem:[%s1 + $0x80] sm:$0xff]
  %v44 = vld [vmem:[%s1 + $0x88] sm:$0xff]
  %v45 = vld [vmem:[%s1 + $0x90] sm:$0xff]
  %v46 = vld [vmem:[%s1 + $0x98] sm:$0xff]
  %v47 = vld [vmem:[%s1 + $0xa0] sm:$0xff]
  %v48 = vld [vmem:[%s1 + $0xa8] sm:$0xff]
  %v49 = vld [vmem:[%s1 + $0xb0] sm:$0xff]
  %v50 = vld [vmem:[%s1 + $0xb8] sm:$0xff]
  %v51 = vld [vmem:[%s1 + $0xc0] sm:$0xff]
  %v52 = vld [vmem:[%s1 + $0xc8] sm:$0xff]
  %v53 = vld [vmem:[%s1 + $0xd0] sm:$0xff]
  %v54 = vld [vmem:[%s1 + $0xd8] sm:$0xff]
  %v55 = vld [vmem:[%s1 + $0xe0] sm:$0xff]
  %v56 = vld [vmem:[%s1 + $0xe8] sm:$0xff]
  %v57 = vld [vmem:[%s1 + $0xf0] sm:$0xff]
  %v58 = vld [vmem:[%s1 + $0xf8] sm:$0xff]
  %v59 = vld [vmem:[%s1 + $0x100] sm:$0xff]
  %v60 = vld [vmem:[%s1 + $0x108] sm:$0xff]
  %v61 = vld [vmem:[%s1 + $0x110] sm:$0xff]
  %v62 = vld [vmem:[%s1 + $0x118] sm:$0xff]
  %v63 = vld [vmem:[%s1 + $0x120] sm:$0xff]
  %v64 = vld [vmem:[%s1 + $0x128] sm:$0xff]
  %v65 = vld [vmem:[%s1 + $0x130] sm:$0xff]
  %v66 = vld [vmem:[%s1 + $0x138] sm:$0xff]
  %v67 = vld [vmem:[%s1 + $0x140] sm:$0xff]
  %v68 = vld [vmem:[%s1 + $0x148] sm:$0xff]
  %v69 = vld [vmem:[%s1 + $0x150] sm:$0xff]
  %v70 = vld [vmem:[%s1 + $0x158] sm:$0xff]
  %v71 = vld [vmem:[%s1 + $0x160] sm:$0xff]
  %v72 = vld [vmem:[%s1 + $0x168] sm:$0xff]
  %v73 = vld [vmem:[%s1 + $0x170] sm:$0xff]
  %v74 = vld [vmem:[%s1 + $0x178] sm:$0xff]
  %v75 = vld [vmem:[%s1 + $0x180] sm:$0xff]
  %v76 = vld [vmem:[%s1 + $0x188] sm:$0xff]
  %v77 = vld [vmem:[%s1 + $0x190] sm:$0xff]
  %v78 = vld [vmem:[%s1 + $0x198] sm:$0xff]
  %v79 = vld [vmem:[%s1 + $0x1a0] sm:$0xff]
  %v80 = vld [vmem:[%s1 + $0x1a8] sm:$0xff]
  %v81 = vld [vmem:[%s1 + $0x1b0] sm:$0xff]
  %v82 = vld [vmem:[%s1 + $0x1b8] sm:$0xff]
  %v83 = vld [vmem:[%s1 + $0x1c0] sm:$0xff]
  %v84 = vld [vmem:[%s1 + $0x1c8] sm:$0xff]
  %v85 = vld [vmem:[%s1 + $0x1d0] sm:$0xff]
  %v86 = vld [vmem:[%s1 + $0x1d8] sm:$0xff]
  %v87 = vld [vmem:[%s1 + $0x1e0] sm:$0xff]
  %v88 = vld [vmem:[%s1 + $0x1e8] sm:$0xff]
  %v89 = vld [vmem:[%s1 + $0x1f0] sm:$0xff]
  %v90 = vld [vmem:[%s1 + $0x1f8] sm:$0xff]
  %v91 = vld [vmem:[%s1 + $0x200] sm:$0xff]
  %v92 = vld [vmem:[%s1 + $0x208] sm:$0xff]
  %v93 = vld [vmem:[%s1 + $0x210] sm:$0xff]
  %v94 = vld [vmem:[%s1 + $0x218] sm:$0xff]
  %v95 = vld [vmem:[%s1 + $0x220] sm:$0xff]
  %v96 = vld [vmem:[%s1 + $0x228] sm:$0xff]
  %v97 = vld [vmem:[%s1 + $0x230] sm:$0xff]
  %v98 = vld [vmem:[%s1 + $0x238] sm:$0xff]
  %v99 = vld [vmem:[%s1 + $0x240] sm:$0xff]
  %v100 = vld [vmem:[%s1 + $0x248] sm:$0xff]
  %v101 = vld [vmem:[%s1 + $0x250] sm:$0xff]
  %v102 = vld [vmem:[%s1 + $0x258] sm:$0xff]
  %v103 = vld [vmem:[%s1 + $0x260] sm:$0xff]
  %v104 = vld [vmem:[%s1 + $0x268] sm:$0xff]
  %v105 = vld [vmem:[%s1 + $0x270] sm:$0xff]
  %v106 = vld [vmem:[%s1 + $0x278] sm:$0xff]
  %v107 = vld [vmem:[%s1 + $0x280] sm:$0xff]
  %v108 = vld [vmem:[%s1 + $0x288] sm:$0xff]
  %v109 = vld [vmem:[%s1 + $0x290] sm:$0xff]
  %v110 = vld [vmem:[%s1 + $0x298] sm:$0xff]
  %v111 = vld [vmem:[%s1 + $0x2a0] sm:$0xff]
  %v112 = vld [vmem:[%s1 + $0x2a8] sm:$0xff]
  %v113 = vld [vmem:[%s1 + $0x2b0] sm:$0xff]
  %v114 = vld [vmem:[%s1 + $0x2b8] sm:$0xff]
  %v115 = vld [vmem:[%s1 + $0x2c0] sm:$0xff]
  %v116 = vld [vmem:[%s1 + $0x2c8] sm:$0xff]
  %v117 = vld [vmem:[%s1 + $0x2d0] sm:$0xff]
  %v118 = vld [vmem:[%s1 + $0x2d8] sm:$0xff]
  %v119 = vld [vmem:[%s1 + $0x2e0] sm:$0xff]
  %v120 = vld [vmem:[%s1 + $0x2e8] sm:$0xff]
  %v121 = vld [vmem:[%s1 + $0x2f0] sm:$0xff]
  %v122 = vld [vmem:[%s1 + $0x2f8] sm:$0xff]
  %v123 = vld [vmem:[%s1 + $0x300] sm:$0xff]
  %v124 = vld [vmem:[%s1 + $0x308] sm:$0xff]
  %v125 = vld [vmem:[%s1 + $0x310] sm:$0xff]
  %v126 = vld [vmem:[%s1 + $0x318] sm:$0xff]
  %v127 = vld [vmem:[%s1 + $0x320] sm:$0xff]
  %v128 = vld [vmem:[%s1 + $0x328] sm:$0xff]
  %v129 = vld [vmem:[%s1 + $0x330] sm:$0xff]
  %v130 = vld [vmem:[%s1 + $0x338] sm:$0xff]
  %v131 = vld [vmem:[%s1 + $0x340] sm:$0xff]
  %v132 = vld [vmem:[%s1 + $0x348] sm:$0xff]
  %v133 = vld [vmem:[%s1 + $0x350] sm:$0xff]
  %v134 = vld [vmem:[%s1 + $0x358] sm:$0xff]
  %v135 = vld [vmem:[%s1 + $0x360] sm:$0xff]
  %v136 = vld [vmem:[%s1 + $0x368] sm:$0xff]
  %v137 = vld [vmem:[%s1 + $0x370] sm:$0xff]
  %v138 = vld [vmem:[%s1 + $0x378] sm:$0xff]
  %v139 = vld [vmem:[%s1 + $0x380] sm:$0xff]
  %v140 = vld [vmem:[%s1 + $0x388] sm:$0xff]
  %v141 = vld [vmem:[%s1 + $0x390] sm:$0xff]
  %v142 = vld [vmem:[%s1 + $0x398] sm:$0xff]
  %v143 = vld [vmem:[%s1 + $0x3a0] sm:$0xff]
  %v144 = vld [vmem:[%s1 + $0x3a8] sm:$0xff]
  %v145 = vld [vmem:[%s1 + $0x3b0] sm:$0xff]
  %v146 = vld [vmem:[%s1 + $0x3b8] sm:$0xff]
  %v147 = vld [vmem:[%s1 + $0x3c0] sm:$0xff]
  %v148 = vld [vmem:[%s1 + $0x3c8] sm:$0xff]
  %v149 = vld [vmem:[%s1 + $0x3d0] sm:$0xff]
  %v150 = vld [vmem:[%s1 + $0x3d8] sm:$0xff]
  %v151 = vld [vmem:[%s1 + $0x3e0] sm:$0xff]
  %v152 = vld [vmem:[%s1 + $0x3e8] sm:$0xff]
  %v153 = vld [vmem:[%s1 + $0x3f0] sm:$0xff]
  %v154 = vld [vmem:[%s1 + $0x3f8] sm:$0xff]
  %v159 = vunpack.c.l.b16 %v23
  %v160 = vunpack.c.h.b16 %v23
  %v161 = vunpack.c.l.b16 %v24
  %v162 = vunpack.c.h.b16 %v24
  %v163 = vunpack.c.l.b16 %v25
  %v164 = vunpack.c.h.b16 %v25
  %v165 = vunpack.c.l.b16 %v26
  %v166 = vunpack.c.h.b16 %v26
  %v167 = vpack.c.b16 %v163, %v159
  %v168 = vpack.c.b16 %v164, %v160
  %v169 = vpack.c.b16 %v165, %v161
  %v170 = vpack.c.b16 %v166, %v162
  %v303 = vunpack.c.l.b16 %v27
  %v304 = vunpack.c.h.b16 %v27
  %v305 = vunpack.c.l.b16 %v28
  %v306 = vunpack.c.h.b16 %v28
  %v307 = vunpack.c.l.b16 %v29
  %v308 = vunpack.c.h.b16 %v29
  %v309 = vunpack.c.l.b16 %v30
  %v310 = vunpack.c.h.b16 %v30
  %v311 = vunpack.c.l.b16 %v31
  %v312 = vunpack.c.h.b16 %v31
  %v313 = vunpack.c.l.b16 %v32
  %v314 = vunpack.c.h.b16 %v32
  %v315 = vunpack.c.l.b16 %v33
  %v316 = vunpack.c.h.b16 %v33
  %v317 = vunpack.c.l.b16 %v34
  %v318 = vunpack.c.h.b16 %v34
  %v319 = vunpack.c.l.b16 %v35
  %v320 = vunpack.c.h.b16 %v35
  %v321 = vunpack.c.l.b16 %v36
  %v322 = vunpack.c.h.b16 %v36
  %v323 = vunpack.c.l.b16 %v37
  %v324 = vunpack.c.h.b16 %v37
  %v325 = vunpack.c.l.b16 %v38
  %v326 = vunpack.c.h.b16 %v38
  %v327 = vunpack.c.l.b16 %v39
  %v328 = vunpack.c.h.b16 %v39
  %v329 = vunpack.c.l.b16 %v40
  %v330 = vunpack.c.h.b16 %v40
  %v331 = vunpack.c.l.b16 %v41
  %v332 = vunpack.c.h.b16 %v41
  %v333 = vunpack.c.l.b16 %v42
  %v334 = vunpack.c.h.b16 %v42
  %v335 = vunpack.c.l.b16 %v43
  %v336 = vunpack.c.h.b16 %v43
  %v337 = vunpack.c.l.b16 %v44
  %v338 = vunpack.c.h.b16 %v44
  %v339 = vunpack.c.l.b16 %v45
  %v340 = vunpack.c.h.b16 %v45
  %v341 = vunpack.c.l.b16 %v46
  %v342 = vunpack.c.h.b16 %v46
  %v343 = vunpack.c.l.b16 %v47
  %v344 = vunpack.c.h.b16 %v47
  %v345 = vunpack.c.l.b16 %v48
  %v346 = vunpack.c.h.b16 %v48
  %v347 = vunpack.c.l.b16 %v49
  %v348 = vunpack.c.h.b16 %v49
  %v349 = vunpack.c.l.b16 %v50
  %v350 = vunpack.c.h.b16 %v50
  %v351 = vunpack.c.l.b16 %v51
  %v352 = vunpack.c.h.b16 %v51
  %v353 = vunpack.c.l.b16 %v52
  %v354 = vunpack.c.h.b16 %v52
  %v355 = vunpack.c.l.b16 %v53
  %v356 = vunpack.c.h.b16 %v53
  %v357 = vunpack.c.l.b16 %v54
  %v358 = vunpack.c.h.b16 %v54
  %v359 = vunpack.c.l.b16 %v55
  %v360 = vunpack.c.h.b16 %v55
  %v361 = vunpack.c.l.b16 %v56
  %v362 = vunpack.c.h.b16 %v56
  %v363 = vunpack.c.l.b16 %v57
  %v364 = vunpack.c.h.b16 %v57
  %v365 = vunpack.c.l.b16 %v58
  %v366 = vunpack.c.h.b16 %v58
  %v367 = vunpack.c.l.b16 %v59
  %v368 = vunpack.c.h.b16 %v59
  %v369 = vunpack.c.l.b16 %v60
  %v370 = vunpack.c.h.b16 %v60
  %v371 = vunpack.c.l.b16 %v61
  %v372 = vunpack.c.h.b16 %v61
  %v373 = vunpack.c.l.b16 %v62
  %v374 = vunpack.c.h.b16 %v62
  %v375 = vunpack.c.l.b16 %v63
  %v376 = vunpack.c.h.b16 %v63
  %v377 = vunpack.c.l.b16 %v64
  %v378 = vunpack.c.h.b16 %v64
  %v379 = vunpack.c.l.b16 %v65
  %v380 = vunpack.c.h.b16 %v65
  %v381 = vunpack.c.l.b16 %v66
  %v382 = vunpack.c.h.b16 %v66
  %v383 = vunpack.c.l.b16 %v67
  %v384 = vunpack.c.h.b16 %v67
  %v385 = vunpack.c.l.b16 %v68
  %v386 = vunpack.c.h.b16 %v68
  %v387 = vunpack.c.l.b16 %v69
  %v388 = vunpack.c.h.b16 %v69
  %v389 = vunpack.c.l.b16 %v70
  %v390 = vunpack.c.h.b16 %v70
  %v391 = vunpack.c.l.b16 %v71
  %v392 = vunpack.c.h.b16 %v71
  %v393 = vunpack.c.l.b16 %v72
  %v394 = vunpack.c.h.b16 %v72
  %v395 = vunpack.c.l.b16 %v73
  %v396 = vunpack.c.h.b16 %v73
  %v397 = vunpack.c.l.b16 %v74
  %v398 = vunpack.c.h.b16 %v74
  %v399 = vunpack.c.l.b16 %v75
  %v400 = vunpack.c.h.b16 %v75
  %v401 = vunpack.c.l.b16 %v76
  %v402 = vunpack.c.h.b16 %v76
  %v403 = vunpack.c.l.b16 %v77
  %v404 = vunpack.c.h.b16 %v77
  %v405 = vunpack.c.l.b16 %v78
  %v406 = vunpack.c.h.b16 %v78
  %v407 = vunpack.c.l.b16 %v79
  %v408 = vunpack.c.h.b16 %v79
  %v409 = vunpack.c.l.b16 %v80
  %v410 = vunpack.c.h.b16 %v80
  %v411 = vunpack.c.l.b16 %v81
  %v412 = vunpack.c.h.b16 %v81
  %v413 = vunpack.c.l.b16 %v82
  %v414 = vunpack.c.h.b16 %v82
  %v415 = vunpack.c.l.b16 %v83
  %v416 = vunpack.c.h.b16 %v83
  %v417 = vunpack.c.l.b16 %v84
  %v418 = vunpack.c.h.b16 %v84
  %v419 = vunpack.c.l.b16 %v85
  %v420 = vunpack.c.h.b16 %v85
  %v421 = vunpack.c.l.b16 %v86
  %v422 = vunpack.c.h.b16 %v86
  %v423 = vunpack.c.l.b16 %v87
  %v424 = vunpack.c.h.b16 %v87
  %v425 = vunpack.c.l.b16 %v88
  %v426 = vunpack.c.h.b16 %v88
  %v427 = vunpack.c.l.b16 %v89
  %v428 = vunpack.c.h.b16 %v89
  %v429 = vunpack.c.l.b16 %v90
  %v430 = vunpack.c.h.b16 %v90
  %v431 = vunpack.c.l.b16 %v91
  %v432 = vunpack.c.h.b16 %v91
  %v433 = vunpack.c.l.b16 %v92
  %v434 = vunpack.c.h.b16 %v92
  %v435 = vunpack.c.l.b16 %v93
  %v436 = vunpack.c.h.b16 %v93
  %v437 = vunpack.c.l.b16 %v94
  %v438 = vunpack.c.h.b16 %v94
  %v439 = vunpack.c.l.b16 %v95
  %v440 = vunpack.c.h.b16 %v95
  %v441 = vunpack.c.l.b16 %v96
  %v442 = vunpack.c.h.b16 %v96
  %v443 = vunpack.c.l.b16 %v97
  %v444 = vunpack.c.h.b16 %v97
  %v445 = vunpack.c.l.b16 %v98
  %v446 = vunpack.c.h.b16 %v98
  %v447 = vunpack.c.l.b16 %v99
  %v448 = vunpack.c.h.b16 %v99
  %v449 = vunpack.c.l.b16 %v100
  %v450 = vunpack.c.h.b16 %v100
  %v451 = vunpack.c.l.b16 %v101
  %v452 = vunpack.c.h.b16 %v101
  %v453 = vunpack.c.l.b16 %v102
  %v454 = vunpack.c.h.b16 %v102
  %v455 = vunpack.c.l.b16 %v103
  %v456 = vunpack.c.h.b16 %v103
  %v457 = vunpack.c.l.b16 %v104
  %v458 = vunpack.c.h.b16 %v104
  %v459 = vunpack.c.l.b16 %v105
  %v460 = vunpack.c.h.b16 %v105
  %v461 = vunpack.c.l.b16 %v106
  %v462 = vunpack.c.h.b16 %v106
  %v463 = vunpack.c.l.b16 %v107
  %v464 = vunpack.c.h.b16 %v107
  %v465 = vunpack.c.l.b16 %v108
  %v466 = vunpack.c.h.b16 %v108
  %v467 = vunpack.c.l.b16 %v109
  %v468 = vunpack.c.h.b16 %v109
  %v469 = vunpack.c.l.b16 %v110
  %v470 = vunpack.c.h.b16 %v110
  %v471 = vunpack.c.l.b16 %v111
  %v472 = vunpack.c.h.b16 %v111
  %v473 = vunpack.c.l.b16 %v112
  %v474 = vunpack.c.h.b16 %v112
  %v475 = vunpack.c.l.b16 %v113
  %v476 = vunpack.c.h.b16 %v113
  %v477 = vunpack.c.l.b16 %v114
  %v478 = vunpack.c.h.b16 %v114
  %v479 = vunpack.c.l.b16 %v115
  %v480 = vunpack.c.h.b16 %v115
  %v481 = vunpack.c.l.b16 %v116
  %v482 = vunpack.c.h.b16 %v116
  %v483 = vunpack.c.l.b16 %v117
  %v484 = vunpack.c.h.b16 %v117
  %v485 = vunpack.c.l.b16 %v118
  %v486 = vunpack.c.h.b16 %v118
  %v487 = vunpack.c.l.b16 %v119
  %v488 = vunpack.c.h.b16 %v119
  %v489 = vunpack.c.l.b16 %v120
  %v490 = vunpack.c.h.b16 %v120
  %v491 = vunpack.c.l.b16 %v121
  %v492 = vunpack.c.h.b16 %v121
  %v493 = vunpack.c.l.b16 %v122
  %v494 = vunpack.c.h.b16 %v122
  %v495 = vunpack.c.l.b16 %v123
  %v496 = vunpack.c.h.b16 %v123
  %v497 = vunpack.c.l.b16 %v124
  %v498 = vunpack.c.h.b16 %v124
  %v499 = vunpack.c.l.b16 %v125
  %v500 = vunpack.c.h.b16 %v125
  %v501 = vunpack.c.l.b16 %v126
  %v502 = vunpack.c.h.b16 %v126
  %v503 = vunpack.c.l.b16 %v127
  %v504 = vunpack.c.h.b16 %v127
  %v505 = vunpack.c.l.b16 %v128
  %v506 = vunpack.c.h.b16 %v128
  %v507 = vunpack.c.l.b16 %v129
  %v508 = vunpack.c.h.b16 %v129
  %v509 = vunpack.c.l.b16 %v130
  %v510 = vunpack.c.h.b16 %v130
  %v511 = vunpack.c.l.b16 %v131
  %v512 = vunpack.c.h.b16 %v131
  %v513 = vunpack.c.l.b16 %v132
  %v514 = vunpack.c.h.b16 %v132
  %v515 = vunpack.c.l.b16 %v133
  %v516 = vunpack.c.h.b16 %v133
  %v517 = vunpack.c.l.b16 %v134
  %v518 = vunpack.c.h.b16 %v134
  %v519 = vunpack.c.l.b16 %v135
  %v520 = vunpack.c.h.b16 %v135
  %v521 = vunpack.c.l.b16 %v136
  %v522 = vunpack.c.h.b16 %v136
  %v523 = vunpack.c.l.b16 %v137
  %v524 = vunpack.c.h.b16 %v137
  %v525 = vunpack.c.l.b16 %v138
  %v526 = vunpack.c.h.b16 %v138
  %v527 = vunpack.c.l.b16 %v139
  %v528 = vunpack.c.h.b16 %v139
  %v529 = vunpack.c.l.b16 %v140
  %v530 = vunpack.c.h.b16 %v140
  %v531 = vunpack.c.l.b16 %v141
  %v532 = vunpack.c.h.b16 %v141
  %v533 = vunpack.c.l.b16 %v142
  %v534 = vunpack.c.h.b16 %v142
  %v535 = vunpack.c.l.b16 %v143
  %v536 = vunpack.c.h.b16 %v143
  %v537 = vunpack.c.l.b16 %v144
  %v538 = vunpack.c.h.b16 %v144
  %v539 = vunpack.c.l.b16 %v145
  %v540 = vunpack.c.h.b16 %v145
  %v541 = vunpack.c.l.b16 %v146
  %v542 = vunpack.c.h.b16 %v146
  %v543 = vunpack.c.l.b16 %v147
  %v544 = vunpack.c.h.b16 %v147
  %v545 = vunpack.c.l.b16 %v148
  %v546 = vunpack.c.h.b16 %v148
  %v547 = vunpack.c.l.b16 %v149
  %v548 = vunpack.c.h.b16 %v149
  %v549 = vunpack.c.l.b16 %v150
  %v550 = vunpack.c.h.b16 %v150
  %v551 = vunpack.c.l.b16 %v151
  %v552 = vunpack.c.h.b16 %v151
  %v553 = vunpack.c.l.b16 %v152
  %v554 = vunpack.c.h.b16 %v152
  %v555 = vunpack.c.l.b16 %v153
  %v556 = vunpack.c.h.b16 %v153
  %v557 = vunpack.c.l.b16 %v154
  %v558 = vunpack.c.h.b16 %v154
  %v559 = vpack.c.b16 %v307, %v303
  %v560 = vpack.c.b16 %v308, %v304
  %v561 = vpack.c.b16 %v309, %v305
  %v562 = vpack.c.b16 %v310, %v306
  %v563 = vpack.c.b16 %v315, %v311
  %v564 = vpack.c.b16 %v316, %v312
  %v565 = vpack.c.b16 %v317, %v313
  %v566 = vpack.c.b16 %v318, %v314
  %v567 = vpack.c.b16 %v323, %v319
  %v568 = vpack.c.b16 %v324, %v320
  %v569 = vpack.c.b16 %v325, %v321
  %v570 = vpack.c.b16 %v326, %v322
  %v571 = vpack.c.b16 %v331, %v327
  %v572 = vpack.c.b16 %v332, %v328
  %v573 = vpack.c.b16 %v333, %v329
  %v574 = vpack.c.b16 %v334, %v330
  %v575 = vpack.c.b16 %v339, %v335
  %v576 = vpack.c.b16 %v340, %v336
  %v577 = vpack.c.b16 %v341, %v337
  %v578 = vpack.c.b16 %v342, %v338
  %v579 = vpack.c.b16 %v347, %v343
  %v580 = vpack.c.b16 %v348, %v344
  %v581 = vpack.c.b16 %v349, %v345
  %v582 = vpack.c.b16 %v350, %v346
  %v583 = vpack.c.b16 %v355, %v351
  %v584 = vpack.c.b16 %v356, %v352
  %v585 = vpack.c.b16 %v357, %v353
  %v586 = vpack.c.b16 %v358, %v354
  %v587 = vpack.c.b16 %v363, %v359
  %v588 = vpack.c.b16 %v364, %v360
  %v589 = vpack.c.b16 %v365, %v361
  %v590 = vpack.c.b16 %v366, %v362
  %v591 = vpack.c.b16 %v371, %v367
  %v592 = vpack.c.b16 %v372, %v368
  %v593 = vpack.c.b16 %v373, %v369
  %v594 = vpack.c.b16 %v374, %v370
  %v595 = vpack.c.b16 %v379, %v375
  %v596 = vpack.c.b16 %v380, %v376
  %v597 = vpack.c.b16 %v381, %v377
  %v598 = vpack.c.b16 %v382, %v378
  %v599 = vpack.c.b16 %v387, %v383
  %v600 = vpack.c.b16 %v388, %v384
  %v601 = vpack.c.b16 %v389, %v385
  %v602 = vpack.c.b16 %v390, %v386
  %v603 = vpack.c.b16 %v395, %v391
  %v604 = vpack.c.b16 %v396, %v392
  %v605 = vpack.c.b16 %v397, %v393
  %v606 = vpack.c.b16 %v398, %v394
  %v607 = vpack.c.b16 %v403, %v399
  %v608 = vpack.c.b16 %v404, %v400
  %v609 = vpack.c.b16 %v405, %v401
  %v610 = vpack.c.b16 %v406, %v402
  %v611 = vpack.c.b16 %v411, %v407
  %v612 = vpack.c.b16 %v412, %v408
  %v613 = vpack.c.b16 %v413, %v409
  %v614 = vpack.c.b16 %v414, %v410
  %v615 = vpack.c.b16 %v419, %v415
  %v616 = vpack.c.b16 %v420, %v416
  %v617 = vpack.c.b16 %v421, %v417
  %v618 = vpack.c.b16 %v422, %v418
  %v619 = vpack.c.b16 %v427, %v423
  %v620 = vpack.c.b16 %v428, %v424
  %v621 = vpack.c.b16 %v429, %v425
  %v622 = vpack.c.b16 %v430, %v426
  %v623 = vpack.c.b16 %v435, %v431
  %v624 = vpack.c.b16 %v436, %v432
  %v625 = vpack.c.b16 %v437, %v433
  %v626 = vpack.c.b16 %v438, %v434
  %v627 = vpack.c.b16 %v443, %v439
  %v628 = vpack.c.b16 %v444, %v440
  %v629 = vpack.c.b16 %v445, %v441
  %v630 = vpack.c.b16 %v446, %v442
  %v631 = vpack.c.b16 %v451, %v447
  %v632 = vpack.c.b16 %v452, %v448
  %v633 = vpack.c.b16 %v453, %v449
  %v634 = vpack.c.b16 %v454, %v450
  %v635 = vpack.c.b16 %v459, %v455
  %v636 = vpack.c.b16 %v460, %v456
  %v637 = vpack.c.b16 %v461, %v457
  %v638 = vpack.c.b16 %v462, %v458
  %v639 = vpack.c.b16 %v467, %v463
  %v640 = vpack.c.b16 %v468, %v464
  %v641 = vpack.c.b16 %v469, %v465
  %v642 = vpack.c.b16 %v470, %v466
  %v643 = vpack.c.b16 %v475, %v471
  %v644 = vpack.c.b16 %v476, %v472
  %v645 = vpack.c.b16 %v477, %v473
  %v646 = vpack.c.b16 %v478, %v474
  %v647 = vpack.c.b16 %v483, %v479
  %v648 = vpack.c.b16 %v484, %v480
  %v649 = vpack.c.b16 %v485, %v481
  %v650 = vpack.c.b16 %v486, %v482
  %v651 = vpack.c.b16 %v491, %v487
  %v652 = vpack.c.b16 %v492, %v488
  %v653 = vpack.c.b16 %v493, %v489
  %v654 = vpack.c.b16 %v494, %v490
  %v655 = vpack.c.b16 %v499, %v495
  %v656 = vpack.c.b16 %v500, %v496
  %v657 = vpack.c.b16 %v501, %v497
  %v658 = vpack.c.b16 %v502, %v498
  %v659 = vpack.c.b16 %v507, %v503
  %v660 = vpack.c.b16 %v508, %v504
  %v661 = vpack.c.b16 %v509, %v505
  %v662 = vpack.c.b16 %v510, %v506
  %v663 = vpack.c.b16 %v515, %v511
  %v664 = vpack.c.b16 %v516, %v512
  %v665 = vpack.c.b16 %v517, %v513
  %v666 = vpack.c.b16 %v518, %v514
  %v667 = vpack.c.b16 %v523, %v519
  %v668 = vpack.c.b16 %v524, %v520
  %v669 = vpack.c.b16 %v525, %v521
  %v670 = vpack.c.b16 %v526, %v522
  %v671 = vpack.c.b16 %v531, %v527
  %v672 = vpack.c.b16 %v532, %v528
  %v673 = vpack.c.b16 %v533, %v529
  %v674 = vpack.c.b16 %v534, %v530
  %v675 = vpack.c.b16 %v539, %v535
  %v676 = vpack.c.b16 %v540, %v536
  %v677 = vpack.c.b16 %v541, %v537
  %v678 = vpack.c.b16 %v542, %v538
  %v679 = vpack.c.b16 %v547, %v543
  %v680 = vpack.c.b16 %v548, %v544
  %v681 = vpack.c.b16 %v549, %v545
  %v682 = vpack.c.b16 %v550, %v546
  %v683 = vpack.c.b16 %v555, %v551
  %v684 = vpack.c.b16 %v556, %v552
  %v685 = vpack.c.b16 %v557, %v553
  %v686 = vpack.c.b16 %v558, %v554
  %815 = vmatprep.subr.bf16.mxu0 %v560
  %816 = vmatpush1.bf16.msra.mxu0 %v559
  %817 = vmatprep.subr.bf16.mxu0 %v564
  %818 = vmatpush1.bf16.msra.mxu0 %v563
  %819 = vmatprep.subr.bf16.mxu0 %v568
  %820 = vmatpush1.bf16.msra.mxu0 %v567
  %821 = vmatprep.subr.bf16.mxu0 %v572
  %822 = vmatpush1.bf16.msra.mxu0 %v571
  %823 = vmatprep.subr.bf16.mxu0 %v576
  %824 = vmatpush1.bf16.msra.mxu0 %v575
  %825 = vmatprep.subr.bf16.mxu0 %v580
  %826 = vmatpush1.bf16.msra.mxu0 %v579
  %827 = vmatprep.subr.bf16.mxu0 %v584
  %828 = vmatpush1.bf16.msra.mxu0 %v583
  %829 = vmatprep.subr.bf16.mxu0 %v588
  %830 = vmatpush1.bf16.msra.mxu0 %v587
  %831 = vmatprep.subr.bf16.mxu0 %v592
  %832 = vmatpush1.bf16.msra.mxu0 %v591
  %833 = vmatprep.subr.bf16.mxu0 %v596
  %834 = vmatpush1.bf16.msra.mxu0 %v595
  %835 = vmatprep.subr.bf16.mxu0 %v600
  %836 = vmatpush1.bf16.msra.mxu0 %v599
  %837 = vmatprep.subr.bf16.mxu0 %v604
  %838 = vmatpush1.bf16.msra.mxu0 %v603
  %839 = vmatprep.subr.bf16.mxu0 %v608
  %840 = vmatpush1.bf16.msra.mxu0 %v607
  %841 = vmatprep.subr.bf16.mxu0 %v612
  %842 = vmatpush1.bf16.msra.mxu0 %v611
  %843 = vmatprep.subr.bf16.mxu0 %v616
  %844 = vmatpush1.bf16.msra.mxu0 %v615
  %845 = vmatprep.subr.bf16.mxu0 %v620
  %846 = vmatpush1.bf16.msra.mxu0 %v619
  %847 = vmatprep.mubr.bf16.mxu0 %v168
  %848 = vmatmul.mubr.bf16.gmra.mrb[0].mxu0 %v167
  %v849 = vpop.f32.mrb[0].mxu0
  %v850 = vadd.f32 0.0, %v849
  %v851 = vpop.f32.mrb[0].mxu0
  %v852 = vadd.f32 0.0, %v851
  %v853 = vpop.f32.mrb[0].mxu0
  %v854 = vadd.f32 0.0, %v853
  %v855 = vpop.f32.mrb[0].mxu0
  %v856 = vadd.f32 0.0, %v855
  %857 = vdwg.mxu0
  %858 = vmatprep.subr.bf16.mxu0 %v624
  %859 = vmatpush1.bf16.msra.mxu0 %v623
  %860 = vmatprep.subr.bf16.mxu0 %v628
  %861 = vmatpush1.bf16.msra.mxu0 %v627
  %862 = vmatprep.subr.bf16.mxu0 %v632
  %863 = vmatpush1.bf16.msra.mxu0 %v631
  %864 = vmatprep.subr.bf16.mxu0 %v636
  %865 = vmatpush1.bf16.msra.mxu0 %v635
  %866 = vmatprep.subr.bf16.mxu0 %v640
  %867 = vmatpush1.bf16.msra.mxu0 %v639
  %868 = vmatprep.subr.bf16.mxu0 %v644
  %869 = vmatpush1.bf16.msra.mxu0 %v643
  %870 = vmatprep.subr.bf16.mxu0 %v648
  %871 = vmatpush1.bf16.msra.mxu0 %v647
  %872 = vmatprep.subr.bf16.mxu0 %v652
  %873 = vmatpush1.bf16.msra.mxu0 %v651
  %874 = vmatprep.subr.bf16.mxu0 %v656
  %875 = vmatpush1.bf16.msra.mxu0 %v655
  %876 = vmatprep.subr.bf16.mxu0 %v660
  %877 = vmatpush1.bf16.msra.mxu0 %v659
  %878 = vmatprep.subr.bf16.mxu0 %v664
  %879 = vmatpush1.bf16.msra.mxu0 %v663
  %880 = vmatprep.subr.bf16.mxu0 %v668
  %881 = vmatpush1.bf16.msra.mxu0 %v667
  %882 = vmatprep.subr.bf16.mxu0 %v672
  %883 = vmatpush1.bf16.msra.mxu0 %v671
  %884 = vmatprep.subr.bf16.mxu0 %v676
  %885 = vmatpush1.bf16.msra.mxu0 %v675
  %886 = vmatprep.subr.bf16.mxu0 %v680
  %887 = vmatpush1.bf16.msra.mxu0 %v679
  %888 = vmatprep.subr.bf16.mxu0 %v684
  %889 = vmatpush1.bf16.msra.mxu0 %v683
  %890 = vmatprep.mubr.bf16.mxu0 %v170
  %891 = vmatmul.mubr.bf16.gmra.mrb[0].mxu0 %v169
  %v892 = vpop.f32.mrb[0].mxu0
  %v893 = vadd.f32 %v850, %v892
  %v894 = vpop.f32.mrb[0].mxu0
  %v895 = vadd.f32 %v852, %v894
  %v896 = vpop.f32.mrb[0].mxu0
  %v897 = vadd.f32 %v854, %v896
  %v898 = vpop.f32.mrb[0].mxu0
  %v899 = vadd.f32 %v856, %v898
  %900 = vdwg.mxu0
  %901 = vmatprep.subr.bf16.mxu0 %v562
  %902 = vmatpush1.bf16.msra.mxu0 %v561
  %903 = vmatprep.subr.bf16.mxu0 %v566
  %904 = vmatpush1.bf16.msra.mxu0 %v565
  %905 = vmatprep.subr.bf16.mxu0 %v570
  %906 = vmatpush1.bf16.msra.mxu0 %v569
  %907 = vmatprep.subr.bf16.mxu0 %v574
  %908 = vmatpush1.bf16.msra.mxu0 %v573
  %909 = vmatprep.subr.bf16.mxu0 %v578
  %910 = vmatpush1.bf16.msra.mxu0 %v577
  %911 = vmatprep.subr.bf16.mxu0 %v582
  %912 = vmatpush1.bf16.msra.mxu0 %v581
  %913 = vmatprep.subr.bf16.mxu0 %v586
  %914 = vmatpush1.bf16.msra.mxu0 %v585
  %915 = vmatprep.subr.bf16.mxu0 %v590
  %916 = vmatpush1.bf16.msra.mxu0 %v589
  %917 = vmatprep.subr.bf16.mxu0 %v594
  %918 = vmatpush1.bf16.msra.mxu0 %v593
  %919 = vmatprep.subr.bf16.mxu0 %v598
  %920 = vmatpush1.bf16.msra.mxu0 %v597
  %921 = vmatprep.subr.bf16.mxu0 %v602
  %922 = vmatpush1.bf16.msra.mxu0 %v601
  %923 = vmatprep.subr.bf16.mxu0 %v606
  %924 = vmatpush1.bf16.msra.mxu0 %v605
  %925 = vmatprep.subr.bf16.mxu0 %v610
  %926 = vmatpush1.bf16.msra.mxu0 %v609
  %927 = vmatprep.subr.bf16.mxu0 %v614
  %928 = vmatpush1.bf16.msra.mxu0 %v613
  %929 = vmatprep.subr.bf16.mxu0 %v618
  %930 = vmatpush1.bf16.msra.mxu0 %v617
  %931 = vmatprep.subr.bf16.mxu0 %v622
  %932 = vmatpush1.bf16.msra.mxu0 %v621
  %933 = vmatprep.mubr.bf16.mxu0 %v168
  %934 = vmatmul.mubr.bf16.gmra.mrb[0].mxu0 %v167
  %v935 = vpop.f32.mrb[0].mxu0
  %v936 = vadd.f32 0.0, %v935
  %v937 = vpop.f32.mrb[0].mxu0
  %v938 = vadd.f32 0.0, %v937
  %v939 = vpop.f32.mrb[0].mxu0
  %v940 = vadd.f32 0.0, %v939
  %v941 = vpop.f32.mrb[0].mxu0
  %v942 = vadd.f32 0.0, %v941
  %943 = vdwg.mxu0
  %944 = vmatprep.subr.bf16.mxu0 %v626
  %945 = vmatpush1.bf16.msra.mxu0 %v625
  %946 = vmatprep.subr.bf16.mxu0 %v630
  %947 = vmatpush1.bf16.msra.mxu0 %v629
  %948 = vmatprep.subr.bf16.mxu0 %v634
  %949 = vmatpush1.bf16.msra.mxu0 %v633
  %950 = vmatprep.subr.bf16.mxu0 %v638
  %951 = vmatpush1.bf16.msra.mxu0 %v637
  %952 = vmatprep.subr.bf16.mxu0 %v642
  %953 = vmatpush1.bf16.msra.mxu0 %v641
  %954 = vmatprep.subr.bf16.mxu0 %v646
  %955 = vmatpush1.bf16.msra.mxu0 %v645
  %956 = vmatprep.subr.bf16.mxu0 %v650
  %957 = vmatpush1.bf16.msra.mxu0 %v649
  %958 = vmatprep.subr.bf16.mxu0 %v654
  %959 = vmatpush1.bf16.msra.mxu0 %v653
  %960 = vmatprep.subr.bf16.mxu0 %v658
  %961 = vmatpush1.bf16.msra.mxu0 %v657
  %962 = vmatprep.subr.bf16.mxu0 %v662
  %963 = vmatpush1.bf16.msra.mxu0 %v661
  %964 = vmatprep.subr.bf16.mxu0 %v666
  %965 = vmatpush1.bf16.msra.mxu0 %v665
  %966 = vmatprep.subr.bf16.mxu0 %v670
  %967 = vmatpush1.bf16.msra.mxu0 %v669
  %968 = vmatprep.subr.bf16.mxu0 %v674
  %969 = vmatpush1.bf16.msra.mxu0 %v673
  %970 = vmatprep.subr.bf16.mxu0 %v678
  %971 = vmatpush1.bf16.msra.mxu0 %v677
  %972 = vmatprep.subr.bf16.mxu0 %v682
  %973 = vmatpush1.bf16.msra.mxu0 %v681
  %974 = vmatprep.subr.bf16.mxu0 %v686
  %975 = vmatpush1.bf16.msra.mxu0 %v685
  %976 = vmatprep.mubr.bf16.mxu0 %v170
  %977 = vmatmul.mubr.bf16.gmra.mrb[0].mxu0 %v169
  %v978 = vpop.f32.mrb[0].mxu0
  %v979 = vadd.f32 %v936, %v978
  %v980 = vpop.f32.mrb[0].mxu0
  %v981 = vadd.f32 %v938, %v980
  %v982 = vpop.f32.mrb[0].mxu0
  %v983 = vadd.f32 %v940, %v982
  %v984 = vpop.f32.mrb[0].mxu0
  %v985 = vadd.f32 %v942, %v984
  %986 = vdwg.mxu0
  %987 = vst [vmem:[%s2] sm:$0xff] %v893
  %988 = vst [vmem:[%s2 + $0x8] sm:$0xff] %v895
  %989 = vst [vmem:[%s2 + $0x10] sm:$0xff] %v979
  %990 = vst [vmem:[%s2 + $0x18] sm:$0xff] %v981
  %991 = vst [vmem:[%s2 + $0x20] sm:$0xff] %v897
  %992 = vst [vmem:[%s2 + $0x28] sm:$0xff] %v899
  %993 = vst [vmem:[%s2 + $0x30] sm:$0xff] %v983
  %994 = vst [vmem:[%s2 + $0x38] sm:$0xff] %v985
  %v995 = vld [vmem:[%s3] sm:$0xff]
  %v996 = vld [vmem:[%s3 + $0x8] sm:$0xff]
  %v997 = vadd.f32 %v893, %v895
  %v998 = vadd.f32 %v997, %v979
  %v999 = vadd.f32 %v998, %v981
  %1000 = vadd.xlane.f32.xlu0 %v999
  %v1001 = vpop.xlane.xlu0 %1000
  %v1002 = vadd.f32 %v897, %v899
  %v1003 = vadd.f32 %v1002, %v983
  %v1004 = vadd.f32 %v1003, %v985
  %1005 = vadd.xlane.f32.xlu0 %v1004
  %v1006 = vpop.xlane.xlu0 %1005
  %v1007 = vadd.f32 %v995, %v1001
  %v1008 = vadd.f32 %v996, %v1006
  %vm1009 = vcmask 7168
  %1010 = vst.msk [vmem:[%s3] sm:$0xff] %vm1009, %v1007
  %1011 = vst.msk [vmem:[%s3 + $0x8] sm:$0xff] %vm1009, %v1008
  %v1012 = vld [vmem:[%s4] sm:$0xff]
  %v1013 = vld [vmem:[%s4 + $0x8] sm:$0xff]
  %v1014 = vmul.f32 %v893, %v893
  %v1015 = vmul.f32 %v895, %v895
  %v1016 = vmul.f32 %v979, %v979
  %v1017 = vmul.f32 %v981, %v981
  %v1018 = vmul.f32 %v897, %v897
  %v1019 = vmul.f32 %v899, %v899
  %v1020 = vmul.f32 %v983, %v983
  %v1021 = vmul.f32 %v985, %v985
  %v1022 = vadd.f32 %v1014, %v1015
  %v1023 = vadd.f32 %v1022, %v1016
  %v1024 = vadd.f32 %v1023, %v1017
  %1025 = vadd.xlane.f32.xlu0 %v1024
  %v1026 = vpop.xlane.xlu0 %1025
  %v1027 = vadd.f32 %v1018, %v1019
  %v1028 = vadd.f32 %v1027, %v1020
  %v1029 = vadd.f32 %v1028, %v1021
  %1030 = vadd.xlane.f32.xlu0 %v1029
  %v1031 = vpop.xlane.xlu0 %1030
  %v1032 = vadd.f32 %v1012, %v1026
  %v1033 = vadd.f32 %v1013, %v1031
  %1034 = vst.msk [vmem:[%s4] sm:$0xff] %vm1009, %v1032
  %1035 = vst.msk [vmem:[%s4 + $0x8] sm:$0xff] %vm1009, %v1033
  // Predicated region
  $region14: #{generator_forward.13} parent=0 // pred_check
    _
  $region15: #{generator_forward.13} parent=0 // pred_check_branch
    %1037 = sbr.rel (0) target = $region17
  $region16: #{generator_forward.13} parent=0 // pred_region
    _
  $region17: #{generator_forward.13} parent=0 // pred_fallthru
    _
  // Predicated region
  $region18: #{generator_forward.13} parent=0 // pred_check
    _
  $region19: #{generator_forward.13} parent=0 // pred_check_branch
    %1039 = sbr.rel (0) target = $region21
  $region20: #{generator_forward.13} parent=0 // pred_region
    _
  $region21: #{generator_forward.13} parent=0 // pred_fallthru
    _
  // Predicated region
  $region22: #{generator_forward.13} parent=0 // pred_check
    _
  $region23: #{generator_forward.13} parent=0 // pred_check_branch
    %1041 = sbr.rel (0) target = $region25
  $region24: #{generator_forward.13} parent=0 // pred_region
    _
  $region25: #{generator_forward.13} parent=0 // pred_fallthru
    _
  // Predicated region
  $region26: #{generator_forward.13} parent=0 // pred_check
    _
  $region27: #{generator_forward.13} parent=0 // pred_check_branch
    %1043 = sbr.rel (0) target = $region29
  $region28: #{generator_forward.13} parent=0 // pred_region
    _
  $region29: #{generator_forward.13} parent=0 // pred_fallthru
    _
  // Predicated region
  $region30: #{generator_forward.13} parent=0 // pred_check
    _
  $region31: #{generator_forward.13} parent=0 // pred_check_branch
    %1045 = sbr.rel (0) target = $region33
  $region32: #{generator_forward.13} parent=0 // pred_region
    _
  $region33: #{generator_forward.13} parent=0 // pred_fallthru
    _
  // Predicated region
  $region34: #{generator_forward.13} parent=0 // pred_check
    _
  $region35: #{generator_forward.13} parent=0 // pred_check_branch
    %1047 = sbr.rel (0) target = $region37
  $region36: #{generator_forward.13} parent=0 // pred_region
    _
  $region37: #{generator_forward.13} parent=0 // pred_fallthru
    _

// kernel: generator_forward.15
$region0: #{generator_forward.15}
  #allocation0 [shape = 'u32[]', space=smem, size = 0x4, offset = 0x4, fixed_abs, tag = 'smem constant byte address 0x4 - core index']
  #allocation1 [shape = 'u32[144,128]{1,0:T(1,128)}', space=vmem, size = 0x12000, scoped, tag = 'internal scratch']
  %s0 = inlined_call_operand.vmem [shape: bf16[8,256], index: 0, kind: input, shape index: {}]
  %s1 = inlined_call_operand.vmem [shape: bf16[256,2048], index: 1, kind: input, shape index: {}]
  %s2 = inlined_call_operand.vmem [shape: f32[8,2048], index: 2, kind: output, shape index: {0}]
  %s3 = inlined_call_operand.vmem [shape: f32[8,1], index: 3, kind: output, shape index: {1}]
  %s4 = inlined_call_operand.vmem [shape: f32[8,1], index: 4, kind: output, shape index: {2}]
  %5 = xla_tuple %s2, %s3, %s4
  %s6 = sld [smem:[#allocation0]]
  $region84: #{generator_forward.15} parent=0
    _
  %s8 = ssub.s32 1, %s6
  %s9 = scalar_select 0, %s8, %s6
  $region1: #{generator_forward.15} parent=0
    #allocation2 [shape = 'u8[524288]{0}', space=vmem, size = 0x80000, scoped, tag = 'input window, operand 1']
    loop: start=0, step=1, limit=6
    $region2: #{generator_forward.15} parent=1 // loop_pre_header
      _
    $region3: #{generator_forward.15} parent=1 // loop_header
      %s11 = sphi 0, %s15
      %p12 = scmp.ge.s32.totalorder %s11, 6
      %s19 = sphi 0, %s19
      %s21 = sphi 0, %s19
      %s22 = sphi 0, %s21
      %s36 = sphi 0, %s22
      %s42 = sphi 0, %s44
      %s45 = sphi 0, %s42
      %s46 = sphi 0, %s45
      %s62 = sphi 0, %s46
      %s68 = sphi 0, %s70
      %s71 = sphi 0, %s68
      %s72 = sphi 0, %s71
      %s88 = sphi 0, %s72
      %s92 = sphi 0, %s92
      %s94 = sphi 0, %s92
      %s95 = sphi 0, %s94
      %s109 = sphi 0, %s95
      %s113 = sphi 0, %s113
      %s115 = sphi 0, %s113
      %s116 = sphi 0, %s115
      %s130 = sphi 0, %s116
    $region4: #{generator_forward.15} parent=1 // loop_header_branch
      %14 = sbr.rel (%p12) target = $region8
    $region5: #{generator_forward.15} parent=1 // loop_body
      %s16 = ssub.s32 %s11, 1
      %s17 = ssub.s32 %s11, 2
      %s18 = sadd.s32 %s11, 1
      %s20 = sadd.s32 %s19, 1
      %p23 = scmp.eq.s32.totalorder %s11, 3
      %p24 = scmp.ne.s32.totalorder %s19, %s21
      %p25 = scmp.eq.s32.totalorder %s11, 0
      %p26 = por %p24, %p25
      %p27 = scmp.ne.s32.totalorder %s19, %s21
      %p28 = scmp.eq.s32.totalorder %s16, 3
      %p29 = por %p27, %p28
      %p30 = scmp.ne.s32.totalorder %s21, %s22
      %p31 = scmp.eq.s32.totalorder %s16, 0
      %p32 = por %p30, %p31
      %p33 = scmp.ne.s32.totalorder %s21, %s22
      %p34 = scmp.eq.s32.totalorder %s17, 3
      %p35 = por %p33, %p34
      %p37 = scmp.ne.s32.totalorder %s22, %s36
      %p38 = scmp.eq.s32.totalorder %s17, 0
      %p39 = por %p37, %p38
      %s40 = ssub.s32 %s11, %s18
      %p41 = scmp.eq.s32.totalorder %s40, 0
      %s43 = sadd.s32 %s42, 1
      %s44 = scalar_select %p41, %s42, %s43
      %p47 = pneg %p41
      %p48 = scmp.eq.s32.totalorder %s11, 3
      %p49 = por %p47, %p48
      %p50 = scmp.ne.s32.totalorder %s42, %s45
      %p51 = scmp.eq.s32.totalorder %s11, 0
      %p52 = por %p50, %p51
      %p53 = scmp.ne.s32.totalorder %s42, %s45
      %p54 = scmp.eq.s32.totalorder %s16, 3
      %p55 = por %p53, %p54
      %p56 = scmp.ne.s32.totalorder %s45, %s46
      %p57 = scmp.eq.s32.totalorder %s16, 0
      %p58 = por %p56, %p57
      %p59 = scmp.ne.s32.totalorder %s45, %s46
      %p60 = scmp.eq.s32.totalorder %s17, 3
      %p61 = por %p59, %p60
      %p63 = scmp.ne.s32.totalorder %s46, %s62
      %p64 = scmp.eq.s32.totalorder %s17, 0
      %p65 = por %p63, %p64
      %s66 = ssub.s32 %s11, %s18
      %p67 = scmp.eq.s32.totalorder %s66, 0
      %s69 = sadd.s32 %s68, 1
      %s70 = scalar_select %p67, %s68, %s69
      %p73 = pneg %p67
      %p74 = scmp.eq.s32.totalorder %s11, 3
      %p75 = por %p73, %p74
      %p76 = scmp.ne.s32.totalorder %s68, %s71
      %p77 = scmp.eq.s32.totalorder %s11, 0
      %p78 = por %p76, %p77
      %p79 = scmp.ne.s32.totalorder %s68, %s71
      %p80 = scmp.eq.s32.totalorder %s16, 3
      %p81 = por %p79, %p80
      %p82 = scmp.ne.s32.totalorder %s71, %s72
      %p83 = scmp.eq.s32.totalorder %s16, 0
      %p84 = por %p82, %p83
      %p85 = scmp.ne.s32.totalorder %s71, %s72
      %p86 = scmp.eq.s32.totalorder %s17, 3
      %p87 = por %p85, %p86
      %p89 = scmp.ne.s32.totalorder %s72, %s88
      %p90 = scmp.eq.s32.totalorder %s17, 0
      %p91 = por %p89, %p90
      %s93 = sadd.s32 %s92, 1
      %p96 = scmp.eq.s32.totalorder %s11, 3
      %p97 = scmp.ne.s32.totalorder %s92, %s94
      %p98 = scmp.eq.s32.totalorder %s11, 0
      %p99 = por %p97, %p98
      %p100 = scmp.ne.s32.totalorder %s92, %s94
      %p101 = scmp.eq.s32.totalorder %s16, 3
      %p102 = por %p100, %p101
      %p103 = scmp.ne.s32.totalorder %s94, %s95
      %p104 = scmp.eq.s32.totalorder %s16, 0
      %p105 = por %p103, %p104
      %p106 = scmp.ne.s32.totalorder %s94, %s95
      %p107 = scmp.eq.s32.totalorder %s17, 3
      %p108 = por %p106, %p107
      %p110 = scmp.ne.s32.totalorder %s95, %s109
      %p111 = scmp.eq.s32.totalorder %s17, 0
      %p112 = por %p110, %p111
      %s114 = sadd.s32 %s113, 1
      %p117 = scmp.eq.s32.totalorder %s11, 3
      %p118 = scmp.ne.s32.totalorder %s113, %s115
      %p119 = scmp.eq.s32.totalorder %s11, 0
      %p120 = por %p118, %p119
      %p121 = scmp.ne.s32.totalorder %s113, %s115
      %p122 = scmp.eq.s32.totalorder %s16, 3
      %p123 = por %p121, %p122
      %p124 = scmp.ne.s32.totalorder %s115, %s116
      %p125 = scmp.eq.s32.totalorder %s16, 0
      %p126 = por %p124, %p125
      %p127 = scmp.ne.s32.totalorder %s115, %s116
      %p128 = scmp.eq.s32.totalorder %s17, 3
      %p129 = por %p127, %p128
      %p131 = scmp.ne.s32.totalorder %s116, %s130
      %p132 = scmp.eq.s32.totalorder %s17, 0
      %p133 = por %p131, %p132
      %p134 = scmp.le.s32.totalorder 1, %s11
      %p135 = scmp.lt.s32.totalorder %s11, 5
      %p136 = pnand %p134, %p135
      %p137 = pneg %p136
      // Predicated region
      $region9: #{generator_forward.15} parent=5 // pred_check
        _
      $region10: #{generator_forward.15} parent=5 // pred_check_branch
        %139 = sbr.rel (%p136) target = $region12
      $region11: #{generator_forward.15} parent=5 // pred_region
        %s140 = ssub.s32 %s11, 1
        // Predicated region
        $region13: #{generator_forward.15} parent=11 // pred_check
          %p141 = pneg %p32
        $region14: #{generator_forward.15} parent=11 // pred_check_branch
          %143 = sbr.rel (%p141) target = $region16
        $region15: #{generator_forward.15} parent=11 // pred_region
          _
        $region16: #{generator_forward.15} parent=11 // pred_fallthru
          _
      $region12: #{generator_forward.15} parent=5 // pred_fallthru
        _
      %p144 = scmp.lt.s32.totalorder %s11, 4
      // Predicated region
      $region17: #{generator_forward.15} parent=5 // pred_check
        %p145 = pneg %p144
      $region18: #{generator_forward.15} parent=5 // pred_check_branch
        %147 = sbr.rel (%p145) target = $region20
      $region19: #{generator_forward.15} parent=5 // pred_region
        // Predicated region
        $region21: #{generator_forward.15} parent=19 // pred_check
          %p148 = pneg %p52
        $region22: #{generator_forward.15} parent=19 // pred_check_branch
          %150 = sbr.rel (%p148) target = $region24
        $region23: #{generator_forward.15} parent=19 // pred_region
          %s151 = sand.u32 %s42, 1
          %s152 = sand.u32 %s42, 1
          %s153 = smul.addr %s152, 512
          %s154 = scalar_lea.vmem [#allocation2], %s153
          %s155 = smul.u32 4, %s11
          %s156 = smul.addr %s155, 4
          %s157 = scalar_lea.vmem %s1, %s156
          // Predicated region
          $region25: #{generator_forward.15} parent=23 // pred_check
            _
          $region26: #{generator_forward.15} parent=23 // pred_check_branch
            %159 = sbr.rel (0) target = $region28
          $region27: #{generator_forward.15} parent=23 // pred_region
            // Predicated region
            $region29: #{generator_forward.15} parent=27 // pred_check
              _
            $region30: #{generator_forward.15} parent=27 // pred_check_branch
              %161 = sbr.rel (0) target = $region32
            $region31: #{generator_forward.15} parent=27 // pred_region
              loop: start=0, step=1, limit=1
              $region33: #{generator_forward.15} parent=31 // loop_pre_header
                _
              $region34: #{generator_forward.15} parent=31 // loop_header
                %s163 = sphi 0, %s167
                %p164 = scmp.ge.s32.totalorder %s163, 1
                %s168 = sphi %s157, %s157
                %s169 = sphi %s154, %s154
              $region35: #{generator_forward.15} parent=31 // loop_header_branch
                %166 = sbr.rel (%p164) target = $region39
              $region36: #{generator_forward.15} parent=31 // loop_body
                %v170 = vld [vmem:[%s168] sm:$0xff]
                %171 = vst [vmem:[%s169] sm:$0xff] %v170
                %v172 = vld [vmem:[%s168 + $0x8] sm:$0xff]
                %173 = vst [vmem:[%s169 + $0x8] sm:$0xff] %v172
                %v174 = vld [vmem:[%s168 + $0x40] sm:$0xff]
                %175 = vst [vmem:[%s169 + $0x10] sm:$0xff] %v174
                %v176 = vld [vmem:[%s168 + $0x48] sm:$0xff]
                %177 = vst [vmem:[%s169 + $0x18] sm:$0xff] %v176
                %v178 = vld [vmem:[%s168 + $0x80] sm:$0xff]
                %179 = vst [vmem:[%s169 + $0x20] sm:$0xff] %v178
                %v180 = vld [vmem:[%s168 + $0x88] sm:$0xff]
                %181 = vst [vmem:[%s169 + $0x28] sm:$0xff] %v180
                %v182 = vld [vmem:[%s168 + $0xc0] sm:$0xff]
                %183 = vst [vmem:[%s169 + $0x30] sm:$0xff] %v182
                %v184 = vld [vmem:[%s168 + $0xc8] sm:$0xff]
                %185 = vst [vmem:[%s169 + $0x38] sm:$0xff] %v184
                %v186 = vld [vmem:[%s168 + $0x100] sm:$0xff]
                %187 = vst [vmem:[%s169 + $0x40] sm:$0xff] %v186
                %v188 = vld [vmem:[%s168 + $0x108] sm:$0xff]
                %189 = vst [vmem:[%s169 + $0x48] sm:$0xff] %v188
                %v190 = vld [vmem:[%s168 + $0x140] sm:$0xff]
                %191 = vst [vmem:[%s169 + $0x50] sm:$0xff] %v190
                %v192 = vld [vmem:[%s168 + $0x148] sm:$0xff]
                %193 = vst [vmem:[%s169 + $0x58] sm:$0xff] %v192
                %v194 = vld [vmem:[%s168 + $0x180] sm:$0xff]
                %195 = vst [vmem:[%s169 + $0x60] sm:$0xff] %v194
                %v196 = vld [vmem:[%s168 + $0x188] sm:$0xff]
                %197 = vst [vmem:[%s169 + $0x68] sm:$0xff] %v196
                %v198 = vld [vmem:[%s168 + $0x1c0] sm:$0xff]
                %199 = vst [vmem:[%s169 + $0x70] sm:$0xff] %v198
                %v200 = vld [vmem:[%s168 + $0x1c8] sm:$0xff]
                %201 = vst [vmem:[%s169 + $0x78] sm:$0xff] %v200
                %v202 = vld [vmem:[%s168 + $0x200] sm:$0xff]
                %203 = vst [vmem:[%s169 + $0x80] sm:$0xff] %v202
                %v204 = vld [vmem:[%s168 + $0x208] sm:$0xff]
                %205 = vst [vmem:[%s169 + $0x88] sm:$0xff] %v204
                %v206 = vld [vmem:[%s168 + $0x240] sm:$0xff]
                %207 = vst [vmem:[%s169 + $0x90] sm:$0xff] %v206
                %v208 = vld [vmem:[%s168 + $0x248] sm:$0xff]
                %209 = vst [vmem:[%s169 + $0x98] sm:$0xff] %v208
                %v210 = vld [vmem:[%s168 + $0x280] sm:$0xff]
                %211 = vst [vmem:[%s169 + $0xa0] sm:$0xff] %v210
                %v212 = vld [vmem:[%s168 + $0x288] sm:$0xff]
                %213 = vst [vmem:[%s169 + $0xa8] sm:$0xff] %v212
                %v214 = vld [vmem:[%s168 + $0x2c0] sm:$0xff]
                %215 = vst [vmem:[%s169 + $0xb0] sm:$0xff] %v214
                %v216 = vld [vmem:[%s168 + $0x2c8] sm:$0xff]
                %217 = vst [vmem:[%s169 + $0xb8] sm:$0xff] %v216
                %v218 = vld [vmem:[%s168 + $0x300] sm:$0xff]
                %219 = vst [vmem:[%s169 + $0xc0] sm:$0xff] %v218
                %v220 = vld [vmem:[%s168 + $0x308] sm:$0xff]
                %221 = vst [vmem:[%s169 + $0xc8] sm:$0xff] %v220
                %v222 = vld [vmem:[%s168 + $0x340] sm:$0xff]
                %223 = vst [vmem:[%s169 + $0xd0] sm:$0xff] %v222
                %v224 = vld [vmem:[%s168 + $0x348] sm:$0xff]
                %225 = vst [vmem:[%s169 + $0xd8] sm:$0xff] %v224
                %v226 = vld [vmem:[%s168 + $0x380] sm:$0xff]
                %227 = vst [vmem:[%s169 + $0xe0] sm:$0xff] %v226
                %v228 = vld [vmem:[%s168 + $0x388] sm:$0xff]
                %229 = vst [vmem:[%s169 + $0xe8] sm:$0xff] %v228
                %v230 = vld [vmem:[%s168 + $0x3c0] sm:$0xff]
                %231 = vst [vmem:[%s169 + $0xf0] sm:$0xff] %v230
                %v232 = vld [vmem:[%s168 + $0x3c8] sm:$0xff]
                %233 = vst [vmem:[%s169 + $0xf8] sm:$0xff] %v232
                %v234 = vld [vmem:[%s168 + $0x400] sm:$0xff]
                %235 = vst [vmem:[%s169 + $0x100] sm:$0xff] %v234
                %v236 = vld [vmem:[%s168 + $0x408] sm:$0xff]
                %237 = vst [vmem:[%s169 + $0x108] sm:$0xff] %v236
                %v238 = vld [vmem:[%s168 + $0x440] sm:$0xff]
                %239 = vst [vmem:[%s169 + $0x110] sm:$0xff] %v238
                %v240 = vld [vmem:[%s168 + $0x448] sm:$0xff]
                %241 = vst [vmem:[%s169 + $0x118] sm:$0xff] %v240
                %v242 = vld [vmem:[%s168 + $0x480] sm:$0xff]
                %243 = vst [vmem:[%s169 + $0x120] sm:$0xff] %v242
                %v244 = vld [vmem:[%s168 + $0x488] sm:$0xff]
                %245 = vst [vmem:[%s169 + $0x128] sm:$0xff] %v244
                %v246 = vld [vmem:[%s168 + $0x4c0] sm:$0xff]
                %247 = vst [vmem:[%s169 + $0x130] sm:$0xff] %v246
                %v248 = vld [vmem:[%s168 + $0x4c8] sm:$0xff]
                %249 = vst [vmem:[%s169 + $0x138] sm:$0xff] %v248
                %v250 = vld [vmem:[%s168 + $0x500] sm:$0xff]
                %251 = vst [vmem:[%s169 + $0x140] sm:$0xff] %v250
                %v252 = vld [vmem:[%s168 + $0x508] sm:$0xff]
                %253 = vst [vmem:[%s169 + $0x148] sm:$0xff] %v252
                %v254 = vld [vmem:[%s168 + $0x540] sm:$0xff]
                %255 = vst [vmem:[%s169 + $0x150] sm:$0xff] %v254
                %v256 = vld [vmem:[%s168 + $0x548] sm:$0xff]
                %257 = vst [vmem:[%s169 + $0x158] sm:$0xff] %v256
                %v258 = vld [vmem:[%s168 + $0x580] sm:$0xff]
                %259 = vst [vmem:[%s169 + $0x160] sm:$0xff] %v258
                %v260 = vld [vmem:[%s168 + $0x588] sm:$0xff]
                %261 = vst [vmem:[%s169 + $0x168] sm:$0xff] %v260
                %v262 = vld [vmem:[%s168 + $0x5c0] sm:$0xff]
                %263 = vst [vmem:[%s169 + $0x170] sm:$0xff] %v262
                %v264 = vld [vmem:[%s168 + $0x5c8] sm:$0xff]
                %265 = vst [vmem:[%s169 + $0x178] sm:$0xff] %v264
                %v266 = vld [vmem:[%s168 + $0x600] sm:$0xff]
                %267 = vst [vmem:[%s169 + $0x180] sm:$0xff] %v266
                %v268 = vld [vmem:[%s168 + $0x608] sm:$0xff]
                %269 = vst [vmem:[%s169 + $0x188] sm:$0xff] %v268
                %v270 = vld [vmem:[%s168 + $0x640] sm:$0xff]
                %271 = vst [vmem:[%s169 + $0x190] sm:$0xff] %v270
                %v272 = vld [vmem:[%s168 + $0x648] sm:$0xff]
                %273 = vst [vmem:[%s169 + $0x198] sm:$0xff] %v272
                %v274 = vld [vmem:[%s168 + $0x680] sm:$0xff]
                %275 = vst [vmem:[%s169 + $0x1a0] sm:$0xff] %v274
                %v276 = vld [vmem:[%s168 + $0x688] sm:$0xff]
                %277 = vst [vmem:[%s169 + $0x1a8] sm:$0xff] %v276
                %v278 = vld [vmem:[%s168 + $0x6c0] sm:$0xff]
                %279 = vst [vmem:[%s169 + $0x1b0] sm:$0xff] %v278
                %v280 = vld [vmem:[%s168 + $0x6c8] sm:$0xff]
                %281 = vst [vmem:[%s169 + $0x1b8] sm:$0xff] %v280
                %v282 = vld [vmem:[%s168 + $0x700] sm:$0xff]
                %283 = vst [vmem:[%s169 + $0x1c0] sm:$0xff] %v282
                %v284 = vld [vmem:[%s168 + $0x708] sm:$0xff]
                %285 = vst [vmem:[%s169 + $0x1c8] sm:$0xff] %v284
                %v286 = vld [vmem:[%s168 + $0x740] sm:$0xff]
                %287 = vst [vmem:[%s169 + $0x1d0] sm:$0xff] %v286
                %v288 = vld [vmem:[%s168 + $0x748] sm:$0xff]
                %289 = vst [vmem:[%s169 + $0x1d8] sm:$0xff] %v288
                %v290 = vld [vmem:[%s168 + $0x780] sm:$0xff]
                %291 = vst [vmem:[%s169 + $0x1e0] sm:$0xff] %v290
                %v292 = vld [vmem:[%s168 + $0x788] sm:$0xff]
                %293 = vst [vmem:[%s169 + $0x1e8] sm:$0xff] %v292
                %v294 = vld [vmem:[%s168 + $0x7c0] sm:$0xff]
                %295 = vst [vmem:[%s169 + $0x1f0] sm:$0xff] %v294
                %v296 = vld [vmem:[%s168 + $0x7c8] sm:$0xff]
                %297 = vst [vmem:[%s169 + $0x1f8] sm:$0xff] %v296
              $region37: #{generator_forward.15} parent=31 // loop_footer
                %s167 = sadd.s32 1, %s163
              $region38: #{generator_forward.15} parent=31 // loop_footer_branch
                %162 = sbr.rel target = $region34
              $region39: #{generator_forward.15} parent=31 // loop_exit
                _
            $region32: #{generator_forward.15} parent=27 // pred_fallthru
              _
            // Predicated region
            $region40: #{generator_forward.15} parent=27 // pred_check
              _
            $region41: #{generator_forward.15} parent=27 // pred_check_branch
              %299 = sbr.rel target = $region43
            $region42: #{generator_forward.15} parent=27 // pred_region
              _
            $region43: #{generator_forward.15} parent=27 // pred_fallthru
              _
          $region28: #{generator_forward.15} parent=23 // pred_fallthru
            _
          %300 = vnop
        $region24: #{generator_forward.15} parent=19 // pred_fallthru
          _
      $region20: #{generator_forward.15} parent=5 // pred_fallthru
        _
      %p301 = scmp.le.s32.totalorder 1, %s11
      %p302 = scmp.lt.s32.totalorder %s11, 5
      %p303 = pnand %p301, %p302
      %p304 = pneg %p303
      // Predicated region
      $region44: #{generator_forward.15} parent=5 // pred_check
        _
      $region45: #{generator_forward.15} parent=5 // pred_check_branch
        %306 = sbr.rel (%p303) target = $region47
      $region46: #{generator_forward.15} parent=5 // pred_region
        %s307 = ssub.s32 %s11, 1
        %s308 = sand.u32 %s45, 1
        %s309 = sand.u32 %s45, 1
        %s310 = smul.addr %s309, 512
        %s311 = scalar_lea.vmem [#allocation2], %s310
        // Predicated region
        $region48: #{generator_forward.15} parent=46 // pred_check
          %p312 = pneg %p58
        $region49: #{generator_forward.15} parent=46 // pred_check_branch
          %314 = sbr.rel (%p312) target = $region51
        $region50: #{generator_forward.15} parent=46 // pred_region
          _
        $region51: #{generator_forward.15} parent=46 // pred_fallthru
          _
        %p315 = pneg %p32
        %p316 = pneg %p29
        %s317 = sand.u32 %s45, 1
        %s318 = sand.u32 %s45, 1
        %s319 = smul.addr %s318, 512
        %s320 = scalar_lea.vmem [#allocation2], %s319
        %p321 = pneg %p58
        %p322 = pneg %p55
        %p323 = pneg %p84
        %p324 = pneg %p81
        %s325 = smul.u32 4, %s16
        %p326 = scmp.lt.s32.totalorder %s325, 15
        %s327 = scalar_select %p326, %s325, 15
        %s328 = smul.addr %s327, 8
        %s329 = scalar_lea.vmem %s2, %s328
        %p330 = pneg %p105
        %p331 = pneg %p102
        %p332 = pneg %p126
        %p333 = pneg %p123
        %s334 = smul.u32 4, %s16
        %s335 = smul.u32 4, %s16
        %p336 = scmp.lt.s32.totalorder %s335, 15
        %s337 = scalar_select %p336, %s335, 15
        %s338 = smul.addr %s337, 8
        %s339 = scalar_lea.vmem %s2, %s338
        %s340 = smul.u32 4, %s16
        %p341 = scmp.eq.s32.totalorder %s16, 0
        // Predicated region
        $region52: #{generator_forward.15} parent=46 // pred_check
          %p342 = pneg %p341
        $region53: #{generator_forward.15} parent=46 // pred_check_branch
          %344 = sbr.rel (%p342) target = $region55
        $region54: #{generator_forward.15} parent=46 // pred_region
          %vm345 = vcmask 7168
          %346 = vst.msk [vmem:[%s3] sm:$0xff] %vm345, 0.0
          %347 = vst.msk [vmem:[%s4] sm:$0xff] %vm345, 0.0
        $region55: #{generator_forward.15} parent=46 // pred_fallthru
          _
        %v348 = vld [vmem:[%s0] sm:$0xff]
        %v349 = vld [vmem:[%s311] sm:$0xff]
        %v350 = vld [vmem:[%s311 + $0x8] sm:$0xff]
        %v351 = vld [vmem:[%s311 + $0x10] sm:$0xff]
        %v352 = vld [vmem:[%s311 + $0x18] sm:$0xff]
        %v353 = vld [vmem:[%s311 + $0x20] sm:$0xff]
        %v354 = vld [vmem:[%s311 + $0x28] sm:$0xff]
        %v355 = vld [vmem:[%s311 + $0x30] sm:$0xff]
        %v356 = vld [vmem:[%s311 + $0x38] sm:$0xff]
        %v357 = vld [vmem:[%s311 + $0x40] sm:$0xff]
        %v358 = vld [vmem:[%s311 + $0x48] sm:$0xff]
        %v359 = vld [vmem:[%s311 + $0x50] sm:$0xff]
        %v360 = vld [vmem:[%s311 + $0x58] sm:$0xff]
        %v361 = vld [vmem:[%s311 + $0x60] sm:$0xff]
        %v362 = vld [vmem:[%s311 + $0x68] sm:$0xff]
        %v363 = vld [vmem:[%s311 + $0x70] sm:$0xff]
        %v364 = vld [vmem:[%s311 + $0x78] sm:$0xff]
        %v365 = vld [vmem:[%s311 + $0x80] sm:$0xff]
        %v366 = vld [vmem:[%s311 + $0x88] sm:$0xff]
        %v367 = vld [vmem:[%s311 + $0x90] sm:$0xff]
        %v368 = vld [vmem:[%s311 + $0x98] sm:$0xff]
        %v369 = vld [vmem:[%s311 + $0xa0] sm:$0xff]
        %v370 = vld [vmem:[%s311 + $0xa8] sm:$0xff]
        %v371 = vld [vmem:[%s311 + $0xb0] sm:$0xff]
        %v372 = vld [vmem:[%s311 + $0xb8] sm:$0xff]
        %v373 = vld [vmem:[%s311 + $0xc0] sm:$0xff]
        %v374 = vld [vmem:[%s311 + $0xc8] sm:$0xff]
        %v375 = vld [vmem:[%s311 + $0xd0] sm:$0xff]
        %v376 = vld [vmem:[%s311 + $0xd8] sm:$0xff]
        %v377 = vld [vmem:[%s311 + $0xe0] sm:$0xff]
        %v378 = vld [vmem:[%s311 + $0xe8] sm:$0xff]
        %v379 = vld [vmem:[%s311 + $0xf0] sm:$0xff]
        %v380 = vld [vmem:[%s311 + $0xf8] sm:$0xff]
        %v381 = vld [vmem:[%s311 + $0x100] sm:$0xff]
        %v382 = vld [vmem:[%s311 + $0x108] sm:$0xff]
        %v383 = vld [vmem:[%s311 + $0x110] sm:$0xff]
        %v384 = vld [vmem:[%s311 + $0x118] sm:$0xff]
        %v385 = vld [vmem:[%s311 + $0x120] sm:$0xff]
        %v386 = vld [vmem:[%s311 + $0x128] sm:$0xff]
        %v387 = vld [vmem:[%s311 + $0x130] sm:$0xff]
        %v388 = vld [vmem:[%s311 + $0x138] sm:$0xff]
        %v389 = vld [vmem:[%s311 + $0x140] sm:$0xff]
        %v390 = vld [vmem:[%s311 + $0x148] sm:$0xff]
        %v391 = vld [vmem:[%s311 + $0x150] sm:$0xff]
        %v392 = vld [vmem:[%s311 + $0x158] sm:$0xff]
        %v393 = vld [vmem:[%s311 + $0x160] sm:$0xff]
        %v394 = vld [vmem:[%s311 + $0x168] sm:$0xff]
        %v395 = vld [vmem:[%s311 + $0x170] sm:$0xff]
        %v396 = vld [vmem:[%s311 + $0x178] sm:$0xff]
        %v397 = vld [vmem:[%s311 + $0x180] sm:$0xff]
        %v398 = vld [vmem:[%s311 + $0x188] sm:$0xff]
        %v399 = vld [vmem:[%s311 + $0x190] sm:$0xff]
        %v400 = vld [vmem:[%s311 + $0x198] sm:$0xff]
        %v401 = vld [vmem:[%s311 + $0x1a0] sm:$0xff]
        %v402 = vld [vmem:[%s311 + $0x1a8] sm:$0xff]
        %v403 = vld [vmem:[%s311 + $0x1b0] sm:$0xff]
        %v404 = vld [vmem:[%s311 + $0x1b8] sm:$0xff]
        %v405 = vld [vmem:[%s311 + $0x1c0] sm:$0xff]
        %v406 = vld [vmem:[%s311 + $0x1c8] sm:$0xff]
        %v407 = vld [vmem:[%s311 + $0x1d0] sm:$0xff]
        %v408 = vld [vmem:[%s311 + $0x1d8] sm:$0xff]
        %v409 = vld [vmem:[%s311 + $0x1e0] sm:$0xff]
        %v410 = vld [vmem:[%s311 + $0x1e8] sm:$0xff]
        %v411 = vld [vmem:[%s311 + $0x1f0] sm:$0xff]
        %v412 = vld [vmem:[%s311 + $0x1f8] sm:$0xff]
        %v414 = vunpack.c.l.b16 %v348
        %v415 = vunpack.c.h.b16 %v348
        %v416 = vpack.c.b16 %v414, %v414
        %v417 = vpack.c.b16 %v415, %v415
        %v484 = vunpack.c.l.b16 %v349
        %v485 = vunpack.c.h.b16 %v349
        %v486 = vunpack.c.l.b16 %v350
        %v487 = vunpack.c.h.b16 %v350
        %v488 = vunpack.c.l.b16 %v351
        %v489 = vunpack.c.h.b16 %v351
        %v490 = vunpack.c.l.b16 %v352
        %v491 = vunpack.c.h.b16 %v352
        %v492 = vunpack.c.l.b16 %v353
        %v493 = vunpack.c.h.b16 %v353
        %v494 = vunpack.c.l.b16 %v354
        %v495 = vunpack.c.h.b16 %v354
        %v496 = vunpack.c.l.b16 %v355
        %v497 = vunpack.c.h.b16 %v355
        %v498 = vunpack.c.l.b16 %v356
        %v499 = vunpack.c.h.b16 %v356
        %v500 = vunpack.c.l.b16 %v357
        %v501 = vunpack.c.h.b16 %v357
        %v502 = vunpack.c.l.b16 %v358
        %v503 = vunpack.c.h.b16 %v358
        %v504 = vunpack.c.l.b16 %v359
        %v505 = vunpack.c.h.b16 %v359
        %v506 = vunpack.c.l.b16 %v360
        %v507 = vunpack.c.h.b16 %v360
        %v508 = vunpack.c.l.b16 %v361
        %v509 = vunpack.c.h.b16 %v361
        %v510 = vunpack.c.l.b16 %v362
        %v511 = vunpack.c.h.b16 %v362
        %v512 = vunpack.c.l.b16 %v363
        %v513 = vunpack.c.h.b16 %v363
        %v514 = vunpack.c.l.b16 %v364
        %v515 = vunpack.c.h.b16 %v364
        %v516 = vunpack.c.l.b16 %v365
        %v517 = vunpack.c.h.b16 %v365
        %v518 = vunpack.c.l.b16 %v366
        %v519 = vunpack.c.h.b16 %v366
        %v520 = vunpack.c.l.b16 %v367
        %v521 = vunpack.c.h.b16 %v367
        %v522 = vunpack.c.l.b16 %v368
        %v523 = vunpack.c.h.b16 %v368
        %v524 = vunpack.c.l.b16 %v369
        %v525 = vunpack.c.h.b16 %v369
        %v526 = vunpack.c.l.b16 %v370
        %v527 = vunpack.c.h.b16 %v370
        %v528 = vunpack.c.l.b16 %v371
        %v529 = vunpack.c.h.b16 %v371
        %v530 = vunpack.c.l.b16 %v372
        %v531 = vunpack.c.h.b16 %v372
        %v532 = vunpack.c.l.b16 %v373
        %v533 = vunpack.c.h.b16 %v373
        %v534 = vunpack.c.l.b16 %v374
        %v535 = vunpack.c.h.b16 %v374
        %v536 = vunpack.c.l.b16 %v375
        %v537 = vunpack.c.h.b16 %v375
        %v538 = vunpack.c.l.b16 %v376
        %v539 = vunpack.c.h.b16 %v376
        %v540 = vunpack.c.l.b16 %v377
        %v541 = vunpack.c.h.b16 %v377
        %v542 = vunpack.c.l.b16 %v378
        %v543 = vunpack.c.h.b16 %v378
        %v544 = vunpack.c.l.b16 %v379
        %v545 = vunpack.c.h.b16 %v379
        %v546 = vunpack.c.l.b16 %v380
        %v547 = vunpack.c.h.b16 %v380
        %v548 = vunpack.c.l.b16 %v381
        %v549 = vunpack.c.h.b16 %v381
        %v550 = vunpack.c.l.b16 %v382
        %v551 = vunpack.c.h.b16 %v382
        %v552 = vunpack.c.l.b16 %v383
        %v553 = vunpack.c.h.b16 %v383
        %v554 = vunpack.c.l.b16 %v384
        %v555 = vunpack.c.h.b16 %v384
        %v556 = vunpack.c.l.b16 %v385
        %v557 = vunpack.c.h.b16 %v385
        %v558 = vunpack.c.l.b16 %v386
        %v559 = vunpack.c.h.b16 %v386
        %v560 = vunpack.c.l.b16 %v387
        %v561 = vunpack.c.h.b16 %v387
        %v562 = vunpack.c.l.b16 %v388
        %v563 = vunpack.c.h.b16 %v388
        %v564 = vunpack.c.l.b16 %v389
        %v565 = vunpack.c.h.b16 %v389
        %v566 = vunpack.c.l.b16 %v390
        %v567 = vunpack.c.h.b16 %v390
        %v568 = vunpack.c.l.b16 %v391
        %v569 = vunpack.c.h.b16 %v391
        %v570 = vunpack.c.l.b16 %v392
        %v571 = vunpack.c.h.b16 %v392
        %v572 = vunpack.c.l.b16 %v393
        %v573 = vunpack.c.h.b16 %v393
        %v574 = vunpack.c.l.b16 %v394
        %v575 = vunpack.c.h.b16 %v394
        %v576 = vunpack.c.l.b16 %v395
        %v577 = vunpack.c.h.b16 %v395
        %v578 = vunpack.c.l.b16 %v396
        %v579 = vunpack.c.h.b16 %v396
        %v580 = vunpack.c.l.b16 %v397
        %v581 = vunpack.c.h.b16 %v397
        %v582 = vunpack.c.l.b16 %v398
        %v583 = vunpack.c.h.b16 %v398
        %v584 = vunpack.c.l.b16 %v399
        %v585 = vunpack.c.h.b16 %v399
        %v586 = vunpack.c.l.b16 %v400
        %v587 = vunpack.c.h.b16 %v400
        %v588 = vunpack.c.l.b16 %v401
        %v589 = vunpack.c.h.b16 %v401
        %v590 = vunpack.c.l.b16 %v402
        %v591 = vunpack.c.h.b16 %v402
        %v592 = vunpack.c.l.b16 %v403
        %v593 = vunpack.c.h.b16 %v403
        %v594 = vunpack.c.l.b16 %v404
        %v595 = vunpack.c.h.b16 %v404
        %v596 = vunpack.c.l.b16 %v405
        %v597 = vunpack.c.h.b16 %v405
        %v598 = vunpack.c.l.b16 %v406
        %v599 = vunpack.c.h.b16 %v406
        %v600 = vunpack.c.l.b16 %v407
        %v601 = vunpack.c.h.b16 %v407
        %v602 = vunpack.c.l.b16 %v408
        %v603 = vunpack.c.h.b16 %v408
        %v604 = vunpack.c.l.b16 %v409
        %v605 = vunpack.c.h.b16 %v409
        %v606 = vunpack.c.l.b16 %v410
        %v607 = vunpack.c.h.b16 %v410
        %v608 = vunpack.c.l.b16 %v411
        %v609 = vunpack.c.h.b16 %v411
        %v610 = vunpack.c.l.b16 %v412
        %v611 = vunpack.c.h.b16 %v412
        %v612 = vpack.c.b16 %v488, %v484
        %v613 = vpack.c.b16 %v489, %v485
        %v614 = vpack.c.b16 %v490, %v486
        %v615 = vpack.c.b16 %v491, %v487
        %v616 = vpack.c.b16 %v496, %v492
        %v617 = vpack.c.b16 %v497, %v493
        %v618 = vpack.c.b16 %v498, %v494
        %v619 = vpack.c.b16 %v499, %v495
        %v620 = vpack.c.b16 %v504, %v500
        %v621 = vpack.c.b16 %v505, %v501
        %v622 = vpack.c.b16 %v506, %v502
        %v623 = vpack.c.b16 %v507, %v503
        %v624 = vpack.c.b16 %v512, %v508
        %v625 = vpack.c.b16 %v513, %v509
        %v626 = vpack.c.b16 %v514, %v510
        %v627 = vpack.c.b16 %v515, %v511
        %v628 = vpack.c.b16 %v520, %v516
        %v629 = vpack.c.b16 %v521, %v517
        %v630 = vpack.c.b16 %v522, %v518
        %v631 = vpack.c.b16 %v523, %v519
        %v632 = vpack.c.b16 %v528, %v524
        %v633 = vpack.c.b16 %v529, %v525
        %v634 = vpack.c.b16 %v530, %v526
        %v635 = vpack.c.b16 %v531, %v527
        %v636 = vpack.c.b16 %v536, %v532
        %v637 = vpack.c.b16 %v537, %v533
        %v638 = vpack.c.b16 %v538, %v534
        %v639 = vpack.c.b16 %v539, %v535
        %v640 = vpack.c.b16 %v544, %v540
        %v641 = vpack.c.b16 %v545, %v541
        %v642 = vpack.c.b16 %v546, %v542
        %v643 = vpack.c.b16 %v547, %v543
        %v644 = vpack.c.b16 %v552, %v548
        %v645 = vpack.c.b16 %v553, %v549
        %v646 = vpack.c.b16 %v554, %v550
        %v647 = vpack.c.b16 %v555, %v551
        %v648 = vpack.c.b16 %v560, %v556
        %v649 = vpack.c.b16 %v561, %v557
        %v650 = vpack.c.b16 %v562, %v558
        %v651 = vpack.c.b16 %v563, %v559
        %v652 = vpack.c.b16 %v568, %v564
        %v653 = vpack.c.b16 %v569, %v565
        %v654 = vpack.c.b16 %v570, %v566
        %v655 = vpack.c.b16 %v571, %v567
        %v656 = vpack.c.b16 %v576, %v572
        %v657 = vpack.c.b16 %v577, %v573
        %v658 = vpack.c.b16 %v578, %v574
        %v659 = vpack.c.b16 %v579, %v575
        %v660 = vpack.c.b16 %v584, %v580
        %v661 = vpack.c.b16 %v585, %v581
        %v662 = vpack.c.b16 %v586, %v582
        %v663 = vpack.c.b16 %v587, %v583
        %v664 = vpack.c.b16 %v592, %v588
        %v665 = vpack.c.b16 %v593, %v589
        %v666 = vpack.c.b16 %v594, %v590
        %v667 = vpack.c.b16 %v595, %v591
        %v668 = vpack.c.b16 %v600, %v596
        %v669 = vpack.c.b16 %v601, %v597
        %v670 = vpack.c.b16 %v602, %v598
        %v671 = vpack.c.b16 %v603, %v599
        %v672 = vpack.c.b16 %v608, %v604
        %v673 = vpack.c.b16 %v609, %v605
        %v674 = vpack.c.b16 %v610, %v606
        %v675 = vpack.c.b16 %v611, %v607
        %740 = vmatprep.subr.bf16.mxu0 %v613
        %741 = vmatpush1.bf16.msra.mxu0 %v612
        %742 = vmatprep.subr.bf16.mxu0 %v617
        %743 = vmatpush1.bf16.msra.mxu0 %v616
        %744 = vmatprep.subr.bf16.mxu0 %v621
        %745 = vmatpush1.bf16.msra.mxu0 %v620
        %746 = vmatprep.subr.bf16.mxu0 %v625
        %747 = vmatpush1.bf16.msra.mxu0 %v624
        %748 = vmatprep.subr.bf16.mxu0 %v629
        %749 = vmatpush1.bf16.msra.mxu0 %v628
        %750 = vmatprep.subr.bf16.mxu0 %v633
        %751 = vmatpush1.bf16.msra.mxu0 %v632
        %752 = vmatprep.subr.bf16.mxu0 %v637
        %753 = vmatpush1.bf16.msra.mxu0 %v636
        %754 = vmatprep.subr.bf16.mxu0 %v641
        %755 = vmatpush1.bf16.msra.mxu0 %v640
        %756 = vmatprep.subr.bf16.mxu0 %v645
        %757 = vmatpush1.bf16.msra.mxu0 %v644
        %758 = vmatprep.subr.bf16.mxu0 %v649
        %759 = vmatpush1.bf16.msra.mxu0 %v648
        %760 = vmatprep.subr.bf16.mxu0 %v653
        %761 = vmatpush1.bf16.msra.mxu0 %v652
        %762 = vmatprep.subr.bf16.mxu0 %v657
        %763 = vmatpush1.bf16.msra.mxu0 %v656
        %764 = vmatprep.subr.bf16.mxu0 %v661
        %765 = vmatpush1.bf16.msra.mxu0 %v660
        %766 = vmatprep.subr.bf16.mxu0 %v665
        %767 = vmatpush1.bf16.msra.mxu0 %v664
        %768 = vmatprep.subr.bf16.mxu0 %v669
        %769 = vmatpush1.bf16.msra.mxu0 %v668
        %770 = vmatprep.subr.bf16.mxu0 %v673
        %771 = vmatpush1.bf16.msra.mxu0 %v672
        %772 = vmatprep.mubr.bf16.mxu0 %v417
        %773 = vmatmul.mubr.bf16.gmra.mrb[0].mxu0 %v416
        %v774 = vpop.f32.mrb[0].mxu0
        %v775 = vadd.f32 0.0, %v774
        %v776 = vpop.f32.mrb[0].mxu0
        %v777 = vadd.f32 0.0, %v776
        %v778 = vpop.f32.mrb[0].mxu0
        %v779 = vpop.f32.mrb[0].mxu0
        %780 = vdwg.mxu0
        %781 = vmatprep.subr.bf16.mxu0 %v615
        %782 = vmatpush1.bf16.msra.mxu0 %v614
        %783 = vmatprep.subr.bf16.mxu0 %v619
        %784 = vmatpush1.bf16.msra.mxu0 %v618
        %785 = vmatprep.subr.bf16.mxu0 %v623
        %786 = vmatpush1.bf16.msra.mxu0 %v622
        %787 = vmatprep.subr.bf16.mxu0 %v627
        %788 = vmatpush1.bf16.msra.mxu0 %v626
        %789 = vmatprep.subr.bf16.mxu0 %v631
        %790 = vmatpush1.bf16.msra.mxu0 %v630
        %791 = vmatprep.subr.bf16.mxu0 %v635
        %792 = vmatpush1.bf16.msra.mxu0 %v634
        %793 = vmatprep.subr.bf16.mxu0 %v639
        %794 = vmatpush1.bf16.msra.mxu0 %v638
        %795 = vmatprep.subr.bf16.mxu0 %v643
        %796 = vmatpush1.bf16.msra.mxu0 %v642
        %797 = vmatprep.subr.bf16.mxu0 %v647
        %798 = vmatpush1.bf16.msra.mxu0 %v646
        %799 = vmatprep.subr.bf16.mxu0 %v651
        %800 = vmatpush1.bf16.msra.mxu0 %v650
        %801 = vmatprep.subr.bf16.mxu0 %v655
        %802 = vmatpush1.bf16.msra.mxu0 %v654
        %803 = vmatprep.subr.bf16.mxu0 %v659
        %804 = vmatpush1.bf16.msra.mxu0 %v658
        %805 = vmatprep.subr.bf16.mxu0 %v663
        %806 = vmatpush1.bf16.msra.mxu0 %v662
        %807 = vmatprep.subr.bf16.mxu0 %v667
        %808 = vmatpush1.bf16.msra.mxu0 %v666
        %809 = vmatprep.subr.bf16.mxu0 %v671
        %810 = vmatpush1.bf16.msra.mxu0 %v670
        %811 = vmatprep.subr.bf16.mxu0 %v675
        %812 = vmatpush1.bf16.msra.mxu0 %v674
        %813 = vmatprep.mubr.bf16.mxu0 %v417
        %814 = vmatmul.mubr.bf16.gmra.mrb[0].mxu0 %v416
        %v815 = vpop.f32.mrb[0].mxu0
        %v816 = vadd.f32 0.0, %v815
        %v817 = vpop.f32.mrb[0].mxu0
        %v818 = vadd.f32 0.0, %v817
        %v819 = vpop.f32.mrb[0].mxu0
        %v820 = vpop.f32.mrb[0].mxu0
        %821 = vdwg.mxu0
        %822 = vst [vmem:[%s339] sm:$0xff] %v775
        %823 = vst [vmem:[%s339 + $0x8] sm:$0xff] %v777
        %824 = vst [vmem:[%s339 + $0x10] sm:$0xff] %v816
        %825 = vst [vmem:[%s339 + $0x18] sm:$0xff] %v818
        %v826 = vld [vmem:[%s3] sm:$0xff]
        %v827 = vadd.f32 %v775, %v777
        %v828 = vadd.f32 %v827, %v816
        %v829 = vadd.f32 %v828, %v818
        %830 = vadd.xlane.f32.xlu0 %v829
        %v831 = vpop.xlane.xlu0 %830
        %v832 = vadd.f32 %v826, %v831
        %vm833 = vcmask 7168
        %834 = vst.msk [vmem:[%s3] sm:$0xff] %vm833, %v832
        %v835 = vld [vmem:[%s4] sm:$0xff]
        %v836 = vmul.f32 %v775, %v775
        %v837 = vmul.f32 %v777, %v777
        %v838 = vmul.f32 %v816, %v816
        %v839 = vmul.f32 %v818, %v818
        %v840 = vadd.f32 %v836, %v837
        %v841 = vadd.f32 %v840, %v838
        %v842 = vadd.f32 %v841, %v839
        %843 = vadd.xlane.f32.xlu0 %v842
        %v844 = vpop.xlane.xlu0 %843
        %v845 = vadd.f32 %v835, %v844
        %846 = vst.msk [vmem:[%s4] sm:$0xff] %vm833, %v845
        %s847 = smul.u32 4, %s16
        %p848 = scmp.lt.s32.totalorder %s847, 15
        %s849 = scalar_select %p848, %s847, 15
        %s850 = smul.addr %s849, 8
        %s851 = scalar_lea.vmem %s2, %s850
        // Predicated region
        $region56: #{generator_forward.15} parent=46 // pred_check
          %p852 = pneg %p81
        $region57: #{generator_forward.15} parent=46 // pred_check_branch
          %854 = sbr.rel (%p852) target = $region59
        $region58: #{generator_forward.15} parent=46 // pred_region
          %s855 = smul.u32 4, %s16
        $region59: #{generator_forward.15} parent=46 // pred_fallthru
          _
        // Predicated region
        $region60: #{generator_forward.15} parent=46 // pred_check
          %p856 = pneg %p102
        $region61: #{generator_forward.15} parent=46 // pred_check_branch
          %858 = sbr.rel (%p856) target = $region63
        $region62: #{generator_forward.15} parent=46 // pred_region
          _
        $region63: #{generator_forward.15} parent=46 // pred_fallthru
          _
        // Predicated region
        $region64: #{generator_forward.15} parent=46 // pred_check
          %p859 = pneg %p123
        $region65: #{generator_forward.15} parent=46 // pred_check_branch
          %861 = sbr.rel (%p859) target = $region67
        $region66: #{generator_forward.15} parent=46 // pred_region
          _
        $region67: #{generator_forward.15} parent=46 // pred_fallthru
          _
        // Predicated region
        $region68: #{generator_forward.15} parent=46 // pred_check
          %p862 = pneg %p102
        $region69: #{generator_forward.15} parent=46 // pred_check_branch
          %864 = sbr.rel (%p862) target = $region71
        $region70: #{generator_forward.15} parent=46 // pred_region
          _
        $region71: #{generator_forward.15} parent=46 // pred_fallthru
          _
        // Predicated region
        $region72: #{generator_forward.15} parent=46 // pred_check
          %p865 = pneg %p123
        $region73: #{generator_forward.15} parent=46 // pred_check_branch
          %867 = sbr.rel (%p865) target = $region75
        $region74: #{generator_forward.15} parent=46 // pred_region
          _
        $region75: #{generator_forward.15} parent=46 // pred_fallthru
          _
      $region47: #{generator_forward.15} parent=5 // pred_fallthru
        _
      %p868 = scmp.le.s32.totalorder 2, %s11
      // Predicated region
      $region76: #{generator_forward.15} parent=5 // pred_check
        %p869 = pneg %p868
      $region77: #{generator_forward.15} parent=5 // pred_check_branch
        %871 = sbr.rel (%p869) target = $region79
      $region78: #{generator_forward.15} parent=5 // pred_region
        %s872 = ssub.s32 %s11, 2
        // Predicated region
        $region80: #{generator_forward.15} parent=78 // pred_check
          %p873 = pneg %p87
        $region81: #{generator_forward.15} parent=78 // pred_check_branch
          %875 = sbr.rel (%p873) target = $region83
        $region82: #{generator_forward.15} parent=78 // pred_region
          %s876 = smul.u32 4, %s17
          %p877 = scmp.lt.s32.totalorder %s876, 15
          %s878 = scalar_select %p877, %s876, 15
          %s879 = smul.addr %s878, 8
          %s880 = scalar_lea.vmem %s2, %s879
        $region83: #{generator_forward.15} parent=78 // pred_fallthru
          _
      $region79: #{generator_forward.15} parent=5 // pred_fallthru
        _
    $region6: #{generator_forward.15} parent=1 // loop_footer
      %s15 = sadd.s32 1, %s11
    $region7: #{generator_forward.15} parent=1 // loop_footer_branch
      %10 = sbr.rel target = $region3
    $region8: #{generator_forward.15} parent=1 // loop_exit
      _

// kernel: generator_forward.16
$region0: #{generator_forward.16}
  #allocation0 [shape = 'u32[]', space=smem, size = 0x4, offset = 0x4, fixed_abs, tag = 'smem constant byte address 0x4 - core index']
  #allocation1 [shape = 'u32[144,128]{1,0:T(1,128)}', space=vmem, size = 0x12000, scoped, tag = 'internal scratch']
  %s0 = inlined_call_operand.vmem [shape: f32[8,2048], index: 0, kind: input, shape index: {}]
  %s1 = inlined_call_operand.vmem [shape: f32[8,1], index: 1, kind: input, shape index: {}]
  %s2 = inlined_call_operand.vmem [shape: f32[8,1], index: 2, kind: input, shape index: {}]
  %s3 = inlined_call_operand.vmem [shape: bf16[8,2048], index: 3, kind: output, shape index: {}]
  %s4 = sld [smem:[#allocation0]]
  $region45: #{generator_forward.16} parent=0
    _
  %s6 = ssub.s32 1, %s4
  %s7 = scalar_select 0, %s6, %s4
  loop: start=0, step=1, limit=6
  $region2: #{generator_forward.16} parent=0 // loop_pre_header
    _
  $region3: #{generator_forward.16} parent=0 // loop_header
    %s9 = sphi 0, %s13
    %p10 = scmp.ge.s32.totalorder %s9, 6
    %s19 = sphi 0, %s21
    %s22 = sphi 0, %s19
    %s23 = sphi 0, %s22
    %s39 = sphi 0, %s23
    %s43 = sphi 0, %s43
    %s45 = sphi 0, %s43
    %s46 = sphi 0, %s45
    %s60 = sphi 0, %s46
    %s64 = sphi 0, %s64
    %s66 = sphi 0, %s64
    %s67 = sphi 0, %s66
    %s81 = sphi 0, %s67
    %s87 = sphi 0, %s89
    %s90 = sphi 0, %s87
    %s91 = sphi 0, %s90
    %s107 = sphi 0, %s91
  $region4: #{generator_forward.16} parent=0 // loop_header_branch
    %12 = sbr.rel (%p10) target = $region8
  $region5: #{generator_forward.16} parent=0 // loop_body
    %s14 = ssub.s32 %s9, 1
    %s15 = ssub.s32 %s9, 2
    %s16 = sadd.s32 %s9, 1
    %s17 = ssub.s32 %s9, %s16
    %p18 = scmp.eq.s32.totalorder %s17, 0
    %s20 = sadd.s32 %s19, 1
    %s21 = scalar_select %p18, %s19, %s20
    %p24 = pneg %p18
    %p25 = scmp.eq.s32.totalorder %s9, 3
    %p26 = por %p24, %p25
    %p27 = scmp.ne.s32.totalorder %s19, %s22
    %p28 = scmp.eq.s32.totalorder %s9, 0
    %p29 = por %p27, %p28
    %p30 = scmp.ne.s32.totalorder %s19, %s22
    %p31 = scmp.eq.s32.totalorder %s14, 3
    %p32 = por %p30, %p31
    %p33 = scmp.ne.s32.totalorder %s22, %s23
    %p34 = scmp.eq.s32.totalorder %s14, 0
    %p35 = por %p33, %p34
    %p36 = scmp.ne.s32.totalorder %s22, %s23
    %p37 = scmp.eq.s32.totalorder %s15, 3
    %p38 = por %p36, %p37
    %p40 = scmp.ne.s32.totalorder %s23, %s39
    %p41 = scmp.eq.s32.totalorder %s15, 0
    %p42 = por %p40, %p41
    %s44 = sadd.s32 %s43, 1
    %p47 = scmp.eq.s32.totalorder %s9, 3
    %p48 = scmp.ne.s32.totalorder %s43, %s45
    %p49 = scmp.eq.s32.totalorder %s9, 0
    %p50 = por %p48, %p49
    %p51 = scmp.ne.s32.totalorder %s43, %s45
    %p52 = scmp.eq.s32.totalorder %s14, 3
    %p53 = por %p51, %p52
    %p54 = scmp.ne.s32.totalorder %s45, %s46
    %p55 = scmp.eq.s32.totalorder %s14, 0
    %p56 = por %p54, %p55
    %p57 = scmp.ne.s32.totalorder %s45, %s46
    %p58 = scmp.eq.s32.totalorder %s15, 3
    %p59 = por %p57, %p58
    %p61 = scmp.ne.s32.totalorder %s46, %s60
    %p62 = scmp.eq.s32.totalorder %s15, 0
    %p63 = por %p61, %p62
    %s65 = sadd.s32 %s64, 1
    %p68 = scmp.eq.s32.totalorder %s9, 3
    %p69 = scmp.ne.s32.totalorder %s64, %s66
    %p70 = scmp.eq.s32.totalorder %s9, 0
    %p71 = por %p69, %p70
    %p72 = scmp.ne.s32.totalorder %s64, %s66
    %p73 = scmp.eq.s32.totalorder %s14, 3
    %p74 = por %p72, %p73
    %p75 = scmp.ne.s32.totalorder %s66, %s67
    %p76 = scmp.eq.s32.totalorder %s14, 0
    %p77 = por %p75, %p76
    %p78 = scmp.ne.s32.totalorder %s66, %s67
    %p79 = scmp.eq.s32.totalorder %s15, 3
    %p80 = por %p78, %p79
    %p82 = scmp.ne.s32.totalorder %s67, %s81
    %p83 = scmp.eq.s32.totalorder %s15, 0
    %p84 = por %p82, %p83
    %s85 = ssub.s32 %s9, %s16
    %p86 = scmp.eq.s32.totalorder %s85, 0
    %s88 = sadd.s32 %s87, 1
    %s89 = scalar_select %p86, %s87, %s88
    %p92 = pneg %p86
    %p93 = scmp.eq.s32.totalorder %s9, 3
    %p94 = por %p92, %p93
    %p95 = scmp.ne.s32.totalorder %s87, %s90
    %p96 = scmp.eq.s32.totalorder %s9, 0
    %p97 = por %p95, %p96
    %p98 = scmp.ne.s32.totalorder %s87, %s90
    %p99 = scmp.eq.s32.totalorder %s14, 3
    %p100 = por %p98, %p99
    %p101 = scmp.ne.s32.totalorder %s90, %s91
    %p102 = scmp.eq.s32.totalorder %s14, 0
    %p103 = por %p101, %p102
    %p104 = scmp.ne.s32.totalorder %s90, %s91
    %p105 = scmp.eq.s32.totalorder %s15, 3
    %p106 = por %p104, %p105
    %p108 = scmp.ne.s32.totalorder %s91, %s107
    %p109 = scmp.eq.s32.totalorder %s15, 0
    %p110 = por %p108, %p109
    %p111 = scmp.le.s32.totalorder 1, %s9
    %p112 = scmp.lt.s32.totalorder %s9, 5
    %p113 = pnand %p111, %p112
    %p114 = pneg %p113
    // Predicated region
    $region9: #{generator_forward.16} parent=5 // pred_check
      _
    $region10: #{generator_forward.16} parent=5 // pred_check_branch
      %116 = sbr.rel (%p113) target = $region12
    $region11: #{generator_forward.16} parent=5 // pred_region
      %s117 = ssub.s32 %s9, 1
      // Predicated region
      $region13: #{generator_forward.16} parent=11 // pred_check
        %p118 = pneg %p56
      $region14: #{generator_forward.16} parent=11 // pred_check_branch
        %120 = sbr.rel (%p118) target = $region16
      $region15: #{generator_forward.16} parent=11 // pred_region
        _
      $region16: #{generator_forward.16} parent=11 // pred_fallthru
        _
      // Predicated region
      $region17: #{generator_forward.16} parent=11 // pred_check
        %p121 = pneg %p77
      $region18: #{generator_forward.16} parent=11 // pred_check_branch
        %123 = sbr.rel (%p121) target = $region20
      $region19: #{generator_forward.16} parent=11 // pred_region
        _
      $region20: #{generator_forward.16} parent=11 // pred_fallthru
        _
    $region12: #{generator_forward.16} parent=5 // pred_fallthru
      _
    %p124 = scmp.lt.s32.totalorder %s9, 4
    // Predicated region
    $region21: #{generator_forward.16} parent=5 // pred_check
      %p125 = pneg %p124
    $region22: #{generator_forward.16} parent=5 // pred_check_branch
      %127 = sbr.rel (%p125) target = $region24
    $region23: #{generator_forward.16} parent=5 // pred_region
      // Predicated region
      $region25: #{generator_forward.16} parent=23 // pred_check
        %p128 = pneg %p29
      $region26: #{generator_forward.16} parent=23 // pred_check_branch
        %130 = sbr.rel (%p128) target = $region28
      $region27: #{generator_forward.16} parent=23 // pred_region
        %s131 = smul.u32 4, %s9
        %p132 = scmp.lt.s32.totalorder %s131, 15
        %s133 = scalar_select %p132, %s131, 15
        %s134 = smul.addr %s133, 8
        %s135 = scalar_lea.vmem %s0, %s134
        %s136 = smul.u32 4, %s9
      $region28: #{generator_forward.16} parent=23 // pred_fallthru
        _
    $region24: #{generator_forward.16} parent=5 // pred_fallthru
      _
    %p137 = scmp.le.s32.totalorder 1, %s9
    %p138 = scmp.lt.s32.totalorder %s9, 5
    %p139 = pnand %p137, %p138
    %p140 = pneg %p139
    // Predicated region
    $region29: #{generator_forward.16} parent=5 // pred_check
      _
    $region30: #{generator_forward.16} parent=5 // pred_check_branch
      %142 = sbr.rel (%p139) target = $region32
    $region31: #{generator_forward.16} parent=5 // pred_region
      %s143 = ssub.s32 %s9, 1
      %s144 = smul.u32 4, %s14
      %p145 = scmp.lt.s32.totalorder %s144, 15
      %s146 = scalar_select %p145, %s144, 15
      %s147 = smul.addr %s146, 8
      %s148 = scalar_lea.vmem %s0, %s147
      %p149 = pneg %p35
      %p150 = pneg %p32
      %p151 = pneg %p56
      %p152 = pneg %p53
      %p153 = pneg %p77
      %p154 = pneg %p74
      %p155 = pneg %p103
      %p156 = pneg %p100
      %s157 = smul.u32 4, %s14
      %p158 = scmp.lt.s32.totalorder %s157, 15
      %s159 = scalar_select %p158, %s157, 15
      %s160 = smul.addr %s159, 4
      %s161 = scalar_lea.vmem %s3, %s160
      %s162 = smul.u32 4, %s14
      %p163 = scmp.lt.s32.totalorder %s162, 15
      %s164 = scalar_select %p163, %s162, 15
      %s165 = smul.addr %s164, 8
      %s166 = scalar_lea.vmem %s0, %s165
      %s167 = smul.u32 4, %s14
      %s168 = smul.u32 4, %s14
      %p169 = scmp.lt.s32.totalorder %s168, 15
      %s170 = scalar_select %p169, %s168, 15
      %s171 = smul.addr %s170, 4
      %s172 = scalar_lea.vmem %s3, %s171
      %s173 = smul.u32 4, %s14
      %v174 = vld [vmem:[%s166] sm:$0xff]
      %v175 = vld [vmem:[%s166 + $0x8] sm:$0xff]
      %v176 = vld [vmem:[%s166 + $0x10] sm:$0xff]
      %v177 = vld [vmem:[%s166 + $0x18] sm:$0xff]
      %v178 = vld [vmem:[%s1] sm:$0xff]
      %180 = vset.pattern.permute.xlu0 0
      %181 = vperm.xlu0 %180, %v178
      %v182 = vpop.permute.xlu0 %181
      %v184 = vmul.f32 %v174, %v182
      %v185 = vmul.f32 %v175, %v182
      %v186 = vmul.f32 %v176, %v182
      %v187 = vmul.f32 %v177, %v182
      %v188 = vld [vmem:[%s2] sm:$0xff]
      %190 = vset.pattern.permute.xlu0 0
      %191 = vperm.xlu0 %190, %v188
      %v192 = vpop.permute.xlu0 %191
      %v194 = vadd.f32 %v184, %v192
      %v195 = vadd.f32 %v185, %v192
      %v196 = vadd.f32 %v186, %v192
      %v197 = vadd.f32 %v187, %v192
      %v198 = vmax.f32 %v194, 0.0
      %v199 = vmax.f32 %v195, 0.0
      %v200 = vmax.f32 %v196, 0.0
      %v201 = vmax.f32 %v197, 0.0
      %v202 = vpack.c.bf16 %v198, %v198
      %v203 = vpack.c.bf16 %v199, %v199
      %v204 = vpack.c.bf16 %v200, %v200
      %v205 = vpack.c.bf16 %v201, %v201
      %v210 = vunpack.c.l.b16 %v202
      %v211 = vunpack.c.l.b16 %v203
      %v212 = vunpack.c.l.b16 %v204
      %v213 = vunpack.c.l.b16 %v205
      %v214 = vpack.c.b16 %v211, %v210
      %v215 = vpack.c.b16 %v213, %v212
      %218 = vst [vmem:[%s172] sm:$0xff] %v214
      %219 = vst [vmem:[%s172 + $0x8] sm:$0xff] %v215
      %s220 = smul.u32 4, %s14
      %p221 = scmp.lt.s32.totalorder %s220, 15
      %s222 = scalar_select %p221, %s220, 15
      %s223 = smul.addr %s222, 4
      %s224 = scalar_lea.vmem %s3, %s223
      // Predicated region
      $region33: #{generator_forward.16} parent=31 // pred_check
        %p225 = pneg %p100
      $region34: #{generator_forward.16} parent=31 // pred_check_branch
        %227 = sbr.rel (%p225) target = $region36
      $region35: #{generator_forward.16} parent=31 // pred_region
        %s228 = smul.u32 4, %s14
      $region36: #{generator_forward.16} parent=31 // pred_fallthru
        _
    $region32: #{generator_forward.16} parent=5 // pred_fallthru
      _
    %p229 = scmp.le.s32.totalorder 2, %s9
    // Predicated region
    $region37: #{generator_forward.16} parent=5 // pred_check
      %p230 = pneg %p229
    $region38: #{generator_forward.16} parent=5 // pred_check_branch
      %232 = sbr.rel (%p230) target = $region40
    $region39: #{generator_forward.16} parent=5 // pred_region
      %s233 = ssub.s32 %s9, 2
      // Predicated region
      $region41: #{generator_forward.16} parent=39 // pred_check
        %p234 = pneg %p106
      $region42: #{generator_forward.16} parent=39 // pred_check_branch
        %236 = sbr.rel (%p234) target = $region44
      $region43: #{generator_forward.16} parent=39 // pred_region
        %s237 = smul.u32 4, %s15
        %p238 = scmp.lt.s32.totalorder %s237, 15
        %s239 = scalar_select %p238, %s237, 15
        %s240 = smul.addr %s239, 4
        %s241 = scalar_lea.vmem %s3, %s240
      $region44: #{generator_forward.16} parent=39 // pred_fallthru
        _
    $region40: #{generator_forward.16} parent=5 // pred_fallthru
      _
  $region6: #{generator_forward.16} parent=0 // loop_footer
    %s13 = sadd.s32 1, %s9
  $region7: #{generator_forward.16} parent=0 // loop_footer_branch
    %8 = sbr.rel target = $region3
  $region8: #{generator_forward.16} parent=0 // loop_exit
    _

// kernel: generator_forward.17
$region0: #{generator_forward.17}
  #allocation0 [shape = 'u32[]', space=smem, size = 0x4, offset = 0x4, fixed_abs, tag = 'smem constant byte address 0x4 - core index']
  #allocation1 [shape = 'u32[144,128]{1,0:T(1,128)}', space=vmem, size = 0x12000, scoped, tag = 'internal scratch']
  %s0 = inlined_call_operand.vmem [shape: bf16[3,128], index: 0, kind: input, shape index: {}]
  %s1 = inlined_call_operand.vmem [shape: bf16[128,8192], index: 1, kind: input, shape index: {}]
  %s2 = inlined_call_operand.vmem [shape: f32[3,8192], index: 2, kind: output, shape index: {}]
  %s3 = sld [smem:[#allocation0]]
  $region64: #{generator_forward.17} parent=0
    _
  %s5 = ssub.s32 1, %s3
  %s6 = scalar_select 0, %s5, %s3
  $region1: #{generator_forward.17} parent=0
    #allocation2 [shape = 'u8[262144]{0}', space=vmem, size = 0x40000, scoped, tag = 'input window, operand 1']
    loop: start=0, step=1, limit=18
    $region2: #{generator_forward.17} parent=1 // loop_pre_header
      _
    $region3: #{generator_forward.17} parent=1 // loop_header
      %s8 = sphi 0, %s12
      %p9 = scmp.ge.s32.totalorder %s8, 18
      %s16 = sphi 0, %s16
      %s18 = sphi 0, %s16
      %s19 = sphi 0, %s18
      %s33 = sphi 0, %s19
      %s39 = sphi 0, %s41
      %s42 = sphi 0, %s39
      %s43 = sphi 0, %s42
      %s59 = sphi 0, %s43
      %s65 = sphi 0, %s67
      %s68 = sphi 0, %s65
      %s69 = sphi 0, %s68
      %s85 = sphi 0, %s69
    $region4: #{generator_forward.17} parent=1 // loop_header_branch
      %11 = sbr.rel (%p9) target = $region8
    $region5: #{generator_forward.17} parent=1 // loop_body
      %s13 = ssub.s32 %s8, 1
      %s14 = ssub.s32 %s8, 2
      %s15 = sadd.s32 %s8, 1
      %s17 = sadd.s32 %s16, 1
      %p20 = scmp.eq.s32.totalorder %s8, 15
      %p21 = scmp.ne.s32.totalorder %s16, %s18
      %p22 = scmp.eq.s32.totalorder %s8, 0
      %p23 = por %p21, %p22
      %p24 = scmp.ne.s32.totalorder %s16, %s18
      %p25 = scmp.eq.s32.totalorder %s13, 15
      %p26 = por %p24, %p25
      %p27 = scmp.ne.s32.totalorder %s18, %s19
      %p28 = scmp.eq.s32.totalorder %s13, 0
      %p29 = por %p27, %p28
      %p30 = scmp.ne.s32.totalorder %s18, %s19
      %p31 = scmp.eq.s32.totalorder %s14, 15
      %p32 = por %p30, %p31
      %p34 = scmp.ne.s32.totalorder %s19, %s33
      %p35 = scmp.eq.s32.totalorder %s14, 0
      %p36 = por %p34, %p35
      %s37 = ssub.s32 %s8, %s15
      %p38 = scmp.eq.s32.totalorder %s37, 0
      %s40 = sadd.s32 %s39, 1
      %s41 = scalar_select %p38, %s39, %s40
      %p44 = pneg %p38
      %p45 = scmp.eq.s32.totalorder %s8, 15
      %p46 = por %p44, %p45
      %p47 = scmp.ne.s32.totalorder %s39, %s42
      %p48 = scmp.eq.s32.totalorder %s8, 0
      %p49 = por %p47, %p48
      %p50 = scmp.ne.s32.totalorder %s39, %s42
      %p51 = scmp.eq.s32.totalorder %s13, 15
      %p52 = por %p50, %p51
      %p53 = scmp.ne.s32.totalorder %s42, %s43
      %p54 = scmp.eq.s32.totalorder %s13, 0
      %p55 = por %p53, %p54
      %p56 = scmp.ne.s32.totalorder %s42, %s43
      %p57 = scmp.eq.s32.totalorder %s14, 15
      %p58 = por %p56, %p57
      %p60 = scmp.ne.s32.totalorder %s43, %s59
      %p61 = scmp.eq.s32.totalorder %s14, 0
      %p62 = por %p60, %p61
      %s63 = ssub.s32 %s8, %s15
      %p64 = scmp.eq.s32.totalorder %s63, 0
      %s66 = sadd.s32 %s65, 1
      %s67 = scalar_select %p64, %s65, %s66
      %p70 = pneg %p64
      %p71 = scmp.eq.s32.totalorder %s8, 15
      %p72 = por %p70, %p71
      %p73 = scmp.ne.s32.totalorder %s65, %s68
      %p74 = scmp.eq.s32.totalorder %s8, 0
      %p75 = por %p73, %p74
      %p76 = scmp.ne.s32.totalorder %s65, %s68
      %p77 = scmp.eq.s32.totalorder %s13, 15
      %p78 = por %p76, %p77
      %p79 = scmp.ne.s32.totalorder %s68, %s69
      %p80 = scmp.eq.s32.totalorder %s13, 0
      %p81 = por %p79, %p80
      %p82 = scmp.ne.s32.totalorder %s68, %s69
      %p83 = scmp.eq.s32.totalorder %s14, 15
      %p84 = por %p82, %p83
      %p86 = scmp.ne.s32.totalorder %s69, %s85
      %p87 = scmp.eq.s32.totalorder %s14, 0
      %p88 = por %p86, %p87
      %p89 = scmp.le.s32.totalorder 1, %s8
      %p90 = scmp.lt.s32.totalorder %s8, 17
      %p91 = pnand %p89, %p90
      %p92 = pneg %p91
      // Predicated region
      $region9: #{generator_forward.17} parent=5 // pred_check
        _
      $region10: #{generator_forward.17} parent=5 // pred_check_branch
        %94 = sbr.rel (%p91) target = $region12
      $region11: #{generator_forward.17} parent=5 // pred_region
        %s95 = ssub.s32 %s8, 1
        // Predicated region
        $region13: #{generator_forward.17} parent=11 // pred_check
          %p96 = pneg %p29
        $region14: #{generator_forward.17} parent=11 // pred_check_branch
          %98 = sbr.rel (%p96) target = $region16
        $region15: #{generator_forward.17} parent=11 // pred_region
          _
        $region16: #{generator_forward.17} parent=11 // pred_fallthru
          _
      $region12: #{generator_forward.17} parent=5 // pred_fallthru
        _
      %p99 = scmp.lt.s32.totalorder %s8, 16
      // Predicated region
      $region17: #{generator_forward.17} parent=5 // pred_check
        %p100 = pneg %p99
      $region18: #{generator_forward.17} parent=5 // pred_check_branch
        %102 = sbr.rel (%p100) target = $region20
      $region19: #{generator_forward.17} parent=5 // pred_region
        // Predicated region
        $region21: #{generator_forward.17} parent=19 // pred_check
          %p103 = pneg %p49
        $region22: #{generator_forward.17} parent=19 // pred_check_branch
          %105 = sbr.rel (%p103) target = $region24
        $region23: #{generator_forward.17} parent=19 // pred_region
          %s106 = sand.u32 %s39, 1
          %s107 = sand.u32 %s39, 1
          %s108 = smul.addr %s107, 256
          %s109 = scalar_lea.vmem [#allocation2], %s108
          %s110 = smul.u32 4, %s8
          %s111 = smul.addr %s110, 4
          %s112 = scalar_lea.vmem %s1, %s111
          // Predicated region
          $region25: #{generator_forward.17} parent=23 // pred_check
            _
          $region26: #{generator_forward.17} parent=23 // pred_check_branch
            %114 = sbr.rel (0) target = $region28
          $region27: #{generator_forward.17} parent=23 // pred_region
            // Predicated region
            $region29: #{generator_forward.17} parent=27 // pred_check
              _
            $region30: #{generator_forward.17} parent=27 // pred_check_branch
              %116 = sbr.rel (0) target = $region32
            $region31: #{generator_forward.17} parent=27 // pred_region
              loop: start=0, step=1, limit=1
              $region33: #{generator_forward.17} parent=31 // loop_pre_header
                _
              $region34: #{generator_forward.17} parent=31 // loop_header
                %s118 = sphi 0, %s122
                %p119 = scmp.ge.s32.totalorder %s118, 1
                %s123 = sphi %s112, %s112
                %s124 = sphi %s109, %s109
              $region35: #{generator_forward.17} parent=31 // loop_header_branch
                %121 = sbr.rel (%p119) target = $region39
              $region36: #{generator_forward.17} parent=31 // loop_body
                %v125 = vld [vmem:[%s123] sm:$0xff]
                %126 = vst [vmem:[%s124] sm:$0xff] %v125
                %v127 = vld [vmem:[%s123 + $0x8] sm:$0xff]
                %128 = vst [vmem:[%s124 + $0x8] sm:$0xff] %v127
                %v129 = vld [vmem:[%s123 + $0x100] sm:$0xff]
                %130 = vst [vmem:[%s124 + $0x10] sm:$0xff] %v129
                %v131 = vld [vmem:[%s123 + $0x108] sm:$0xff]
                %132 = vst [vmem:[%s124 + $0x18] sm:$0xff] %v131
                %v133 = vld [vmem:[%s123 + $0x200] sm:$0xff]
                %134 = vst [vmem:[%s124 + $0x20] sm:$0xff] %v133
                %v135 = vld [vmem:[%s123 + $0x208] sm:$0xff]
                %136 = vst [vmem:[%s124 + $0x28] sm:$0xff] %v135
                %v137 = vld [vmem:[%s123 + $0x300] sm:$0xff]
                %138 = vst [vmem:[%s124 + $0x30] sm:$0xff] %v137
                %v139 = vld [vmem:[%s123 + $0x308] sm:$0xff]
                %140 = vst [vmem:[%s124 + $0x38] sm:$0xff] %v139
                %v141 = vld [vmem:[%s123 + $0x400] sm:$0xff]
                %142 = vst [vmem:[%s124 + $0x40] sm:$0xff] %v141
                %v143 = vld [vmem:[%s123 + $0x408] sm:$0xff]
                %144 = vst [vmem:[%s124 + $0x48] sm:$0xff] %v143
                %v145 = vld [vmem:[%s123 + $0x500] sm:$0xff]
                %146 = vst [vmem:[%s124 + $0x50] sm:$0xff] %v145
                %v147 = vld [vmem:[%s123 + $0x508] sm:$0xff]
                %148 = vst [vmem:[%s124 + $0x58] sm:$0xff] %v147
                %v149 = vld [vmem:[%s123 + $0x600] sm:$0xff]
                %150 = vst [vmem:[%s124 + $0x60] sm:$0xff] %v149
                %v151 = vld [vmem:[%s123 + $0x608] sm:$0xff]
                %152 = vst [vmem:[%s124 + $0x68] sm:$0xff] %v151
                %v153 = vld [vmem:[%s123 + $0x700] sm:$0xff]
                %154 = vst [vmem:[%s124 + $0x70] sm:$0xff] %v153
                %v155 = vld [vmem:[%s123 + $0x708] sm:$0xff]
                %156 = vst [vmem:[%s124 + $0x78] sm:$0xff] %v155
                %v157 = vld [vmem:[%s123 + $0x800] sm:$0xff]
                %158 = vst [vmem:[%s124 + $0x80] sm:$0xff] %v157
                %v159 = vld [vmem:[%s123 + $0x808] sm:$0xff]
                %160 = vst [vmem:[%s124 + $0x88] sm:$0xff] %v159
                %v161 = vld [vmem:[%s123 + $0x900] sm:$0xff]
                %162 = vst [vmem:[%s124 + $0x90] sm:$0xff] %v161
                %v163 = vld [vmem:[%s123 + $0x908] sm:$0xff]
                %164 = vst [vmem:[%s124 + $0x98] sm:$0xff] %v163
                %v165 = vld [vmem:[%s123 + $0xa00] sm:$0xff]
                %166 = vst [vmem:[%s124 + $0xa0] sm:$0xff] %v165
                %v167 = vld [vmem:[%s123 + $0xa08] sm:$0xff]
                %168 = vst [vmem:[%s124 + $0xa8] sm:$0xff] %v167
                %v169 = vld [vmem:[%s123 + $0xb00] sm:$0xff]
                %170 = vst [vmem:[%s124 + $0xb0] sm:$0xff] %v169
                %v171 = vld [vmem:[%s123 + $0xb08] sm:$0xff]
                %172 = vst [vmem:[%s124 + $0xb8] sm:$0xff] %v171
                %v173 = vld [vmem:[%s123 + $0xc00] sm:$0xff]
                %174 = vst [vmem:[%s124 + $0xc0] sm:$0xff] %v173
                %v175 = vld [vmem:[%s123 + $0xc08] sm:$0xff]
                %176 = vst [vmem:[%s124 + $0xc8] sm:$0xff] %v175
                %v177 = vld [vmem:[%s123 + $0xd00] sm:$0xff]
                %178 = vst [vmem:[%s124 + $0xd0] sm:$0xff] %v177
                %v179 = vld [vmem:[%s123 + $0xd08] sm:$0xff]
                %180 = vst [vmem:[%s124 + $0xd8] sm:$0xff] %v179
                %v181 = vld [vmem:[%s123 + $0xe00] sm:$0xff]
                %182 = vst [vmem:[%s124 + $0xe0] sm:$0xff] %v181
                %v183 = vld [vmem:[%s123 + $0xe08] sm:$0xff]
                %184 = vst [vmem:[%s124 + $0xe8] sm:$0xff] %v183
                %v185 = vld [vmem:[%s123 + $0xf00] sm:$0xff]
                %186 = vst [vmem:[%s124 + $0xf0] sm:$0xff] %v185
                %v187 = vld [vmem:[%s123 + $0xf08] sm:$0xff]
                %188 = vst [vmem:[%s124 + $0xf8] sm:$0xff] %v187
              $region37: #{generator_forward.17} parent=31 // loop_footer
                %s122 = sadd.s32 1, %s118
              $region38: #{generator_forward.17} parent=31 // loop_footer_branch
                %117 = sbr.rel target = $region34
              $region39: #{generator_forward.17} parent=31 // loop_exit
                _
            $region32: #{generator_forward.17} parent=27 // pred_fallthru
              _
            // Predicated region
            $region40: #{generator_forward.17} parent=27 // pred_check
              _
            $region41: #{generator_forward.17} parent=27 // pred_check_branch
              %190 = sbr.rel target = $region43
            $region42: #{generator_forward.17} parent=27 // pred_region
              _
            $region43: #{generator_forward.17} parent=27 // pred_fallthru
              _
          $region28: #{generator_forward.17} parent=23 // pred_fallthru
            _
          %191 = vnop
        $region24: #{generator_forward.17} parent=19 // pred_fallthru
          _
      $region20: #{generator_forward.17} parent=5 // pred_fallthru
        _
      %p192 = scmp.le.s32.totalorder 1, %s8
      %p193 = scmp.lt.s32.totalorder %s8, 17
      %p194 = pnand %p192, %p193
      %p195 = pneg %p194
      // Predicated region
      $region44: #{generator_forward.17} parent=5 // pred_check
        _
      $region45: #{generator_forward.17} parent=5 // pred_check_branch
        %197 = sbr.rel (%p194) target = $region47
      $region46: #{generator_forward.17} parent=5 // pred_region
        %s198 = ssub.s32 %s8, 1
        %s199 = sand.u32 %s42, 1
        %s200 = sand.u32 %s42, 1
        %s201 = smul.addr %s200, 256
        %s202 = scalar_lea.vmem [#allocation2], %s201
        // Predicated region
        $region48: #{generator_forward.17} parent=46 // pred_check
          %p203 = pneg %p55
        $region49: #{generator_forward.17} parent=46 // pred_check_branch
          %205 = sbr.rel (%p203) target = $region51
        $region50: #{generator_forward.17} parent=46 // pred_region
          _
        $region51: #{generator_forward.17} parent=46 // pred_fallthru
          _
        %p206 = pneg %p29
        %p207 = pneg %p26
        %s208 = sand.u32 %s42, 1
        %s209 = sand.u32 %s42, 1
        %s210 = smul.addr %s209, 256
        %s211 = scalar_lea.vmem [#allocation2], %s210
        %p212 = pneg %p55
        %p213 = pneg %p52
        %p214 = pneg %p81
        %p215 = pneg %p78
        %s216 = smul.u32 4, %s13
        %p217 = scmp.lt.s32.totalorder %s216, 63
        %s218 = scalar_select %p217, %s216, 63
        %s219 = smul.addr %s218, 4
        %s220 = scalar_lea.vmem %s2, %s219
        %s221 = smul.u32 4, %s13
        %s222 = smul.u32 4, %s13
        %p223 = scmp.lt.s32.totalorder %s222, 63
        %s224 = scalar_select %p223, %s222, 63
        %s225 = smul.addr %s224, 4
        %s226 = scalar_lea.vmem %s2, %s225
        %s227 = smul.u32 4, %s13
        %v229 = vld [vmem:[%s0] sm:$0x3]
        %v230 = vld [vmem:[%s202] sm:$0xff]
        %v231 = vld [vmem:[%s202 + $0x8] sm:$0xff]
        %v232 = vld [vmem:[%s202 + $0x10] sm:$0xff]
        %v233 = vld [vmem:[%s202 + $0x18] sm:$0xff]
        %v234 = vld [vmem:[%s202 + $0x20] sm:$0xff]
        %v235 = vld [vmem:[%s202 + $0x28] sm:$0xff]
        %v236 = vld [vmem:[%s202 + $0x30] sm:$0xff]
        %v237 = vld [vmem:[%s202 + $0x38] sm:$0xff]
        %v238 = vld [vmem:[%s202 + $0x40] sm:$0xff]
        %v239 = vld [vmem:[%s202 + $0x48] sm:$0xff]
        %v240 = vld [vmem:[%s202 + $0x50] sm:$0xff]
        %v241 = vld [vmem:[%s202 + $0x58] sm:$0xff]
        %v242 = vld [vmem:[%s202 + $0x60] sm:$0xff]
        %v243 = vld [vmem:[%s202 + $0x68] sm:$0xff]
        %v244 = vld [vmem:[%s202 + $0x70] sm:$0xff]
        %v245 = vld [vmem:[%s202 + $0x78] sm:$0xff]
        %v246 = vld [vmem:[%s202 + $0x80] sm:$0xff]
        %v247 = vld [vmem:[%s202 + $0x88] sm:$0xff]
        %v248 = vld [vmem:[%s202 + $0x90] sm:$0xff]
        %v249 = vld [vmem:[%s202 + $0x98] sm:$0xff]
        %v250 = vld [vmem:[%s202 + $0xa0] sm:$0xff]
        %v251 = vld [vmem:[%s202 + $0xa8] sm:$0xff]
        %v252 = vld [vmem:[%s202 + $0xb0] sm:$0xff]
        %v253 = vld [vmem:[%s202 + $0xb8] sm:$0xff]
        %v254 = vld [vmem:[%s202 + $0xc0] sm:$0xff]
        %v255 = vld [vmem:[%s202 + $0xc8] sm:$0xff]
        %v256 = vld [vmem:[%s202 + $0xd0] sm:$0xff]
        %v257 = vld [vmem:[%s202 + $0xd8] sm:$0xff]
        %v258 = vld [vmem:[%s202 + $0xe0] sm:$0xff]
        %v259 = vld [vmem:[%s202 + $0xe8] sm:$0xff]
        %v260 = vld [vmem:[%s202 + $0xf0] sm:$0xff]
        %v261 = vld [vmem:[%s202 + $0xf8] sm:$0xff]
        %v294 = vunpack.c.l.b16 %v230
        %v295 = vunpack.c.h.b16 %v230
        %v296 = vunpack.c.l.b16 %v231
        %v297 = vunpack.c.h.b16 %v231
        %v298 = vunpack.c.l.b16 %v232
        %v299 = vunpack.c.h.b16 %v232
        %v300 = vunpack.c.l.b16 %v233
        %v301 = vunpack.c.h.b16 %v233
        %v302 = vunpack.c.l.b16 %v234
        %v303 = vunpack.c.h.b16 %v234
        %v304 = vunpack.c.l.b16 %v235
        %v305 = vunpack.c.h.b16 %v235
        %v306 = vunpack.c.l.b16 %v236
        %v307 = vunpack.c.h.b16 %v236
        %v308 = vunpack.c.l.b16 %v237
        %v309 = vunpack.c.h.b16 %v237
        %v310 = vunpack.c.l.b16 %v238
        %v311 = vunpack.c.h.b16 %v238
        %v312 = vunpack.c.l.b16 %v239
        %v313 = vunpack.c.h.b16 %v239
        %v314 = vunpack.c.l.b16 %v240
        %v315 = vunpack.c.h.b16 %v240
        %v316 = vunpack.c.l.b16 %v241
        %v317 = vunpack.c.h.b16 %v241
        %v318 = vunpack.c.l.b16 %v242
        %v319 = vunpack.c.h.b16 %v242
        %v320 = vunpack.c.l.b16 %v243
        %v321 = vunpack.c.h.b16 %v243
        %v322 = vunpack.c.l.b16 %v244
        %v323 = vunpack.c.h.b16 %v244
        %v324 = vunpack.c.l.b16 %v245
        %v325 = vunpack.c.h.b16 %v245
        %v326 = vunpack.c.l.b16 %v246
        %v327 = vunpack.c.h.b16 %v246
        %v328 = vunpack.c.l.b16 %v247
        %v329 = vunpack.c.h.b16 %v247
        %v330 = vunpack.c.l.b16 %v248
        %v331 = vunpack.c.h.b16 %v248
        %v332 = vunpack.c.l.b16 %v249
        %v333 = vunpack.c.h.b16 %v249
        %v334 = vunpack.c.l.b16 %v250
        %v335 = vunpack.c.h.b16 %v250
        %v336 = vunpack.c.l.b16 %v251
        %v337 = vunpack.c.h.b16 %v251
        %v338 = vunpack.c.l.b16 %v252
        %v339 = vunpack.c.h.b16 %v252
        %v340 = vunpack.c.l.b16 %v253
        %v341 = vunpack.c.h.b16 %v253
        %v342 = vunpack.c.l.b16 %v254
        %v343 = vunpack.c.h.b16 %v254
        %v344 = vunpack.c.l.b16 %v255
        %v345 = vunpack.c.h.b16 %v255
        %v346 = vunpack.c.l.b16 %v256
        %v347 = vunpack.c.h.b16 %v256
        %v348 = vunpack.c.l.b16 %v257
        %v349 = vunpack.c.h.b16 %v257
        %v350 = vunpack.c.l.b16 %v258
        %v351 = vunpack.c.h.b16 %v258
        %v352 = vunpack.c.l.b16 %v259
        %v353 = vunpack.c.h.b16 %v259
        %v354 = vunpack.c.l.b16 %v260
        %v355 = vunpack.c.h.b16 %v260
        %v356 = vunpack.c.l.b16 %v261
        %v357 = vunpack.c.h.b16 %v261
        %v358 = vpack.c.b16 %v298, %v294
        %v359 = vpack.c.b16 %v299, %v295
        %v360 = vpack.c.b16 %v300, %v296
        %v361 = vpack.c.b16 %v301, %v297
        %v362 = vpack.c.b16 %v306, %v302
        %v363 = vpack.c.b16 %v307, %v303
        %v364 = vpack.c.b16 %v308, %v304
        %v365 = vpack.c.b16 %v309, %v305
        %v366 = vpack.c.b16 %v314, %v310
        %v367 = vpack.c.b16 %v315, %v311
        %v368 = vpack.c.b16 %v316, %v312
        %v369 = vpack.c.b16 %v317, %v313
        %v370 = vpack.c.b16 %v322, %v318
        %v371 = vpack.c.b16 %v323, %v319
        %v372 = vpack.c.b16 %v324, %v320
        %v373 = vpack.c.b16 %v325, %v321
        %v374 = vpack.c.b16 %v330, %v326
        %v375 = vpack.c.b16 %v331, %v327
        %v376 = vpack.c.b16 %v332, %v328
        %v377 = vpack.c.b16 %v333, %v329
        %v378 = vpack.c.b16 %v338, %v334
        %v379 = vpack.c.b16 %v339, %v335
        %v380 = vpack.c.b16 %v340, %v336
        %v381 = vpack.c.b16 %v341, %v337
        %v382 = vpack.c.b16 %v346, %v342
        %v383 = vpack.c.b16 %v347, %v343
        %v384 = vpack.c.b16 %v348, %v344
        %v385 = vpack.c.b16 %v349, %v345
        %v386 = vpack.c.b16 %v354, %v350
        %v387 = vpack.c.b16 %v355, %v351
        %v388 = vpack.c.b16 %v356, %v352
        %v389 = vpack.c.b16 %v357, %v353
        %422 = vmatprep.subr.bf16.mxu0 %v359
        %423 = vmatpush1.bf16.msra.mxu0 %v358
        %424 = vmatprep.subr.bf16.mxu0 %v363
        %425 = vmatpush1.bf16.msra.mxu0 %v362
        %426 = vmatprep.subr.bf16.mxu0 %v367
        %427 = vmatpush1.bf16.msra.mxu0 %v366
        %428 = vmatprep.subr.bf16.mxu0 %v371
        %429 = vmatpush1.bf16.msra.mxu0 %v370
        %430 = vmatprep.subr.bf16.mxu0 %v375
        %431 = vmatpush1.bf16.msra.mxu0 %v374
        %432 = vmatprep.subr.bf16.mxu0 %v379
        %433 = vmatpush1.bf16.msra.mxu0 %v378
        %434 = vmatprep.subr.bf16.mxu0 %v383
        %435 = vmatpush1.bf16.msra.mxu0 %v382
        %436 = vmatprep.subr.bf16.mxu0 %v387
        %437 = vmatpush1.bf16.msra.mxu0 %v386
        %438 = vmatprep.subr.bf16.mxu0 0
        %439 = vmatpush1.bf16.msra.mxu0 0
        %440 = vmatprep.subr.bf16.mxu0 0
        %441 = vmatpush1.bf16.msra.mxu0 0
        %442 = vmatprep.subr.bf16.mxu0 0
        %443 = vmatpush1.bf16.msra.mxu0 0
        %444 = vmatprep.subr.bf16.mxu0 0
        %445 = vmatpush1.bf16.msra.mxu0 0
        %446 = vmatprep.subr.bf16.mxu0 0
        %447 = vmatpush1.bf16.msra.mxu0 0
        %448 = vmatprep.subr.bf16.mxu0 0
        %449 = vmatpush1.bf16.msra.mxu0 0
        %450 = vmatprep.subr.bf16.mxu0 0
        %451 = vmatpush1.bf16.msra.mxu0 0
        %452 = vmatprep.subr.bf16.mxu0 0
        %453 = vmatpush1.bf16.msra.mxu0 0
        %454 = vmatprep.mubr.bf16.mxu0 0
        %455 = vmatmul.mubr.bf16.gmra.mrb[0].mxu0 %v229
        %v456 = vpop.f32.mrb[0].mxu0
        %v457 = vadd.f32 0.0, %v456
        %v458 = vpop.f32.mrb[0].mxu0
        %v459 = vadd.f32 0.0, %v458
        %v460 = vpop.f32.mrb[0].mxu0
        %v461 = vpop.f32.mrb[0].mxu0
        %462 = vdwg.mxu0
        %463 = vmatprep.subr.bf16.mxu0 %v361
        %464 = vmatpush1.bf16.msra.mxu0 %v360
        %465 = vmatprep.subr.bf16.mxu0 %v365
        %466 = vmatpush1.bf16.msra.mxu0 %v364
        %467 = vmatprep.subr.bf16.mxu0 %v369
        %468 = vmatpush1.bf16.msra.mxu0 %v368
        %469 = vmatprep.subr.bf16.mxu0 %v373
        %470 = vmatpush1.bf16.msra.mxu0 %v372
        %471 = vmatprep.subr.bf16.mxu0 %v377
        %472 = vmatpush1.bf16.msra.mxu0 %v376
        %473 = vmatprep.subr.bf16.mxu0 %v381
        %474 = vmatpush1.bf16.msra.mxu0 %v380
        %475 = vmatprep.subr.bf16.mxu0 %v385
        %476 = vmatpush1.bf16.msra.mxu0 %v384
        %477 = vmatprep.subr.bf16.mxu0 %v389
        %478 = vmatpush1.bf16.msra.mxu0 %v388
        %479 = vmatprep.subr.bf16.mxu0 0
        %480 = vmatpush1.bf16.msra.mxu0 0
        %481 = vmatprep.subr.bf16.mxu0 0
        %482 = vmatpush1.bf16.msra.mxu0 0
        %483 = vmatprep.subr.bf16.mxu0 0
        %484 = vmatpush1.bf16.msra.mxu0 0
        %485 = vmatprep.subr.bf16.mxu0 0
        %486 = vmatpush1.bf16.msra.mxu0 0
        %487 = vmatprep.subr.bf16.mxu0 0
        %488 = vmatpush1.bf16.msra.mxu0 0
        %489 = vmatprep.subr.bf16.mxu0 0
        %490 = vmatpush1.bf16.msra.mxu0 0
        %491 = vmatprep.subr.bf16.mxu0 0
        %492 = vmatpush1.bf16.msra.mxu0 0
        %493 = vmatprep.subr.bf16.mxu0 0
        %494 = vmatpush1.bf16.msra.mxu0 0
        %495 = vmatprep.mubr.bf16.mxu0 0
        %496 = vmatmul.mubr.bf16.gmra.mrb[0].mxu0 %v229
        %v497 = vpop.f32.mrb[0].mxu0
        %v498 = vadd.f32 0.0, %v497
        %v499 = vpop.f32.mrb[0].mxu0
        %v500 = vadd.f32 0.0, %v499
        %v501 = vpop.f32.mrb[0].mxu0
        %v502 = vpop.f32.mrb[0].mxu0
        %503 = vdwg.mxu0
        %v504 = vxor.u32 %v457, 2147483648
        %v505 = vxor.u32 %v459, 2147483648
        %v506 = vxor.u32 %v498, 2147483648
        %v507 = vxor.u32 %v500, 2147483648
        %v508 = vmul.f32 %v504, 1.442695
        %v509 = vpow.pop %v508
        %v510 = vmul.f32 %v505, 1.442695
        %v511 = vpow.pop %v510
        %v512 = vmul.f32 %v506, 1.442695
        %v513 = vpow.pop %v512
        %v514 = vmul.f32 %v507, 1.442695
        %v515 = vpow.pop %v514
        %v516 = vadd.f32 %v509, 1.0
        %v517 = vadd.f32 %v511, 1.0
        %v518 = vadd.f32 %v513, 1.0
        %v519 = vadd.f32 %v515, 1.0
        %v520 = vrcp.pop %v516
        %v521 = vmul.f32 1.0, %v520
        %v522 = vrcp.pop %v517
        %v523 = vmul.f32 1.0, %v522
        %v524 = vrcp.pop %v518
        %v525 = vmul.f32 1.0, %v524
        %v526 = vrcp.pop %v519
        %v527 = vmul.f32 1.0, %v526
        %v532 = vcombine.low %v521, %v523
        %v533 = vcombine.low %v525, %v527
        %536 = vst [vmem:[%s226] sm:$0x77] %v532
        %537 = vst [vmem:[%s226 + $0x8] sm:$0x77] %v533
        %s538 = smul.u32 4, %s13
        %p539 = scmp.lt.s32.totalorder %s538, 63
        %s540 = scalar_select %p539, %s538, 63
        %s541 = smul.addr %s540, 4
        %s542 = scalar_lea.vmem %s2, %s541
        // Predicated region
        $region52: #{generator_forward.17} parent=46 // pred_check
          %p543 = pneg %p78
        $region53: #{generator_forward.17} parent=46 // pred_check_branch
          %545 = sbr.rel (%p543) target = $region55
        $region54: #{generator_forward.17} parent=46 // pred_region
          %s546 = smul.u32 4, %s13
        $region55: #{generator_forward.17} parent=46 // pred_fallthru
          _
      $region47: #{generator_forward.17} parent=5 // pred_fallthru
        _
      %p547 = scmp.le.s32.totalorder 2, %s8
      // Predicated region
      $region56: #{generator_forward.17} parent=5 // pred_check
        %p548 = pneg %p547
      $region57: #{generator_forward.17} parent=5 // pred_check_branch
        %550 = sbr.rel (%p548) target = $region59
      $region58: #{generator_forward.17} parent=5 // pred_region
        %s551 = ssub.s32 %s8, 2
        // Predicated region
        $region60: #{generator_forward.17} parent=58 // pred_check
          %p552 = pneg %p84
        $region61: #{generator_forward.17} parent=58 // pred_check_branch
          %554 = sbr.rel (%p552) target = $region63
        $region62: #{generator_forward.17} parent=58 // pred_region
          %s555 = smul.u32 4, %s14
          %p556 = scmp.lt.s32.totalorder %s555, 63
          %s557 = scalar_select %p556, %s555, 63
          %s558 = smul.addr %s557, 4
          %s559 = scalar_lea.vmem %s2, %s558
        $region63: #{generator_forward.17} parent=58 // pred_fallthru
          _
      $region59: #{generator_forward.17} parent=5 // pred_fallthru
        _
    $region6: #{generator_forward.17} parent=1 // loop_footer
      %s12 = sadd.s32 1, %s8
    $region7: #{generator_forward.17} parent=1 // loop_footer_branch
      %7 = sbr.rel target = $region3
    $region8: #{generator_forward.17} parent=1 // loop_exit
      _

</llo_original>
